<compile_context>
chip_gen: v7x
topology: tpu7x:2x2x1
jax: 0.10.0
libtpu: 0.0.40
codegen_flags: <defaults>
</compile_context>

<pallas_src>
import jax
import jax.numpy as jnp
import numpy as np
from jax.experimental import pallas as pl
from jax.experimental.pallas import tpu as pltpu


def _round_up(x, m):
    return (x + m - 1) // m * m


def _attention_kernel(x_ref, mask_ref, w_ref, out_ref):
    # Upcast so all elementwise math is f32 (v5e has no bf16 VPU/EUP path);
    # accepting bf16 x halves the dominant HBM stream when available upstream.
    x = x_ref[...].astype(jnp.float32)       # (TB, L, D)
    mask = mask_ref[...]                     # (TB, L) f32, 1.0 at padded positions
    w = w_ref[...].astype(jnp.float32)       # (1, D)   PyTorch Linear weight (out=1)

    # logits[b, l] = sum_d x[b, l, d] * w[0, d]
    # VPU broadcast-multiply + XLU cross-lane reduce; hidden under the x DMA.
    logits = jnp.sum(x * w[None, :, :], axis=-1)          # (TB, L)

    # In-kernel additive masking (one VPU op per vreg); large finite bias so the
    # exp underflows to exactly 0 at masked positions without NaN propagation.
    logits = logits - mask * jnp.float32(1e30)

    # Numerically-stable softmax over L; exact division keeps rows exactly
    # normalized (EUP is nowhere near the bottleneck).
    m = jnp.max(logits, axis=-1, keepdims=True)            # (TB, 1)
    e = jnp.exp(logits - m)                                 # (TB, L)
    denom = jnp.sum(e, axis=-1, keepdims=True)              # (TB, 1)
    out_ref[...] = (e / denom).astype(out_ref.dtype)


def _derive_batch_tile(B, L, D, x_block_budget_bytes=2 << 20):
    """Largest divisor of B whose f32 x block (D padded to 128 lanes) fits the
    VMEM budget; prefers multiples of 8 (sublane-aligned mask/output blocks) and
    keeps >= 2 grid steps when B allows (pipelining + v7x megacore sharding)."""
    d_pad = _round_up(D, 128)
    bytes_per_row = L * d_pad * 4                      # one batch element of x in VMEM
    cap = max(1, x_block_budget_bytes // bytes_per_row)
    if B >= 16:
        cap = min(cap, B // 2)                         # guarantee >= 2 grid steps
    divisors = [t for t in range(1, B + 1) if B % t == 0 and t <= cap]
    mult8 = [t for t in divisors if t % 8 == 0]
    return max(mult8) if mult8 else max(divisors)


def attention(x, x_mask, w, *, batch_tile=None):
    """x: (B, L, D) f32/bf16, x_mask: (B, L) {0,1}, w: (1, D) -> softmax scores (B, L).

    L should be a multiple of 128 for unmasked lane-dense output stores (the
    kernel is still correct otherwise).
    """
    B, L, D = x.shape
    assert w.shape == (1, D), "weight must be the PyTorch Linear(D, 1) weight of shape (1, D)"

    if batch_tile is None:
        batch_tile = _derive_batch_tile(B, L, D)
    assert B % batch_tile == 0, "batch must be divisible by batch_tile"

    # Raw {0,1} mask (cast only, ~1% of the x bytes).  The -1e30 scaling happens
    # inside the kernel -- no wrapper-side (B, L) f32 multiply round-trip.
    # TODO(synk): a producer-side int8 mask would cut mask DMA 4x more, but needs
    # (32, 128)-tile care; it is <1% of traffic so not worth it here.
    mask_f32 = x_mask.astype(jnp.float32)

    # Explicit scoped-VMEM budget: double-buffered x + mask + weight + output.
    d_pad = _round_up(D, 128)
    x_block = batch_tile * L * d_pad * 4
    small_block = batch_tile * L * 4
    w_block = 8 * d_pad * 4
    est_vmem = 2 * (x_block + small_block + w_block) + 2 * small_block
    vmem_limit = int(min(max(4 * est_vmem, 16 << 20), 32 << 20))

    bytes_accessed = (x.size * x.dtype.itemsize            # x stream (dominant)
                      + mask_f32.size * 4                  # mask
                      + w.size * w.dtype.itemsize          # weight
                      + B * L * 4)                         # output
    cost = pl.CostEstimate(flops=2 * B * L * D,
                           transcendentals=B * L,
                           bytes_accessed=bytes_accessed)

    grid_spec = pltpu.PrefetchScalarGridSpec(
        num_scalar_prefetch=0,
        grid=(B // batch_tile,),
        in_specs=[
            pl.BlockSpec((batch_tile, L, D), lambda b: (b, 0, 0)),   # x
            pl.BlockSpec((batch_tile, L), lambda b: (b, 0)),         # raw {0,1} mask
            pl.BlockSpec((1, D), lambda b: (0, 0)),                  # weight (1, D)
        ],
        out_specs=pl.BlockSpec((batch_tile, L), lambda b: (b, 0)),   # lane-dense (L)
    )

    return pl.pallas_call(
        _attention_kernel,
        out_shape=jax.ShapeDtypeStruct((B, L), jnp.float32),
        grid_spec=grid_spec,
        compiler_params=pltpu.CompilerParams(
            dimension_semantics=("parallel",),   # shards batch tiles over 2 TCs on v7x
            vmem_limit_bytes=vmem_limit),
        cost_estimate=cost,
    )(x, mask_f32, w)


def attention_ref(x, x_mask, w):
    """Pure-JAX reference matching the PyTorch forward."""
    logits = jnp.einsum('bld,d->bl', x.astype(jnp.float32), w[0].astype(jnp.float32))
    logits = jnp.where(x_mask.astype(bool), -jnp.inf, logits)
    return jax.nn.softmax(logits, axis=-1)


if __name__ == "__main__":
    # Small demo shapes: B=16 so the auto-derived batch_tile (8) gives a 2-step
    # grid (double-buffered pipeline + v7x megacore sharding); D=100 matches the
    # module default input_size.
    B, L, D = 16, 128, 100

    key = jax.random.PRNGKey(0)
    k1, k2 = jax.random.split(key, 2)

    x = jax.random.normal(k1, (B, L, D), dtype=jnp.float32)

    # Deterministic padding mask: 1 at trailing (padded) positions, never a
    # fully-masked row (matches how padding masks are used in practice).
    mask_np = np.zeros((B, L), dtype=np.float32)
    for b in range(B):
        n_pad = (7 * b) % (L // 2)       # 0..63 trailing padded positions
        if n_pad:
            mask_np[b, -n_pad:] = 1.0
    x_mask = jnp.asarray(mask_np)

    # Linear(D, 1, bias=False) weight, PyTorch layout (out_features=1, in_features=D)
    lim = 1.0 / np.sqrt(D)
    w = jax.random.uniform(k2, (1, D), jnp.float32, -lim, lim)

    out = attention(x, x_mask, w)
    out = jax.block_until_ready(out)

    ref = attention_ref(x, x_mask, w)

    np.testing.assert_allclose(np.asarray(out), np.asarray(ref), rtol=2e-5, atol=1e-6)
    # rows are exactly-normalized probability distributions (exact divide)
    np.testing.assert_allclose(np.asarray(out).sum(axis=-1),
                               np.ones((B,), dtype=np.float32),
                               rtol=1e-6, atol=1e-6)
    # masked positions get exactly zero probability (exp underflows at -1e30)
    assert float(np.abs(np.asarray(out) * mask_np).max()) == 0.0

    print("KERNEL_OK")
</pallas_src>

<mosaic_0001>
module attributes {stable_mosaic.version = 11 : i64} {
  func.func @_attention_kernel(%arg0: i32, %arg1: memref<8x128x100xf32, #tpu.memory_space<vmem>>, %arg2: memref<8x128xf32, #tpu.memory_space<vmem>>, %arg3: memref<1x100xf32, #tpu.memory_space<vmem>>, %arg4: memref<8x128xf32, #tpu.memory_space<vmem>>) attributes {dimension_semantics = [#tpu.dimension_semantics<parallel>], iteration_bounds = array<i64: 2>, scalar_prefetch = 0 : i64, scratch_operands = 0 : i64, tpu.core_type = #tpu.core_type<tc>, window_params = [{transform_indices = @transform_0, window_bounds = array<i64: 8, 128, 100>}, {transform_indices = @transform_1, window_bounds = array<i64: 8, 128>}, {pipeline_mode = #tpu.pipeline_mode<synchronous>, transform_indices = @transform_2, window_bounds = array<i64: 1, 100>}, {transform_indices = @transform_3, window_bounds = array<i64: 8, 128>}]} {
    %c0 = arith.constant 0 : index
    %c0_0 = arith.constant 0 : index
    %c0_1 = arith.constant 0 : index
    %0 = vector.load %arg1[%c0, %c0_0, %c0_1] : memref<8x128x100xf32, #tpu.memory_space<vmem>>, vector<8x128x100xf32>
    %c0_2 = arith.constant 0 : index
    %c0_3 = arith.constant 0 : index
    %1 = vector.load %arg2[%c0_2, %c0_3] : memref<8x128xf32, #tpu.memory_space<vmem>>, vector<8x128xf32>
    %c0_4 = arith.constant 0 : index
    %c0_5 = arith.constant 0 : index
    %2 = vector.load %arg3[%c0_4, %c0_5] : memref<1x100xf32, #tpu.memory_space<vmem>>, vector<1x100xf32>
    %3 = vector.shape_cast %2 : vector<1x100xf32> to vector<1x1x100xf32>
    %4 = vector.broadcast %3 : vector<1x1x100xf32> to vector<8x128x100xf32>
    %5 = arith.mulf %0, %4 : vector<8x128x100xf32>
    %cst = arith.constant dense<0.000000e+00> : vector<8x128xf32>
    %6 = vector.multi_reduction <add>, %5, %cst [2] : vector<8x128x100xf32> to vector<8x128xf32>
    %cst_6 = arith.constant 1.000000e+30 : f32
    %7 = vector.broadcast %cst_6 : f32 to vector<8x128xf32>
    %8 = arith.mulf %1, %7 : vector<8x128xf32>
    %9 = arith.subf %6, %8 : vector<8x128xf32>
    %cst_7 = arith.constant dense<0xFF800000> : vector<8xf32>
    %10 = vector.multi_reduction <maximumf>, %9, %cst_7 [1] : vector<8x128xf32> to vector<8xf32>
    %11 = vector.shape_cast %10 : vector<8xf32> to vector<8x1xf32>
    %12 = vector.broadcast %11 : vector<8x1xf32> to vector<8x128xf32>
    %13 = arith.subf %9, %12 : vector<8x128xf32>
    %14 = math.exp %13 : vector<8x128xf32>
    %cst_8 = arith.constant dense<0.000000e+00> : vector<8xf32>
    %15 = vector.multi_reduction <add>, %14, %cst_8 [1] : vector<8x128xf32> to vector<8xf32>
    %16 = vector.shape_cast %15 : vector<8xf32> to vector<8x1xf32>
    %17 = vector.broadcast %16 : vector<8x1xf32> to vector<8x128xf32>
    %18 = arith.divf %14, %17 : vector<8x128xf32>
    %c0_9 = arith.constant 0 : index
    %c0_10 = arith.constant 0 : index
    %19 = vector.load %arg4[%c0_9, %c0_10] : memref<8x128xf32, #tpu.memory_space<vmem>>, vector<8x128xf32>
    tpu.vector_store %arg4[%c0_9, %c0_10], %18 {strides = array<i32>} : memref<8x128xf32, #tpu.memory_space<vmem>>, vector<8x128xf32>,
    return
  }
  func.func @transform_0(%arg0: i32) -> (i32, i32, i32) {
    %c0_i32 = arith.constant 0 : i32
    %c0_i32_0 = arith.constant 0 : i32
    %c0_i32_1 = arith.constant 0 : i32
    return %arg0, %c0_i32, %c0_i32_0 : i32, i32, i32
  }
  func.func @transform_1(%arg0: i32) -> (i32, i32) {
    %c0_i32 = arith.constant 0 : i32
    %c0_i32_0 = arith.constant 0 : i32
    return %arg0, %c0_i32 : i32, i32
  }
  func.func @transform_2(%arg0: i32) -> (i32, i32) {
    %c0_i32 = arith.constant 0 : i32
    %c0_i32_0 = arith.constant 0 : i32
    %c0_i32_1 = arith.constant 0 : i32
    return %c0_i32, %c0_i32_0 : i32, i32
  }
  func.func @transform_3(%arg0: i32) -> (i32, i32) {
    %c0_i32 = arith.constant 0 : i32
    %c0_i32_0 = arith.constant 0 : i32
    return %arg0, %c0_i32 : i32, i32
  }
}

</mosaic_0001>

<llo_original>
// kernel: tpu_custom_call.1
$region0: #{tpu_custom_call.1}
  #allocation0 [shape = 'u32[]', space=smem, size = 0x4, offset = 0x4, fixed_abs, tag = 'smem constant byte address 0x4 - core index']
  #allocation1 [shape = 'u32[144,128]{1,0:T(1,128)}', space=vmem, size = 0x12000, scoped, tag = 'internal scratch']
  %s0 = inlined_call_operand.vmem [shape: f32[16,128,100], index: 0, kind: input, shape index: {}]
  %s1 = inlined_call_operand.vmem [shape: f32[16,128], index: 1, kind: input, shape index: {}]
  %s2 = inlined_call_operand.vmem [shape: f32[1,100], index: 2, kind: input, shape index: {}]
  %s3 = inlined_call_operand.hbm [shape: f32[16,128], index: 3, kind: output, shape index: {}]
  %s4 = sld [smem:[#allocation0]]
  $region45: #{tpu_custom_call.1} parent=0
    _
  %s6 = ssub.s32 1, %s4
  %s7 = scalar_select 0, %s6, %s4
  $region1: #{tpu_custom_call.1} parent=0
    #allocation2 [shape = 'u8[8192]{0}', space=vmem, size = 0x2000, scoped, tag = 'output window, operand 0']
    #allocation3 [shape = 's32[2]{0}', space=sflag, size = 0x8, scoped, tag = 'scoped memory for tpu_custom_call.1']
    %8 = vsyncpa [#allocation3], 0
    %s9 = scalar_lea.sflag [#allocation3], 1
    %10 = vsyncpa %s9, 0
    loop: start=0, step=1, limit=4
    $region2: #{tpu_custom_call.1} parent=1 // loop_pre_header
      _
    $region3: #{tpu_custom_call.1} parent=1 // loop_header
      %s12 = sphi 0, %s16
      %p13 = scmp.ge.s32.totalorder %s12, 4
      %s22 = sphi 0, %s24
      %s25 = sphi 0, %s22
      %s26 = sphi 0, %s25
      %s42 = sphi 0, %s26
      %s48 = sphi 0, %s50
      %s51 = sphi 0, %s48
      %s52 = sphi 0, %s51
      %s68 = sphi 0, %s52
      %s72 = sphi 0, %s72
      %s74 = sphi 0, %s72
      %s75 = sphi 0, %s74
      %s89 = sphi 0, %s75
      %s95 = sphi 0, %s97
      %s98 = sphi 0, %s95
      %s99 = sphi 0, %s98
      %s115 = sphi 0, %s99
    $region4: #{tpu_custom_call.1} parent=1 // loop_header_branch
      %15 = sbr.rel (%p13) target = $region8
    $region5: #{tpu_custom_call.1} parent=1 // loop_body
      %s17 = ssub.s32 %s12, 1
      %s18 = ssub.s32 %s12, 2
      %s19 = sadd.s32 %s12, 1
      %s20 = ssub.s32 %s12, %s19
      %p21 = scmp.eq.s32.totalorder %s20, 0
      %s23 = sadd.s32 %s22, 1
      %s24 = scalar_select %p21, %s22, %s23
      %p27 = pneg %p21
      %p28 = scmp.eq.s32.totalorder %s12, 1
      %p29 = por %p27, %p28
      %p30 = scmp.ne.s32.totalorder %s22, %s25
      %p31 = scmp.eq.s32.totalorder %s12, 0
      %p32 = por %p30, %p31
      %p33 = scmp.ne.s32.totalorder %s22, %s25
      %p34 = scmp.eq.s32.totalorder %s17, 1
      %p35 = por %p33, %p34
      %p36 = scmp.ne.s32.totalorder %s25, %s26
      %p37 = scmp.eq.s32.totalorder %s17, 0
      %p38 = por %p36, %p37
      %p39 = scmp.ne.s32.totalorder %s25, %s26
      %p40 = scmp.eq.s32.totalorder %s18, 1
      %p41 = por %p39, %p40
      %p43 = scmp.ne.s32.totalorder %s26, %s42
      %p44 = scmp.eq.s32.totalorder %s18, 0
      %p45 = por %p43, %p44
      %s46 = ssub.s32 %s12, %s19
      %p47 = scmp.eq.s32.totalorder %s46, 0
      %s49 = sadd.s32 %s48, 1
      %s50 = scalar_select %p47, %s48, %s49
      %p53 = pneg %p47
      %p54 = scmp.eq.s32.totalorder %s12, 1
      %p55 = por %p53, %p54
      %p56 = scmp.ne.s32.totalorder %s48, %s51
      %p57 = scmp.eq.s32.totalorder %s12, 0
      %p58 = por %p56, %p57
      %p59 = scmp.ne.s32.totalorder %s48, %s51
      %p60 = scmp.eq.s32.totalorder %s17, 1
      %p61 = por %p59, %p60
      %p62 = scmp.ne.s32.totalorder %s51, %s52
      %p63 = scmp.eq.s32.totalorder %s17, 0
      %p64 = por %p62, %p63
      %p65 = scmp.ne.s32.totalorder %s51, %s52
      %p66 = scmp.eq.s32.totalorder %s18, 1
      %p67 = por %p65, %p66
      %p69 = scmp.ne.s32.totalorder %s52, %s68
      %p70 = scmp.eq.s32.totalorder %s18, 0
      %p71 = por %p69, %p70
      %s73 = sadd.s32 %s72, 1
      %p76 = scmp.eq.s32.totalorder %s12, 1
      %p77 = scmp.ne.s32.totalorder %s72, %s74
      %p78 = scmp.eq.s32.totalorder %s12, 0
      %p79 = por %p77, %p78
      %p80 = scmp.ne.s32.totalorder %s72, %s74
      %p81 = scmp.eq.s32.totalorder %s17, 1
      %p82 = por %p80, %p81
      %p83 = scmp.ne.s32.totalorder %s74, %s75
      %p84 = scmp.eq.s32.totalorder %s17, 0
      %p85 = por %p83, %p84
      %p86 = scmp.ne.s32.totalorder %s74, %s75
      %p87 = scmp.eq.s32.totalorder %s18, 1
      %p88 = por %p86, %p87
      %p90 = scmp.ne.s32.totalorder %s75, %s89
      %p91 = scmp.eq.s32.totalorder %s18, 0
      %p92 = por %p90, %p91
      %s93 = ssub.s32 %s12, %s19
      %p94 = scmp.eq.s32.totalorder %s93, 0
      %s96 = sadd.s32 %s95, 1
      %s97 = scalar_select %p94, %s95, %s96
      %p100 = pneg %p94
      %p101 = scmp.eq.s32.totalorder %s12, 1
      %p102 = por %p100, %p101
      %p103 = scmp.ne.s32.totalorder %s95, %s98
      %p104 = scmp.eq.s32.totalorder %s12, 0
      %p105 = por %p103, %p104
      %p106 = scmp.ne.s32.totalorder %s95, %s98
      %p107 = scmp.eq.s32.totalorder %s17, 1
      %p108 = por %p106, %p107
      %p109 = scmp.ne.s32.totalorder %s98, %s99
      %p110 = scmp.eq.s32.totalorder %s17, 0
      %p111 = por %p109, %p110
      %p112 = scmp.ne.s32.totalorder %s98, %s99
      %p113 = scmp.eq.s32.totalorder %s18, 1
      %p114 = por %p112, %p113
      %p116 = scmp.ne.s32.totalorder %s99, %s115
      %p117 = scmp.eq.s32.totalorder %s18, 0
      %p118 = por %p116, %p117
      %p119 = scmp.le.s32.totalorder 1, %s12
      %p120 = scmp.lt.s32.totalorder %s12, 3
      %p121 = pnand %p119, %p120
      %p122 = pneg %p121
      // Predicated region
      $region9: #{tpu_custom_call.1} parent=5 // pred_check
        _
      $region10: #{tpu_custom_call.1} parent=5 // pred_check_branch
        %124 = sbr.rel (%p121) target = $region12
      $region11: #{tpu_custom_call.1} parent=5 // pred_region
        %s125 = ssub.s32 %s12, 1
        // Predicated region
        $region13: #{tpu_custom_call.1} parent=11 // pred_check
          %p126 = pneg %p85
        $region14: #{tpu_custom_call.1} parent=11 // pred_check_branch
          %128 = sbr.rel (%p126) target = $region16
        $region15: #{tpu_custom_call.1} parent=11 // pred_region
          _
        $region16: #{tpu_custom_call.1} parent=11 // pred_fallthru
          _
      $region12: #{tpu_custom_call.1} parent=5 // pred_fallthru
        _
      %p129 = scmp.lt.s32.totalorder %s12, 2
      // Predicated region
      $region17: #{tpu_custom_call.1} parent=5 // pred_check
        %p130 = pneg %p129
      $region18: #{tpu_custom_call.1} parent=5 // pred_check_branch
        %132 = sbr.rel (%p130) target = $region20
      $region19: #{tpu_custom_call.1} parent=5 // pred_region
        // Predicated region
        $region21: #{tpu_custom_call.1} parent=19 // pred_check
          %p133 = pneg %p32
        $region22: #{tpu_custom_call.1} parent=19 // pred_check_branch
          %135 = sbr.rel (%p133) target = $region24
        $region23: #{tpu_custom_call.1} parent=19 // pred_region
          %s136 = smul.u32 8, %s12
          %p137 = scmp.lt.s32.totalorder %s136, 15
          %s138 = scalar_select %p137, %s136, 15
          %s139 = smul.addr %s138, 16
          %s140 = smul.addr %s139, 8
          %s141 = scalar_lea.vmem %s0, %s140
          %s142 = smul.u32 8, %s12
        $region24: #{tpu_custom_call.1} parent=19 // pred_fallthru
          _
        // Predicated region
        $region25: #{tpu_custom_call.1} parent=19 // pred_check
          %p143 = pneg %p58
        $region26: #{tpu_custom_call.1} parent=19 // pred_check_branch
          %145 = sbr.rel (%p143) target = $region28
        $region27: #{tpu_custom_call.1} parent=19 // pred_region
          %p146 = scmp.lt.s32.totalorder %s12, 1
          %s147 = scalar_select %p146, %s12, 1
          %s148 = smul.addr %s147, 8
          %s149 = scalar_lea.vmem %s1, %s148
        $region28: #{tpu_custom_call.1} parent=19 // pred_fallthru
          _
      $region20: #{tpu_custom_call.1} parent=5 // pred_fallthru
        _
      %p150 = scmp.le.s32.totalorder 1, %s12
      %p151 = scmp.lt.s32.totalorder %s12, 3
      %p152 = pnand %p150, %p151
      %p153 = pneg %p152
      // Predicated region
      $region29: #{tpu_custom_call.1} parent=5 // pred_check
        _
      $region30: #{tpu_custom_call.1} parent=5 // pred_check_branch
        %155 = sbr.rel (%p152) target = $region32
      $region31: #{tpu_custom_call.1} parent=5 // pred_region
        %s156 = ssub.s32 %s12, 1
        %s157 = smul.u32 8, %s17
        %p158 = scmp.lt.s32.totalorder %s157, 15
        %s159 = scalar_select %p158, %s157, 15
        %s160 = smul.addr %s159, 16
        %s161 = smul.addr %s160, 8
        %s162 = scalar_lea.vmem %s0, %s161
        %p163 = pneg %p38
        %p164 = pneg %p35
        %p165 = scmp.lt.s32.totalorder %s17, 1
        %s166 = scalar_select %p165, %s17, 1
        %s167 = smul.addr %s166, 8
        %s168 = scalar_lea.vmem %s1, %s167
        %p169 = pneg %p64
        %p170 = pneg %p61
        %p171 = pneg %p85
        %p172 = pneg %p82
        %p173 = pneg %p111
        %p174 = pneg %p108
        %s175 = sand.u32 %s98, 1
        %s176 = scalar_lea.sflag [#allocation3], %s175
        %s177 = sand.u32 %s98, 1
        %s178 = smul.addr %s177, 8
        %s179 = scalar_lea.vmem [#allocation2], %s178
        %s180 = smul.u32 8, %s17
        %p181 = scmp.lt.s32.totalorder %s180, 15
        %s182 = scalar_select %p181, %s180, 15
        %s183 = smul.addr %s182, 16
        %s184 = smul.addr %s183, 8
        %s185 = scalar_lea.vmem %s0, %s184
        %s186 = smul.u32 8, %s17
        %p187 = scmp.lt.s32.totalorder %s17, 1
        %s188 = scalar_select %p187, %s17, 1
        %s189 = smul.addr %s188, 8
        %s190 = scalar_lea.vmem %s1, %s189
        %v191 = vld [vmem:[%s185] sm:$0xff]
        %v192 = vld [vmem:[%s185 + $0x8] sm:$0xff]
        %v193 = vld [vmem:[%s185 + $0x10] sm:$0xff]
        %v194 = vld [vmem:[%s185 + $0x18] sm:$0xff]
        %v195 = vld [vmem:[%s185 + $0x20] sm:$0xff]
        %v196 = vld [vmem:[%s185 + $0x28] sm:$0xff]
        %v197 = vld [vmem:[%s185 + $0x30] sm:$0xff]
        %v198 = vld [vmem:[%s185 + $0x38] sm:$0xff]
        %v199 = vld [vmem:[%s185 + $0x40] sm:$0xff]
        %v200 = vld [vmem:[%s185 + $0x48] sm:$0xff]
        %v201 = vld [vmem:[%s185 + $0x50] sm:$0xff]
        %v202 = vld [vmem:[%s185 + $0x58] sm:$0xff]
        %v203 = vld [vmem:[%s185 + $0x60] sm:$0xff]
        %v204 = vld [vmem:[%s185 + $0x68] sm:$0xff]
        %v205 = vld [vmem:[%s185 + $0x70] sm:$0xff]
        %v206 = vld [vmem:[%s185 + $0x78] sm:$0xff]
        %v207 = vld [vmem:[%s185 + $0x80] sm:$0xff]
        %v208 = vld [vmem:[%s185 + $0x88] sm:$0xff]
        %v209 = vld [vmem:[%s185 + $0x90] sm:$0xff]
        %v210 = vld [vmem:[%s185 + $0x98] sm:$0xff]
        %v211 = vld [vmem:[%s185 + $0xa0] sm:$0xff]
        %v212 = vld [vmem:[%s185 + $0xa8] sm:$0xff]
        %v213 = vld [vmem:[%s185 + $0xb0] sm:$0xff]
        %v214 = vld [vmem:[%s185 + $0xb8] sm:$0xff]
        %v215 = vld [vmem:[%s185 + $0xc0] sm:$0xff]
        %v216 = vld [vmem:[%s185 + $0xc8] sm:$0xff]
        %v217 = vld [vmem:[%s185 + $0xd0] sm:$0xff]
        %v218 = vld [vmem:[%s185 + $0xd8] sm:$0xff]
        %v219 = vld [vmem:[%s185 + $0xe0] sm:$0xff]
        %v220 = vld [vmem:[%s185 + $0xe8] sm:$0xff]
        %v221 = vld [vmem:[%s185 + $0xf0] sm:$0xff]
        %v222 = vld [vmem:[%s185 + $0xf8] sm:$0xff]
        %v223 = vld [vmem:[%s185 + $0x100] sm:$0xff]
        %v224 = vld [vmem:[%s185 + $0x108] sm:$0xff]
        %v225 = vld [vmem:[%s185 + $0x110] sm:$0xff]
        %v226 = vld [vmem:[%s185 + $0x118] sm:$0xff]
        %v227 = vld [vmem:[%s185 + $0x120] sm:$0xff]
        %v228 = vld [vmem:[%s185 + $0x128] sm:$0xff]
        %v229 = vld [vmem:[%s185 + $0x130] sm:$0xff]
        %v230 = vld [vmem:[%s185 + $0x138] sm:$0xff]
        %v231 = vld [vmem:[%s185 + $0x140] sm:$0xff]
        %v232 = vld [vmem:[%s185 + $0x148] sm:$0xff]
        %v233 = vld [vmem:[%s185 + $0x150] sm:$0xff]
        %v234 = vld [vmem:[%s185 + $0x158] sm:$0xff]
        %v235 = vld [vmem:[%s185 + $0x160] sm:$0xff]
        %v236 = vld [vmem:[%s185 + $0x168] sm:$0xff]
        %v237 = vld [vmem:[%s185 + $0x170] sm:$0xff]
        %v238 = vld [vmem:[%s185 + $0x178] sm:$0xff]
        %v239 = vld [vmem:[%s185 + $0x180] sm:$0xff]
        %v240 = vld [vmem:[%s185 + $0x188] sm:$0xff]
        %v241 = vld [vmem:[%s185 + $0x190] sm:$0xff]
        %v242 = vld [vmem:[%s185 + $0x198] sm:$0xff]
        %v243 = vld [vmem:[%s185 + $0x1a0] sm:$0xff]
        %v244 = vld [vmem:[%s185 + $0x1a8] sm:$0xff]
        %v245 = vld [vmem:[%s185 + $0x1b0] sm:$0xff]
        %v246 = vld [vmem:[%s185 + $0x1b8] sm:$0xff]
        %v247 = vld [vmem:[%s185 + $0x1c0] sm:$0xff]
        %v248 = vld [vmem:[%s185 + $0x1c8] sm:$0xff]
        %v249 = vld [vmem:[%s185 + $0x1d0] sm:$0xff]
        %v250 = vld [vmem:[%s185 + $0x1d8] sm:$0xff]
        %v251 = vld [vmem:[%s185 + $0x1e0] sm:$0xff]
        %v252 = vld [vmem:[%s185 + $0x1e8] sm:$0xff]
        %v253 = vld [vmem:[%s185 + $0x1f0] sm:$0xff]
        %v254 = vld [vmem:[%s185 + $0x1f8] sm:$0xff]
        %v255 = vld [vmem:[%s185 + $0x200] sm:$0xff]
        %v256 = vld [vmem:[%s185 + $0x208] sm:$0xff]
        %v257 = vld [vmem:[%s185 + $0x210] sm:$0xff]
        %v258 = vld [vmem:[%s185 + $0x218] sm:$0xff]
        %v259 = vld [vmem:[%s185 + $0x220] sm:$0xff]
        %v260 = vld [vmem:[%s185 + $0x228] sm:$0xff]
        %v261 = vld [vmem:[%s185 + $0x230] sm:$0xff]
        %v262 = vld [vmem:[%s185 + $0x238] sm:$0xff]
        %v263 = vld [vmem:[%s185 + $0x240] sm:$0xff]
        %v264 = vld [vmem:[%s185 + $0x248] sm:$0xff]
        %v265 = vld [vmem:[%s185 + $0x250] sm:$0xff]
        %v266 = vld [vmem:[%s185 + $0x258] sm:$0xff]
        %v267 = vld [vmem:[%s185 + $0x260] sm:$0xff]
        %v268 = vld [vmem:[%s185 + $0x268] sm:$0xff]
        %v269 = vld [vmem:[%s185 + $0x270] sm:$0xff]
        %v270 = vld [vmem:[%s185 + $0x278] sm:$0xff]
        %v271 = vld [vmem:[%s185 + $0x280] sm:$0xff]
        %v272 = vld [vmem:[%s185 + $0x288] sm:$0xff]
        %v273 = vld [vmem:[%s185 + $0x290] sm:$0xff]
        %v274 = vld [vmem:[%s185 + $0x298] sm:$0xff]
        %v275 = vld [vmem:[%s185 + $0x2a0] sm:$0xff]
        %v276 = vld [vmem:[%s185 + $0x2a8] sm:$0xff]
        %v277 = vld [vmem:[%s185 + $0x2b0] sm:$0xff]
        %v278 = vld [vmem:[%s185 + $0x2b8] sm:$0xff]
        %v279 = vld [vmem:[%s185 + $0x2c0] sm:$0xff]
        %v280 = vld [vmem:[%s185 + $0x2c8] sm:$0xff]
        %v281 = vld [vmem:[%s185 + $0x2d0] sm:$0xff]
        %v282 = vld [vmem:[%s185 + $0x2d8] sm:$0xff]
        %v283 = vld [vmem:[%s185 + $0x2e0] sm:$0xff]
        %v284 = vld [vmem:[%s185 + $0x2e8] sm:$0xff]
        %v285 = vld [vmem:[%s185 + $0x2f0] sm:$0xff]
        %v286 = vld [vmem:[%s185 + $0x2f8] sm:$0xff]
        %v287 = vld [vmem:[%s185 + $0x300] sm:$0xff]
        %v288 = vld [vmem:[%s185 + $0x308] sm:$0xff]
        %v289 = vld [vmem:[%s185 + $0x310] sm:$0xff]
        %v290 = vld [vmem:[%s185 + $0x318] sm:$0xff]
        %v291 = vld [vmem:[%s185 + $0x320] sm:$0xff]
        %v292 = vld [vmem:[%s185 + $0x328] sm:$0xff]
        %v293 = vld [vmem:[%s185 + $0x330] sm:$0xff]
        %v294 = vld [vmem:[%s185 + $0x338] sm:$0xff]
        %v295 = vld [vmem:[%s185 + $0x340] sm:$0xff]
        %v296 = vld [vmem:[%s185 + $0x348] sm:$0xff]
        %v297 = vld [vmem:[%s185 + $0x350] sm:$0xff]
        %v298 = vld [vmem:[%s185 + $0x358] sm:$0xff]
        %v299 = vld [vmem:[%s185 + $0x360] sm:$0xff]
        %v300 = vld [vmem:[%s185 + $0x368] sm:$0xff]
        %v301 = vld [vmem:[%s185 + $0x370] sm:$0xff]
        %v302 = vld [vmem:[%s185 + $0x378] sm:$0xff]
        %v303 = vld [vmem:[%s185 + $0x380] sm:$0xff]
        %v304 = vld [vmem:[%s185 + $0x388] sm:$0xff]
        %v305 = vld [vmem:[%s185 + $0x390] sm:$0xff]
        %v306 = vld [vmem:[%s185 + $0x398] sm:$0xff]
        %v307 = vld [vmem:[%s185 + $0x3a0] sm:$0xff]
        %v308 = vld [vmem:[%s185 + $0x3a8] sm:$0xff]
        %v309 = vld [vmem:[%s185 + $0x3b0] sm:$0xff]
        %v310 = vld [vmem:[%s185 + $0x3b8] sm:$0xff]
        %v311 = vld [vmem:[%s185 + $0x3c0] sm:$0xff]
        %v312 = vld [vmem:[%s185 + $0x3c8] sm:$0xff]
        %v313 = vld [vmem:[%s185 + $0x3d0] sm:$0xff]
        %v314 = vld [vmem:[%s185 + $0x3d8] sm:$0xff]
        %v315 = vld [vmem:[%s185 + $0x3e0] sm:$0xff]
        %v316 = vld [vmem:[%s185 + $0x3e8] sm:$0xff]
        %v317 = vld [vmem:[%s185 + $0x3f0] sm:$0xff]
        %v318 = vld [vmem:[%s185 + $0x3f8] sm:$0xff]
        %v319 = vld [vmem:[%s190] sm:$0xff]
        %v320 = vld [vmem:[%s2] sm:$0x1]
        %v322 = vlaneseq
        %v323 = vshrl.u32 %v322, 7
        %v324 = vsub.s32 0, %v323
        %v325 = vrot.slane %v320, %v324
        %v327 = vmul.f32 %v191, %v325
        %v328 = vmul.f32 %v192, %v325
        %v329 = vmul.f32 %v193, %v325
        %v330 = vmul.f32 %v194, %v325
        %v331 = vmul.f32 %v195, %v325
        %v332 = vmul.f32 %v196, %v325
        %v333 = vmul.f32 %v197, %v325
        %v334 = vmul.f32 %v198, %v325
        %v335 = vmul.f32 %v199, %v325
        %v336 = vmul.f32 %v200, %v325
        %v337 = vmul.f32 %v201, %v325
        %v338 = vmul.f32 %v202, %v325
        %v339 = vmul.f32 %v203, %v325
        %v340 = vmul.f32 %v204, %v325
        %v341 = vmul.f32 %v205, %v325
        %v342 = vmul.f32 %v206, %v325
        %v343 = vmul.f32 %v207, %v325
        %v344 = vmul.f32 %v208, %v325
        %v345 = vmul.f32 %v209, %v325
        %v346 = vmul.f32 %v210, %v325
        %v347 = vmul.f32 %v211, %v325
        %v348 = vmul.f32 %v212, %v325
        %v349 = vmul.f32 %v213, %v325
        %v350 = vmul.f32 %v214, %v325
        %v351 = vmul.f32 %v215, %v325
        %v352 = vmul.f32 %v216, %v325
        %v353 = vmul.f32 %v217, %v325
        %v354 = vmul.f32 %v218, %v325
        %v355 = vmul.f32 %v219, %v325
        %v356 = vmul.f32 %v220, %v325
        %v357 = vmul.f32 %v221, %v325
        %v358 = vmul.f32 %v222, %v325
        %v359 = vmul.f32 %v223, %v325
        %v360 = vmul.f32 %v224, %v325
        %v361 = vmul.f32 %v225, %v325
        %v362 = vmul.f32 %v226, %v325
        %v363 = vmul.f32 %v227, %v325
        %v364 = vmul.f32 %v228, %v325
        %v365 = vmul.f32 %v229, %v325
        %v366 = vmul.f32 %v230, %v325
        %v367 = vmul.f32 %v231, %v325
        %v368 = vmul.f32 %v232, %v325
        %v369 = vmul.f32 %v233, %v325
        %v370 = vmul.f32 %v234, %v325
        %v371 = vmul.f32 %v235, %v325
        %v372 = vmul.f32 %v236, %v325
        %v373 = vmul.f32 %v237, %v325
        %v374 = vmul.f32 %v238, %v325
        %v375 = vmul.f32 %v239, %v325
        %v376 = vmul.f32 %v240, %v325
        %v377 = vmul.f32 %v241, %v325
        %v378 = vmul.f32 %v242, %v325
        %v379 = vmul.f32 %v243, %v325
        %v380 = vmul.f32 %v244, %v325
        %v381 = vmul.f32 %v245, %v325
        %v382 = vmul.f32 %v246, %v325
        %v383 = vmul.f32 %v247, %v325
        %v384 = vmul.f32 %v248, %v325
        %v385 = vmul.f32 %v249, %v325
        %v386 = vmul.f32 %v250, %v325
        %v387 = vmul.f32 %v251, %v325
        %v388 = vmul.f32 %v252, %v325
        %v389 = vmul.f32 %v253, %v325
        %v390 = vmul.f32 %v254, %v325
        %v391 = vmul.f32 %v255, %v325
        %v392 = vmul.f32 %v256, %v325
        %v393 = vmul.f32 %v257, %v325
        %v394 = vmul.f32 %v258, %v325
        %v395 = vmul.f32 %v259, %v325
        %v396 = vmul.f32 %v260, %v325
        %v397 = vmul.f32 %v261, %v325
        %v398 = vmul.f32 %v262, %v325
        %v399 = vmul.f32 %v263, %v325
        %v400 = vmul.f32 %v264, %v325
        %v401 = vmul.f32 %v265, %v325
        %v402 = vmul.f32 %v266, %v325
        %v403 = vmul.f32 %v267, %v325
        %v404 = vmul.f32 %v268, %v325
        %v405 = vmul.f32 %v269, %v325
        %v406 = vmul.f32 %v270, %v325
        %v407 = vmul.f32 %v271, %v325
        %v408 = vmul.f32 %v272, %v325
        %v409 = vmul.f32 %v273, %v325
        %v410 = vmul.f32 %v274, %v325
        %v411 = vmul.f32 %v275, %v325
        %v412 = vmul.f32 %v276, %v325
        %v413 = vmul.f32 %v277, %v325
        %v414 = vmul.f32 %v278, %v325
        %v415 = vmul.f32 %v279, %v325
        %v416 = vmul.f32 %v280, %v325
        %v417 = vmul.f32 %v281, %v325
        %v418 = vmul.f32 %v282, %v325
        %v419 = vmul.f32 %v283, %v325
        %v420 = vmul.f32 %v284, %v325
        %v421 = vmul.f32 %v285, %v325
        %v422 = vmul.f32 %v286, %v325
        %v423 = vmul.f32 %v287, %v325
        %v424 = vmul.f32 %v288, %v325
        %v425 = vmul.f32 %v289, %v325
        %v426 = vmul.f32 %v290, %v325
        %v427 = vmul.f32 %v291, %v325
        %v428 = vmul.f32 %v292, %v325
        %v429 = vmul.f32 %v293, %v325
        %v430 = vmul.f32 %v294, %v325
        %v431 = vmul.f32 %v295, %v325
        %v432 = vmul.f32 %v296, %v325
        %v433 = vmul.f32 %v297, %v325
        %v434 = vmul.f32 %v298, %v325
        %v435 = vmul.f32 %v299, %v325
        %v436 = vmul.f32 %v300, %v325
        %v437 = vmul.f32 %v301, %v325
        %v438 = vmul.f32 %v302, %v325
        %v439 = vmul.f32 %v303, %v325
        %v440 = vmul.f32 %v304, %v325
        %v441 = vmul.f32 %v305, %v325
        %v442 = vmul.f32 %v306, %v325
        %v443 = vmul.f32 %v307, %v325
        %v444 = vmul.f32 %v308, %v325
        %v445 = vmul.f32 %v309, %v325
        %v446 = vmul.f32 %v310, %v325
        %v447 = vmul.f32 %v311, %v325
        %v448 = vmul.f32 %v312, %v325
        %v449 = vmul.f32 %v313, %v325
        %v450 = vmul.f32 %v314, %v325
        %v451 = vmul.f32 %v315, %v325
        %v452 = vmul.f32 %v316, %v325
        %v453 = vmul.f32 %v317, %v325
        %v454 = vmul.f32 %v318, %v325
        %vm455 = vcmask 818176
        %v456 = vsel %vm455, %v327, 0.0
        %457 = vadd.xlane.f32.xlu0 %v456
        %v458 = vpop.xlane.xlu0 %457
        %v459 = vsel %vm455, %v328, 0.0
        %460 = vadd.xlane.f32.xlu0 %v459
        %v461 = vpop.xlane.xlu0 %460
        %v462 = vsel %vm455, %v329, 0.0
        %463 = vadd.xlane.f32.xlu0 %v462
        %v464 = vpop.xlane.xlu0 %463
        %v465 = vsel %vm455, %v330, 0.0
        %466 = vadd.xlane.f32.xlu0 %v465
        %v467 = vpop.xlane.xlu0 %466
        %v468 = vsel %vm455, %v331, 0.0
        %469 = vadd.xlane.f32.xlu0 %v468
        %v470 = vpop.xlane.xlu0 %469
        %v471 = vsel %vm455, %v332, 0.0
        %472 = vadd.xlane.f32.xlu0 %v471
        %v473 = vpop.xlane.xlu0 %472
        %v474 = vsel %vm455, %v333, 0.0
        %475 = vadd.xlane.f32.xlu0 %v474
        %v476 = vpop.xlane.xlu0 %475
        %v477 = vsel %vm455, %v334, 0.0
        %478 = vadd.xlane.f32.xlu0 %v477
        %v479 = vpop.xlane.xlu0 %478
        %v480 = vsel %vm455, %v335, 0.0
        %481 = vadd.xlane.f32.xlu0 %v480
        %v482 = vpop.xlane.xlu0 %481
        %v483 = vsel %vm455, %v336, 0.0
        %484 = vadd.xlane.f32.xlu0 %v483
        %v485 = vpop.xlane.xlu0 %484
        %v486 = vsel %vm455, %v337, 0.0
        %487 = vadd.xlane.f32.xlu0 %v486
        %v488 = vpop.xlane.xlu0 %487
        %v489 = vsel %vm455, %v338, 0.0
        %490 = vadd.xlane.f32.xlu0 %v489
        %v491 = vpop.xlane.xlu0 %490
        %v492 = vsel %vm455, %v339, 0.0
        %493 = vadd.xlane.f32.xlu0 %v492
        %v494 = vpop.xlane.xlu0 %493
        %v495 = vsel %vm455, %v340, 0.0
        %496 = vadd.xlane.f32.xlu0 %v495
        %v497 = vpop.xlane.xlu0 %496
        %v498 = vsel %vm455, %v341, 0.0
        %499 = vadd.xlane.f32.xlu0 %v498
        %v500 = vpop.xlane.xlu0 %499
        %v501 = vsel %vm455, %v342, 0.0
        %502 = vadd.xlane.f32.xlu0 %v501
        %v503 = vpop.xlane.xlu0 %502
        %v504 = vsel %vm455, %v343, 0.0
        %505 = vadd.xlane.f32.xlu0 %v504
        %v506 = vpop.xlane.xlu0 %505
        %v507 = vsel %vm455, %v344, 0.0
        %508 = vadd.xlane.f32.xlu0 %v507
        %v509 = vpop.xlane.xlu0 %508
        %v510 = vsel %vm455, %v345, 0.0
        %511 = vadd.xlane.f32.xlu0 %v510
        %v512 = vpop.xlane.xlu0 %511
        %v513 = vsel %vm455, %v346, 0.0
        %514 = vadd.xlane.f32.xlu0 %v513
        %v515 = vpop.xlane.xlu0 %514
        %v516 = vsel %vm455, %v347, 0.0
        %517 = vadd.xlane.f32.xlu0 %v516
        %v518 = vpop.xlane.xlu0 %517
        %v519 = vsel %vm455, %v348, 0.0
        %520 = vadd.xlane.f32.xlu0 %v519
        %v521 = vpop.xlane.xlu0 %520
        %v522 = vsel %vm455, %v349, 0.0
        %523 = vadd.xlane.f32.xlu0 %v522
        %v524 = vpop.xlane.xlu0 %523
        %v525 = vsel %vm455, %v350, 0.0
        %526 = vadd.xlane.f32.xlu0 %v525
        %v527 = vpop.xlane.xlu0 %526
        %v528 = vsel %vm455, %v351, 0.0
        %529 = vadd.xlane.f32.xlu0 %v528
        %v530 = vpop.xlane.xlu0 %529
        %v531 = vsel %vm455, %v352, 0.0
        %532 = vadd.xlane.f32.xlu0 %v531
        %v533 = vpop.xlane.xlu0 %532
        %v534 = vsel %vm455, %v353, 0.0
        %535 = vadd.xlane.f32.xlu0 %v534
        %v536 = vpop.xlane.xlu0 %535
        %v537 = vsel %vm455, %v354, 0.0
        %538 = vadd.xlane.f32.xlu0 %v537
        %v539 = vpop.xlane.xlu0 %538
        %v540 = vsel %vm455, %v355, 0.0
        %541 = vadd.xlane.f32.xlu0 %v540
        %v542 = vpop.xlane.xlu0 %541
        %v543 = vsel %vm455, %v356, 0.0
        %544 = vadd.xlane.f32.xlu0 %v543
        %v545 = vpop.xlane.xlu0 %544
        %v546 = vsel %vm455, %v357, 0.0
        %547 = vadd.xlane.f32.xlu0 %v546
        %v548 = vpop.xlane.xlu0 %547
        %v549 = vsel %vm455, %v358, 0.0
        %550 = vadd.xlane.f32.xlu0 %v549
        %v551 = vpop.xlane.xlu0 %550
        %v552 = vsel %vm455, %v359, 0.0
        %553 = vadd.xlane.f32.xlu0 %v552
        %v554 = vpop.xlane.xlu0 %553
        %v555 = vsel %vm455, %v360, 0.0
        %556 = vadd.xlane.f32.xlu0 %v555
        %v557 = vpop.xlane.xlu0 %556
        %v558 = vsel %vm455, %v361, 0.0
        %559 = vadd.xlane.f32.xlu0 %v558
        %v560 = vpop.xlane.xlu0 %559
        %v561 = vsel %vm455, %v362, 0.0
        %562 = vadd.xlane.f32.xlu0 %v561
        %v563 = vpop.xlane.xlu0 %562
        %v564 = vsel %vm455, %v363, 0.0
        %565 = vadd.xlane.f32.xlu0 %v564
        %v566 = vpop.xlane.xlu0 %565
        %v567 = vsel %vm455, %v364, 0.0
        %568 = vadd.xlane.f32.xlu0 %v567
        %v569 = vpop.xlane.xlu0 %568
        %v570 = vsel %vm455, %v365, 0.0
        %571 = vadd.xlane.f32.xlu0 %v570
        %v572 = vpop.xlane.xlu0 %571
        %v573 = vsel %vm455, %v366, 0.0
        %574 = vadd.xlane.f32.xlu0 %v573
        %v575 = vpop.xlane.xlu0 %574
        %v576 = vsel %vm455, %v367, 0.0
        %577 = vadd.xlane.f32.xlu0 %v576
        %v578 = vpop.xlane.xlu0 %577
        %v579 = vsel %vm455, %v368, 0.0
        %580 = vadd.xlane.f32.xlu0 %v579
        %v581 = vpop.xlane.xlu0 %580
        %v582 = vsel %vm455, %v369, 0.0
        %583 = vadd.xlane.f32.xlu0 %v582
        %v584 = vpop.xlane.xlu0 %583
        %v585 = vsel %vm455, %v370, 0.0
        %586 = vadd.xlane.f32.xlu0 %v585
        %v587 = vpop.xlane.xlu0 %586
        %v588 = vsel %vm455, %v371, 0.0
        %589 = vadd.xlane.f32.xlu0 %v588
        %v590 = vpop.xlane.xlu0 %589
        %v591 = vsel %vm455, %v372, 0.0
        %592 = vadd.xlane.f32.xlu0 %v591
        %v593 = vpop.xlane.xlu0 %592
        %v594 = vsel %vm455, %v373, 0.0
        %595 = vadd.xlane.f32.xlu0 %v594
        %v596 = vpop.xlane.xlu0 %595
        %v597 = vsel %vm455, %v374, 0.0
        %598 = vadd.xlane.f32.xlu0 %v597
        %v599 = vpop.xlane.xlu0 %598
        %v600 = vsel %vm455, %v375, 0.0
        %601 = vadd.xlane.f32.xlu0 %v600
        %v602 = vpop.xlane.xlu0 %601
        %v603 = vsel %vm455, %v376, 0.0
        %604 = vadd.xlane.f32.xlu0 %v603
        %v605 = vpop.xlane.xlu0 %604
        %v606 = vsel %vm455, %v377, 0.0
        %607 = vadd.xlane.f32.xlu0 %v606
        %v608 = vpop.xlane.xlu0 %607
        %v609 = vsel %vm455, %v378, 0.0
        %610 = vadd.xlane.f32.xlu0 %v609
        %v611 = vpop.xlane.xlu0 %610
        %v612 = vsel %vm455, %v379, 0.0
        %613 = vadd.xlane.f32.xlu0 %v612
        %v614 = vpop.xlane.xlu0 %613
        %v615 = vsel %vm455, %v380, 0.0
        %616 = vadd.xlane.f32.xlu0 %v615
        %v617 = vpop.xlane.xlu0 %616
        %v618 = vsel %vm455, %v381, 0.0
        %619 = vadd.xlane.f32.xlu0 %v618
        %v620 = vpop.xlane.xlu0 %619
        %v621 = vsel %vm455, %v382, 0.0
        %622 = vadd.xlane.f32.xlu0 %v621
        %v623 = vpop.xlane.xlu0 %622
        %v624 = vsel %vm455, %v383, 0.0
        %625 = vadd.xlane.f32.xlu0 %v624
        %v626 = vpop.xlane.xlu0 %625
        %v627 = vsel %vm455, %v384, 0.0
        %628 = vadd.xlane.f32.xlu0 %v627
        %v629 = vpop.xlane.xlu0 %628
        %v630 = vsel %vm455, %v385, 0.0
        %631 = vadd.xlane.f32.xlu0 %v630
        %v632 = vpop.xlane.xlu0 %631
        %v633 = vsel %vm455, %v386, 0.0
        %634 = vadd.xlane.f32.xlu0 %v633
        %v635 = vpop.xlane.xlu0 %634
        %v636 = vsel %vm455, %v387, 0.0
        %637 = vadd.xlane.f32.xlu0 %v636
        %v638 = vpop.xlane.xlu0 %637
        %v639 = vsel %vm455, %v388, 0.0
        %640 = vadd.xlane.f32.xlu0 %v639
        %v641 = vpop.xlane.xlu0 %640
        %v642 = vsel %vm455, %v389, 0.0
        %643 = vadd.xlane.f32.xlu0 %v642
        %v644 = vpop.xlane.xlu0 %643
        %v645 = vsel %vm455, %v390, 0.0
        %646 = vadd.xlane.f32.xlu0 %v645
        %v647 = vpop.xlane.xlu0 %646
        %v648 = vsel %vm455, %v391, 0.0
        %649 = vadd.xlane.f32.xlu0 %v648
        %v650 = vpop.xlane.xlu0 %649
        %v651 = vsel %vm455, %v392, 0.0
        %652 = vadd.xlane.f32.xlu0 %v651
        %v653 = vpop.xlane.xlu0 %652
        %v654 = vsel %vm455, %v393, 0.0
        %655 = vadd.xlane.f32.xlu0 %v654
        %v656 = vpop.xlane.xlu0 %655
        %v657 = vsel %vm455, %v394, 0.0
        %658 = vadd.xlane.f32.xlu0 %v657
        %v659 = vpop.xlane.xlu0 %658
        %v660 = vsel %vm455, %v395, 0.0
        %661 = vadd.xlane.f32.xlu0 %v660
        %v662 = vpop.xlane.xlu0 %661
        %v663 = vsel %vm455, %v396, 0.0
        %664 = vadd.xlane.f32.xlu0 %v663
        %v665 = vpop.xlane.xlu0 %664
        %v666 = vsel %vm455, %v397, 0.0
        %667 = vadd.xlane.f32.xlu0 %v666
        %v668 = vpop.xlane.xlu0 %667
        %v669 = vsel %vm455, %v398, 0.0
        %670 = vadd.xlane.f32.xlu0 %v669
        %v671 = vpop.xlane.xlu0 %670
        %v672 = vsel %vm455, %v399, 0.0
        %673 = vadd.xlane.f32.xlu0 %v672
        %v674 = vpop.xlane.xlu0 %673
        %v675 = vsel %vm455, %v400, 0.0
        %676 = vadd.xlane.f32.xlu0 %v675
        %v677 = vpop.xlane.xlu0 %676
        %v678 = vsel %vm455, %v401, 0.0
        %679 = vadd.xlane.f32.xlu0 %v678
        %v680 = vpop.xlane.xlu0 %679
        %v681 = vsel %vm455, %v402, 0.0
        %682 = vadd.xlane.f32.xlu0 %v681
        %v683 = vpop.xlane.xlu0 %682
        %v684 = vsel %vm455, %v403, 0.0
        %685 = vadd.xlane.f32.xlu0 %v684
        %v686 = vpop.xlane.xlu0 %685
        %v687 = vsel %vm455, %v404, 0.0
        %688 = vadd.xlane.f32.xlu0 %v687
        %v689 = vpop.xlane.xlu0 %688
        %v690 = vsel %vm455, %v405, 0.0
        %691 = vadd.xlane.f32.xlu0 %v690
        %v692 = vpop.xlane.xlu0 %691
        %v693 = vsel %vm455, %v406, 0.0
        %694 = vadd.xlane.f32.xlu0 %v693
        %v695 = vpop.xlane.xlu0 %694
        %v696 = vsel %vm455, %v407, 0.0
        %697 = vadd.xlane.f32.xlu0 %v696
        %v698 = vpop.xlane.xlu0 %697
        %v699 = vsel %vm455, %v408, 0.0
        %700 = vadd.xlane.f32.xlu0 %v699
        %v701 = vpop.xlane.xlu0 %700
        %v702 = vsel %vm455, %v409, 0.0
        %703 = vadd.xlane.f32.xlu0 %v702
        %v704 = vpop.xlane.xlu0 %703
        %v705 = vsel %vm455, %v410, 0.0
        %706 = vadd.xlane.f32.xlu0 %v705
        %v707 = vpop.xlane.xlu0 %706
        %v708 = vsel %vm455, %v411, 0.0
        %709 = vadd.xlane.f32.xlu0 %v708
        %v710 = vpop.xlane.xlu0 %709
        %v711 = vsel %vm455, %v412, 0.0
        %712 = vadd.xlane.f32.xlu0 %v711
        %v713 = vpop.xlane.xlu0 %712
        %v714 = vsel %vm455, %v413, 0.0
        %715 = vadd.xlane.f32.xlu0 %v714
        %v716 = vpop.xlane.xlu0 %715
        %v717 = vsel %vm455, %v414, 0.0
        %718 = vadd.xlane.f32.xlu0 %v717
        %v719 = vpop.xlane.xlu0 %718
        %v720 = vsel %vm455, %v415, 0.0
        %721 = vadd.xlane.f32.xlu0 %v720
        %v722 = vpop.xlane.xlu0 %721
        %v723 = vsel %vm455, %v416, 0.0
        %724 = vadd.xlane.f32.xlu0 %v723
        %v725 = vpop.xlane.xlu0 %724
        %v726 = vsel %vm455, %v417, 0.0
        %727 = vadd.xlane.f32.xlu0 %v726
        %v728 = vpop.xlane.xlu0 %727
        %v729 = vsel %vm455, %v418, 0.0
        %730 = vadd.xlane.f32.xlu0 %v729
        %v731 = vpop.xlane.xlu0 %730
        %v732 = vsel %vm455, %v419, 0.0
        %733 = vadd.xlane.f32.xlu0 %v732
        %v734 = vpop.xlane.xlu0 %733
        %v735 = vsel %vm455, %v420, 0.0
        %736 = vadd.xlane.f32.xlu0 %v735
        %v737 = vpop.xlane.xlu0 %736
        %v738 = vsel %vm455, %v421, 0.0
        %739 = vadd.xlane.f32.xlu0 %v738
        %v740 = vpop.xlane.xlu0 %739
        %v741 = vsel %vm455, %v422, 0.0
        %742 = vadd.xlane.f32.xlu0 %v741
        %v743 = vpop.xlane.xlu0 %742
        %v744 = vsel %vm455, %v423, 0.0
        %745 = vadd.xlane.f32.xlu0 %v744
        %v746 = vpop.xlane.xlu0 %745
        %v747 = vsel %vm455, %v424, 0.0
        %748 = vadd.xlane.f32.xlu0 %v747
        %v749 = vpop.xlane.xlu0 %748
        %v750 = vsel %vm455, %v425, 0.0
        %751 = vadd.xlane.f32.xlu0 %v750
        %v752 = vpop.xlane.xlu0 %751
        %v753 = vsel %vm455, %v426, 0.0
        %754 = vadd.xlane.f32.xlu0 %v753
        %v755 = vpop.xlane.xlu0 %754
        %v756 = vsel %vm455, %v427, 0.0
        %757 = vadd.xlane.f32.xlu0 %v756
        %v758 = vpop.xlane.xlu0 %757
        %v759 = vsel %vm455, %v428, 0.0
        %760 = vadd.xlane.f32.xlu0 %v759
        %v761 = vpop.xlane.xlu0 %760
        %v762 = vsel %vm455, %v429, 0.0
        %763 = vadd.xlane.f32.xlu0 %v762
        %v764 = vpop.xlane.xlu0 %763
        %v765 = vsel %vm455, %v430, 0.0
        %766 = vadd.xlane.f32.xlu0 %v765
        %v767 = vpop.xlane.xlu0 %766
        %v768 = vsel %vm455, %v431, 0.0
        %769 = vadd.xlane.f32.xlu0 %v768
        %v770 = vpop.xlane.xlu0 %769
        %v771 = vsel %vm455, %v432, 0.0
        %772 = vadd.xlane.f32.xlu0 %v771
        %v773 = vpop.xlane.xlu0 %772
        %v774 = vsel %vm455, %v433, 0.0
        %775 = vadd.xlane.f32.xlu0 %v774
        %v776 = vpop.xlane.xlu0 %775
        %v777 = vsel %vm455, %v434, 0.0
        %778 = vadd.xlane.f32.xlu0 %v777
        %v779 = vpop.xlane.xlu0 %778
        %v780 = vsel %vm455, %v435, 0.0
        %781 = vadd.xlane.f32.xlu0 %v780
        %v782 = vpop.xlane.xlu0 %781
        %v783 = vsel %vm455, %v436, 0.0
        %784 = vadd.xlane.f32.xlu0 %v783
        %v785 = vpop.xlane.xlu0 %784
        %v786 = vsel %vm455, %v437, 0.0
        %787 = vadd.xlane.f32.xlu0 %v786
        %v788 = vpop.xlane.xlu0 %787
        %v789 = vsel %vm455, %v438, 0.0
        %790 = vadd.xlane.f32.xlu0 %v789
        %v791 = vpop.xlane.xlu0 %790
        %v792 = vsel %vm455, %v439, 0.0
        %793 = vadd.xlane.f32.xlu0 %v792
        %v794 = vpop.xlane.xlu0 %793
        %v795 = vsel %vm455, %v440, 0.0
        %796 = vadd.xlane.f32.xlu0 %v795
        %v797 = vpop.xlane.xlu0 %796
        %v798 = vsel %vm455, %v441, 0.0
        %799 = vadd.xlane.f32.xlu0 %v798
        %v800 = vpop.xlane.xlu0 %799
        %v801 = vsel %vm455, %v442, 0.0
        %802 = vadd.xlane.f32.xlu0 %v801
        %v803 = vpop.xlane.xlu0 %802
        %v804 = vsel %vm455, %v443, 0.0
        %805 = vadd.xlane.f32.xlu0 %v804
        %v806 = vpop.xlane.xlu0 %805
        %v807 = vsel %vm455, %v444, 0.0
        %808 = vadd.xlane.f32.xlu0 %v807
        %v809 = vpop.xlane.xlu0 %808
        %v810 = vsel %vm455, %v445, 0.0
        %811 = vadd.xlane.f32.xlu0 %v810
        %v812 = vpop.xlane.xlu0 %811
        %v813 = vsel %vm455, %v446, 0.0
        %814 = vadd.xlane.f32.xlu0 %v813
        %v815 = vpop.xlane.xlu0 %814
        %v816 = vsel %vm455, %v447, 0.0
        %817 = vadd.xlane.f32.xlu0 %v816
        %v818 = vpop.xlane.xlu0 %817
        %v819 = vsel %vm455, %v448, 0.0
        %820 = vadd.xlane.f32.xlu0 %v819
        %v821 = vpop.xlane.xlu0 %820
        %v822 = vsel %vm455, %v449, 0.0
        %823 = vadd.xlane.f32.xlu0 %v822
        %v824 = vpop.xlane.xlu0 %823
        %v825 = vsel %vm455, %v450, 0.0
        %826 = vadd.xlane.f32.xlu0 %v825
        %v827 = vpop.xlane.xlu0 %826
        %v828 = vsel %vm455, %v451, 0.0
        %829 = vadd.xlane.f32.xlu0 %v828
        %v830 = vpop.xlane.xlu0 %829
        %v831 = vsel %vm455, %v452, 0.0
        %832 = vadd.xlane.f32.xlu0 %v831
        %v833 = vpop.xlane.xlu0 %832
        %v834 = vsel %vm455, %v453, 0.0
        %835 = vadd.xlane.f32.xlu0 %v834
        %v836 = vpop.xlane.xlu0 %835
        %v837 = vsel %vm455, %v454, 0.0
        %838 = vadd.xlane.f32.xlu0 %v837
        %v839 = vpop.xlane.xlu0 %838
        %v840 = vmul.f32 %v319, 1e+30
        %v842 = vlaneseq
        %v843 = vshrl.u32 %v842, 7
        %v844 = vsub.s32 0, %v843
        %v845 = vrot.slane %v840, %v844
        %847 = vbcast.lane.b32.xlu0 %v845, 256
        %v848 = vpop.permute.xlu0 %847
        %s850 = sor.u32 256, 8
        %851 = vbcast.lane.b32.xlu0 %v845, %s850
        %v852 = vpop.permute.xlu0 %851
        %s854 = sor.u32 256, 16
        %855 = vbcast.lane.b32.xlu0 %v845, %s854
        %v856 = vpop.permute.xlu0 %855
        %s858 = sor.u32 256, 24
        %859 = vbcast.lane.b32.xlu0 %v845, %s858
        %v860 = vpop.permute.xlu0 %859
        %s862 = sor.u32 256, 32
        %863 = vbcast.lane.b32.xlu0 %v845, %s862
        %v864 = vpop.permute.xlu0 %863
        %s866 = sor.u32 256, 40
        %867 = vbcast.lane.b32.xlu0 %v845, %s866
        %v868 = vpop.permute.xlu0 %867
        %s870 = sor.u32 256, 48
        %871 = vbcast.lane.b32.xlu0 %v845, %s870
        %v872 = vpop.permute.xlu0 %871
        %s874 = sor.u32 256, 56
        %875 = vbcast.lane.b32.xlu0 %v845, %s874
        %v876 = vpop.permute.xlu0 %875
        %s878 = sor.u32 256, 64
        %879 = vbcast.lane.b32.xlu0 %v845, %s878
        %v880 = vpop.permute.xlu0 %879
        %s882 = sor.u32 256, 72
        %883 = vbcast.lane.b32.xlu0 %v845, %s882
        %v884 = vpop.permute.xlu0 %883
        %s886 = sor.u32 256, 80
        %887 = vbcast.lane.b32.xlu0 %v845, %s886
        %v888 = vpop.permute.xlu0 %887
        %s890 = sor.u32 256, 88
        %891 = vbcast.lane.b32.xlu0 %v845, %s890
        %v892 = vpop.permute.xlu0 %891
        %s894 = sor.u32 256, 96
        %895 = vbcast.lane.b32.xlu0 %v845, %s894
        %v896 = vpop.permute.xlu0 %895
        %s898 = sor.u32 256, 104
        %899 = vbcast.lane.b32.xlu0 %v845, %s898
        %v900 = vpop.permute.xlu0 %899
        %s902 = sor.u32 256, 112
        %903 = vbcast.lane.b32.xlu0 %v845, %s902
        %v904 = vpop.permute.xlu0 %903
        %s906 = sor.u32 256, 120
        %907 = vbcast.lane.b32.xlu0 %v845, %s906
        %v908 = vpop.permute.xlu0 %907
        %v909 = vlaneseq
        %v910 = vshrl.u32 %v909, 7
        %v911 = vsub.s32 1, %v910
        %v912 = vrot.slane %v840, %v911
        %914 = vbcast.lane.b32.xlu0 %v912, 256
        %v915 = vpop.permute.xlu0 %914
        %s917 = sor.u32 256, 8
        %918 = vbcast.lane.b32.xlu0 %v912, %s917
        %v919 = vpop.permute.xlu0 %918
        %s921 = sor.u32 256, 16
        %922 = vbcast.lane.b32.xlu0 %v912, %s921
        %v923 = vpop.permute.xlu0 %922
        %s925 = sor.u32 256, 24
        %926 = vbcast.lane.b32.xlu0 %v912, %s925
        %v927 = vpop.permute.xlu0 %926
        %s929 = sor.u32 256, 32
        %930 = vbcast.lane.b32.xlu0 %v912, %s929
        %v931 = vpop.permute.xlu0 %930
        %s933 = sor.u32 256, 40
        %934 = vbcast.lane.b32.xlu0 %v912, %s933
        %v935 = vpop.permute.xlu0 %934
        %s937 = sor.u32 256, 48
        %938 = vbcast.lane.b32.xlu0 %v912, %s937
        %v939 = vpop.permute.xlu0 %938
        %s941 = sor.u32 256, 56
        %942 = vbcast.lane.b32.xlu0 %v912, %s941
        %v943 = vpop.permute.xlu0 %942
        %s945 = sor.u32 256, 64
        %946 = vbcast.lane.b32.xlu0 %v912, %s945
        %v947 = vpop.permute.xlu0 %946
        %s949 = sor.u32 256, 72
        %950 = vbcast.lane.b32.xlu0 %v912, %s949
        %v951 = vpop.permute.xlu0 %950
        %s953 = sor.u32 256, 80
        %954 = vbcast.lane.b32.xlu0 %v912, %s953
        %v955 = vpop.permute.xlu0 %954
        %s957 = sor.u32 256, 88
        %958 = vbcast.lane.b32.xlu0 %v912, %s957
        %v959 = vpop.permute.xlu0 %958
        %s961 = sor.u32 256, 96
        %962 = vbcast.lane.b32.xlu0 %v912, %s961
        %v963 = vpop.permute.xlu0 %962
        %s965 = sor.u32 256, 104
        %966 = vbcast.lane.b32.xlu0 %v912, %s965
        %v967 = vpop.permute.xlu0 %966
        %s969 = sor.u32 256, 112
        %970 = vbcast.lane.b32.xlu0 %v912, %s969
        %v971 = vpop.permute.xlu0 %970
        %s973 = sor.u32 256, 120
        %974 = vbcast.lane.b32.xlu0 %v912, %s973
        %v975 = vpop.permute.xlu0 %974
        %v976 = vlaneseq
        %v977 = vshrl.u32 %v976, 7
        %v978 = vsub.s32 2, %v977
        %v979 = vrot.slane %v840, %v978
        %981 = vbcast.lane.b32.xlu0 %v979, 256
        %v982 = vpop.permute.xlu0 %981
        %s984 = sor.u32 256, 8
        %985 = vbcast.lane.b32.xlu0 %v979, %s984
        %v986 = vpop.permute.xlu0 %985
        %s988 = sor.u32 256, 16
        %989 = vbcast.lane.b32.xlu0 %v979, %s988
        %v990 = vpop.permute.xlu0 %989
        %s992 = sor.u32 256, 24
        %993 = vbcast.lane.b32.xlu0 %v979, %s992
        %v994 = vpop.permute.xlu0 %993
        %s996 = sor.u32 256, 32
        %997 = vbcast.lane.b32.xlu0 %v979, %s996
        %v998 = vpop.permute.xlu0 %997
        %s1000 = sor.u32 256, 40
        %1001 = vbcast.lane.b32.xlu0 %v979, %s1000
        %v1002 = vpop.permute.xlu0 %1001
        %s1004 = sor.u32 256, 48
        %1005 = vbcast.lane.b32.xlu0 %v979, %s1004
        %v1006 = vpop.permute.xlu0 %1005
        %s1008 = sor.u32 256, 56
        %1009 = vbcast.lane.b32.xlu0 %v979, %s1008
        %v1010 = vpop.permute.xlu0 %1009
        %s1012 = sor.u32 256, 64
        %1013 = vbcast.lane.b32.xlu0 %v979, %s1012
        %v1014 = vpop.permute.xlu0 %1013
        %s1016 = sor.u32 256, 72
        %1017 = vbcast.lane.b32.xlu0 %v979, %s1016
        %v1018 = vpop.permute.xlu0 %1017
        %s1020 = sor.u32 256, 80
        %1021 = vbcast.lane.b32.xlu0 %v979, %s1020
        %v1022 = vpop.permute.xlu0 %1021
        %s1024 = sor.u32 256, 88
        %1025 = vbcast.lane.b32.xlu0 %v979, %s1024
        %v1026 = vpop.permute.xlu0 %1025
        %s1028 = sor.u32 256, 96
        %1029 = vbcast.lane.b32.xlu0 %v979, %s1028
        %v1030 = vpop.permute.xlu0 %1029
        %s1032 = sor.u32 256, 104
        %1033 = vbcast.lane.b32.xlu0 %v979, %s1032
        %v1034 = vpop.permute.xlu0 %1033
        %s1036 = sor.u32 256, 112
        %1037 = vbcast.lane.b32.xlu0 %v979, %s1036
        %v1038 = vpop.permute.xlu0 %1037
        %s1040 = sor.u32 256, 120
        %1041 = vbcast.lane.b32.xlu0 %v979, %s1040
        %v1042 = vpop.permute.xlu0 %1041
        %v1043 = vlaneseq
        %v1044 = vshrl.u32 %v1043, 7
        %v1045 = vsub.s32 3, %v1044
        %v1046 = vrot.slane %v840, %v1045
        %1048 = vbcast.lane.b32.xlu0 %v1046, 256
        %v1049 = vpop.permute.xlu0 %1048
        %s1051 = sor.u32 256, 8
        %1052 = vbcast.lane.b32.xlu0 %v1046, %s1051
        %v1053 = vpop.permute.xlu0 %1052
        %s1055 = sor.u32 256, 16
        %1056 = vbcast.lane.b32.xlu0 %v1046, %s1055
        %v1057 = vpop.permute.xlu0 %1056
        %s1059 = sor.u32 256, 24
        %1060 = vbcast.lane.b32.xlu0 %v1046, %s1059
        %v1061 = vpop.permute.xlu0 %1060
        %s1063 = sor.u32 256, 32
        %1064 = vbcast.lane.b32.xlu0 %v1046, %s1063
        %v1065 = vpop.permute.xlu0 %1064
        %s1067 = sor.u32 256, 40
        %1068 = vbcast.lane.b32.xlu0 %v1046, %s1067
        %v1069 = vpop.permute.xlu0 %1068
        %s1071 = sor.u32 256, 48
        %1072 = vbcast.lane.b32.xlu0 %v1046, %s1071
        %v1073 = vpop.permute.xlu0 %1072
        %s1075 = sor.u32 256, 56
        %1076 = vbcast.lane.b32.xlu0 %v1046, %s1075
        %v1077 = vpop.permute.xlu0 %1076
        %s1079 = sor.u32 256, 64
        %1080 = vbcast.lane.b32.xlu0 %v1046, %s1079
        %v1081 = vpop.permute.xlu0 %1080
        %s1083 = sor.u32 256, 72
        %1084 = vbcast.lane.b32.xlu0 %v1046, %s1083
        %v1085 = vpop.permute.xlu0 %1084
        %s1087 = sor.u32 256, 80
        %1088 = vbcast.lane.b32.xlu0 %v1046, %s1087
        %v1089 = vpop.permute.xlu0 %1088
        %s1091 = sor.u32 256, 88
        %1092 = vbcast.lane.b32.xlu0 %v1046, %s1091
        %v1093 = vpop.permute.xlu0 %1092
        %s1095 = sor.u32 256, 96
        %1096 = vbcast.lane.b32.xlu0 %v1046, %s1095
        %v1097 = vpop.permute.xlu0 %1096
        %s1099 = sor.u32 256, 104
        %1100 = vbcast.lane.b32.xlu0 %v1046, %s1099
        %v1101 = vpop.permute.xlu0 %1100
        %s1103 = sor.u32 256, 112
        %1104 = vbcast.lane.b32.xlu0 %v1046, %s1103
        %v1105 = vpop.permute.xlu0 %1104
        %s1107 = sor.u32 256, 120
        %1108 = vbcast.lane.b32.xlu0 %v1046, %s1107
        %v1109 = vpop.permute.xlu0 %1108
        %v1110 = vlaneseq
        %v1111 = vshrl.u32 %v1110, 7
        %v1112 = vsub.s32 4, %v1111
        %v1113 = vrot.slane %v840, %v1112
        %1115 = vbcast.lane.b32.xlu0 %v1113, 256
        %v1116 = vpop.permute.xlu0 %1115
        %s1118 = sor.u32 256, 8
        %1119 = vbcast.lane.b32.xlu0 %v1113, %s1118
        %v1120 = vpop.permute.xlu0 %1119
        %s1122 = sor.u32 256, 16
        %1123 = vbcast.lane.b32.xlu0 %v1113, %s1122
        %v1124 = vpop.permute.xlu0 %1123
        %s1126 = sor.u32 256, 24
        %1127 = vbcast.lane.b32.xlu0 %v1113, %s1126
        %v1128 = vpop.permute.xlu0 %1127
        %s1130 = sor.u32 256, 32
        %1131 = vbcast.lane.b32.xlu0 %v1113, %s1130
        %v1132 = vpop.permute.xlu0 %1131
        %s1134 = sor.u32 256, 40
        %1135 = vbcast.lane.b32.xlu0 %v1113, %s1134
        %v1136 = vpop.permute.xlu0 %1135
        %s1138 = sor.u32 256, 48
        %1139 = vbcast.lane.b32.xlu0 %v1113, %s1138
        %v1140 = vpop.permute.xlu0 %1139
        %s1142 = sor.u32 256, 56
        %1143 = vbcast.lane.b32.xlu0 %v1113, %s1142
        %v1144 = vpop.permute.xlu0 %1143
        %s1146 = sor.u32 256, 64
        %1147 = vbcast.lane.b32.xlu0 %v1113, %s1146
        %v1148 = vpop.permute.xlu0 %1147
        %s1150 = sor.u32 256, 72
        %1151 = vbcast.lane.b32.xlu0 %v1113, %s1150
        %v1152 = vpop.permute.xlu0 %1151
        %s1154 = sor.u32 256, 80
        %1155 = vbcast.lane.b32.xlu0 %v1113, %s1154
        %v1156 = vpop.permute.xlu0 %1155
        %s1158 = sor.u32 256, 88
        %1159 = vbcast.lane.b32.xlu0 %v1113, %s1158
        %v1160 = vpop.permute.xlu0 %1159
        %s1162 = sor.u32 256, 96
        %1163 = vbcast.lane.b32.xlu0 %v1113, %s1162
        %v1164 = vpop.permute.xlu0 %1163
        %s1166 = sor.u32 256, 104
        %1167 = vbcast.lane.b32.xlu0 %v1113, %s1166
        %v1168 = vpop.permute.xlu0 %1167
        %s1170 = sor.u32 256, 112
        %1171 = vbcast.lane.b32.xlu0 %v1113, %s1170
        %v1172 = vpop.permute.xlu0 %1171
        %s1174 = sor.u32 256, 120
        %1175 = vbcast.lane.b32.xlu0 %v1113, %s1174
        %v1176 = vpop.permute.xlu0 %1175
        %v1177 = vlaneseq
        %v1178 = vshrl.u32 %v1177, 7
        %v1179 = vsub.s32 5, %v1178
        %v1180 = vrot.slane %v840, %v1179
        %1182 = vbcast.lane.b32.xlu0 %v1180, 256
        %v1183 = vpop.permute.xlu0 %1182
        %s1185 = sor.u32 256, 8
        %1186 = vbcast.lane.b32.xlu0 %v1180, %s1185
        %v1187 = vpop.permute.xlu0 %1186
        %s1189 = sor.u32 256, 16
        %1190 = vbcast.lane.b32.xlu0 %v1180, %s1189
        %v1191 = vpop.permute.xlu0 %1190
        %s1193 = sor.u32 256, 24
        %1194 = vbcast.lane.b32.xlu0 %v1180, %s1193
        %v1195 = vpop.permute.xlu0 %1194
        %s1197 = sor.u32 256, 32
        %1198 = vbcast.lane.b32.xlu0 %v1180, %s1197
        %v1199 = vpop.permute.xlu0 %1198
        %s1201 = sor.u32 256, 40
        %1202 = vbcast.lane.b32.xlu0 %v1180, %s1201
        %v1203 = vpop.permute.xlu0 %1202
        %s1205 = sor.u32 256, 48
        %1206 = vbcast.lane.b32.xlu0 %v1180, %s1205
        %v1207 = vpop.permute.xlu0 %1206
        %s1209 = sor.u32 256, 56
        %1210 = vbcast.lane.b32.xlu0 %v1180, %s1209
        %v1211 = vpop.permute.xlu0 %1210
        %s1213 = sor.u32 256, 64
        %1214 = vbcast.lane.b32.xlu0 %v1180, %s1213
        %v1215 = vpop.permute.xlu0 %1214
        %s1217 = sor.u32 256, 72
        %1218 = vbcast.lane.b32.xlu0 %v1180, %s1217
        %v1219 = vpop.permute.xlu0 %1218
        %s1221 = sor.u32 256, 80
        %1222 = vbcast.lane.b32.xlu0 %v1180, %s1221
        %v1223 = vpop.permute.xlu0 %1222
        %s1225 = sor.u32 256, 88
        %1226 = vbcast.lane.b32.xlu0 %v1180, %s1225
        %v1227 = vpop.permute.xlu0 %1226
        %s1229 = sor.u32 256, 96
        %1230 = vbcast.lane.b32.xlu0 %v1180, %s1229
        %v1231 = vpop.permute.xlu0 %1230
        %s1233 = sor.u32 256, 104
        %1234 = vbcast.lane.b32.xlu0 %v1180, %s1233
        %v1235 = vpop.permute.xlu0 %1234
        %s1237 = sor.u32 256, 112
        %1238 = vbcast.lane.b32.xlu0 %v1180, %s1237
        %v1239 = vpop.permute.xlu0 %1238
        %s1241 = sor.u32 256, 120
        %1242 = vbcast.lane.b32.xlu0 %v1180, %s1241
        %v1243 = vpop.permute.xlu0 %1242
        %v1244 = vlaneseq
        %v1245 = vshrl.u32 %v1244, 7
        %v1246 = vsub.s32 6, %v1245
        %v1247 = vrot.slane %v840, %v1246
        %1249 = vbcast.lane.b32.xlu0 %v1247, 256
        %v1250 = vpop.permute.xlu0 %1249
        %s1252 = sor.u32 256, 8
        %1253 = vbcast.lane.b32.xlu0 %v1247, %s1252
        %v1254 = vpop.permute.xlu0 %1253
        %s1256 = sor.u32 256, 16
        %1257 = vbcast.lane.b32.xlu0 %v1247, %s1256
        %v1258 = vpop.permute.xlu0 %1257
        %s1260 = sor.u32 256, 24
        %1261 = vbcast.lane.b32.xlu0 %v1247, %s1260
        %v1262 = vpop.permute.xlu0 %1261
        %s1264 = sor.u32 256, 32
        %1265 = vbcast.lane.b32.xlu0 %v1247, %s1264
        %v1266 = vpop.permute.xlu0 %1265
        %s1268 = sor.u32 256, 40
        %1269 = vbcast.lane.b32.xlu0 %v1247, %s1268
        %v1270 = vpop.permute.xlu0 %1269
        %s1272 = sor.u32 256, 48
        %1273 = vbcast.lane.b32.xlu0 %v1247, %s1272
        %v1274 = vpop.permute.xlu0 %1273
        %s1276 = sor.u32 256, 56
        %1277 = vbcast.lane.b32.xlu0 %v1247, %s1276
        %v1278 = vpop.permute.xlu0 %1277
        %s1280 = sor.u32 256, 64
        %1281 = vbcast.lane.b32.xlu0 %v1247, %s1280
        %v1282 = vpop.permute.xlu0 %1281
        %s1284 = sor.u32 256, 72
        %1285 = vbcast.lane.b32.xlu0 %v1247, %s1284
        %v1286 = vpop.permute.xlu0 %1285
        %s1288 = sor.u32 256, 80
        %1289 = vbcast.lane.b32.xlu0 %v1247, %s1288
        %v1290 = vpop.permute.xlu0 %1289
        %s1292 = sor.u32 256, 88
        %1293 = vbcast.lane.b32.xlu0 %v1247, %s1292
        %v1294 = vpop.permute.xlu0 %1293
        %s1296 = sor.u32 256, 96
        %1297 = vbcast.lane.b32.xlu0 %v1247, %s1296
        %v1298 = vpop.permute.xlu0 %1297
        %s1300 = sor.u32 256, 104
        %1301 = vbcast.lane.b32.xlu0 %v1247, %s1300
        %v1302 = vpop.permute.xlu0 %1301
        %s1304 = sor.u32 256, 112
        %1305 = vbcast.lane.b32.xlu0 %v1247, %s1304
        %v1306 = vpop.permute.xlu0 %1305
        %s1308 = sor.u32 256, 120
        %1309 = vbcast.lane.b32.xlu0 %v1247, %s1308
        %v1310 = vpop.permute.xlu0 %1309
        %v1311 = vlaneseq
        %v1312 = vshrl.u32 %v1311, 7
        %v1313 = vsub.s32 7, %v1312
        %v1314 = vrot.slane %v840, %v1313
        %1316 = vbcast.lane.b32.xlu0 %v1314, 256
        %v1317 = vpop.permute.xlu0 %1316
        %s1319 = sor.u32 256, 8
        %1320 = vbcast.lane.b32.xlu0 %v1314, %s1319
        %v1321 = vpop.permute.xlu0 %1320
        %s1323 = sor.u32 256, 16
        %1324 = vbcast.lane.b32.xlu0 %v1314, %s1323
        %v1325 = vpop.permute.xlu0 %1324
        %s1327 = sor.u32 256, 24
        %1328 = vbcast.lane.b32.xlu0 %v1314, %s1327
        %v1329 = vpop.permute.xlu0 %1328
        %s1331 = sor.u32 256, 32
        %1332 = vbcast.lane.b32.xlu0 %v1314, %s1331
        %v1333 = vpop.permute.xlu0 %1332
        %s1335 = sor.u32 256, 40
        %1336 = vbcast.lane.b32.xlu0 %v1314, %s1335
        %v1337 = vpop.permute.xlu0 %1336
        %s1339 = sor.u32 256, 48
        %1340 = vbcast.lane.b32.xlu0 %v1314, %s1339
        %v1341 = vpop.permute.xlu0 %1340
        %s1343 = sor.u32 256, 56
        %1344 = vbcast.lane.b32.xlu0 %v1314, %s1343
        %v1345 = vpop.permute.xlu0 %1344
        %s1347 = sor.u32 256, 64
        %1348 = vbcast.lane.b32.xlu0 %v1314, %s1347
        %v1349 = vpop.permute.xlu0 %1348
        %s1351 = sor.u32 256, 72
        %1352 = vbcast.lane.b32.xlu0 %v1314, %s1351
        %v1353 = vpop.permute.xlu0 %1352
        %s1355 = sor.u32 256, 80
        %1356 = vbcast.lane.b32.xlu0 %v1314, %s1355
        %v1357 = vpop.permute.xlu0 %1356
        %s1359 = sor.u32 256, 88
        %1360 = vbcast.lane.b32.xlu0 %v1314, %s1359
        %v1361 = vpop.permute.xlu0 %1360
        %s1363 = sor.u32 256, 96
        %1364 = vbcast.lane.b32.xlu0 %v1314, %s1363
        %v1365 = vpop.permute.xlu0 %1364
        %s1367 = sor.u32 256, 104
        %1368 = vbcast.lane.b32.xlu0 %v1314, %s1367
        %v1369 = vpop.permute.xlu0 %1368
        %s1371 = sor.u32 256, 112
        %1372 = vbcast.lane.b32.xlu0 %v1314, %s1371
        %v1373 = vpop.permute.xlu0 %1372
        %s1375 = sor.u32 256, 120
        %1376 = vbcast.lane.b32.xlu0 %v1314, %s1375
        %v1377 = vpop.permute.xlu0 %1376
        %v1506 = vsub.f32 %v458, %v848
        %v1507 = vsub.f32 %v461, %v852
        %v1508 = vsub.f32 %v464, %v856
        %v1509 = vsub.f32 %v467, %v860
        %v1510 = vsub.f32 %v470, %v864
        %v1511 = vsub.f32 %v473, %v868
        %v1512 = vsub.f32 %v476, %v872
        %v1513 = vsub.f32 %v479, %v876
        %v1514 = vsub.f32 %v482, %v880
        %v1515 = vsub.f32 %v485, %v884
        %v1516 = vsub.f32 %v488, %v888
        %v1517 = vsub.f32 %v491, %v892
        %v1518 = vsub.f32 %v494, %v896
        %v1519 = vsub.f32 %v497, %v900
        %v1520 = vsub.f32 %v500, %v904
        %v1521 = vsub.f32 %v503, %v908
        %v1522 = vsub.f32 %v506, %v915
        %v1523 = vsub.f32 %v509, %v919
        %v1524 = vsub.f32 %v512, %v923
        %v1525 = vsub.f32 %v515, %v927
        %v1526 = vsub.f32 %v518, %v931
        %v1527 = vsub.f32 %v521, %v935
        %v1528 = vsub.f32 %v524, %v939
        %v1529 = vsub.f32 %v527, %v943
        %v1530 = vsub.f32 %v530, %v947
        %v1531 = vsub.f32 %v533, %v951
        %v1532 = vsub.f32 %v536, %v955
        %v1533 = vsub.f32 %v539, %v959
        %v1534 = vsub.f32 %v542, %v963
        %v1535 = vsub.f32 %v545, %v967
        %v1536 = vsub.f32 %v548, %v971
        %v1537 = vsub.f32 %v551, %v975
        %v1538 = vsub.f32 %v554, %v982
        %v1539 = vsub.f32 %v557, %v986
        %v1540 = vsub.f32 %v560, %v990
        %v1541 = vsub.f32 %v563, %v994
        %v1542 = vsub.f32 %v566, %v998
        %v1543 = vsub.f32 %v569, %v1002
        %v1544 = vsub.f32 %v572, %v1006
        %v1545 = vsub.f32 %v575, %v1010
        %v1546 = vsub.f32 %v578, %v1014
        %v1547 = vsub.f32 %v581, %v1018
        %v1548 = vsub.f32 %v584, %v1022
        %v1549 = vsub.f32 %v587, %v1026
        %v1550 = vsub.f32 %v590, %v1030
        %v1551 = vsub.f32 %v593, %v1034
        %v1552 = vsub.f32 %v596, %v1038
        %v1553 = vsub.f32 %v599, %v1042
        %v1554 = vsub.f32 %v602, %v1049
        %v1555 = vsub.f32 %v605, %v1053
        %v1556 = vsub.f32 %v608, %v1057
        %v1557 = vsub.f32 %v611, %v1061
        %v1558 = vsub.f32 %v614, %v1065
        %v1559 = vsub.f32 %v617, %v1069
        %v1560 = vsub.f32 %v620, %v1073
        %v1561 = vsub.f32 %v623, %v1077
        %v1562 = vsub.f32 %v626, %v1081
        %v1563 = vsub.f32 %v629, %v1085
        %v1564 = vsub.f32 %v632, %v1089
        %v1565 = vsub.f32 %v635, %v1093
        %v1566 = vsub.f32 %v638, %v1097
        %v1567 = vsub.f32 %v641, %v1101
        %v1568 = vsub.f32 %v644, %v1105
        %v1569 = vsub.f32 %v647, %v1109
        %v1570 = vsub.f32 %v650, %v1116
        %v1571 = vsub.f32 %v653, %v1120
        %v1572 = vsub.f32 %v656, %v1124
        %v1573 = vsub.f32 %v659, %v1128
        %v1574 = vsub.f32 %v662, %v1132
        %v1575 = vsub.f32 %v665, %v1136
        %v1576 = vsub.f32 %v668, %v1140
        %v1577 = vsub.f32 %v671, %v1144
        %v1578 = vsub.f32 %v674, %v1148
        %v1579 = vsub.f32 %v677, %v1152
        %v1580 = vsub.f32 %v680, %v1156
        %v1581 = vsub.f32 %v683, %v1160
        %v1582 = vsub.f32 %v686, %v1164
        %v1583 = vsub.f32 %v689, %v1168
        %v1584 = vsub.f32 %v692, %v1172
        %v1585 = vsub.f32 %v695, %v1176
        %v1586 = vsub.f32 %v698, %v1183
        %v1587 = vsub.f32 %v701, %v1187
        %v1588 = vsub.f32 %v704, %v1191
        %v1589 = vsub.f32 %v707, %v1195
        %v1590 = vsub.f32 %v710, %v1199
        %v1591 = vsub.f32 %v713, %v1203
        %v1592 = vsub.f32 %v716, %v1207
        %v1593 = vsub.f32 %v719, %v1211
        %v1594 = vsub.f32 %v722, %v1215
        %v1595 = vsub.f32 %v725, %v1219
        %v1596 = vsub.f32 %v728, %v1223
        %v1597 = vsub.f32 %v731, %v1227
        %v1598 = vsub.f32 %v734, %v1231
        %v1599 = vsub.f32 %v737, %v1235
        %v1600 = vsub.f32 %v740, %v1239
        %v1601 = vsub.f32 %v743, %v1243
        %v1602 = vsub.f32 %v746, %v1250
        %v1603 = vsub.f32 %v749, %v1254
        %v1604 = vsub.f32 %v752, %v1258
        %v1605 = vsub.f32 %v755, %v1262
        %v1606 = vsub.f32 %v758, %v1266
        %v1607 = vsub.f32 %v761, %v1270
        %v1608 = vsub.f32 %v764, %v1274
        %v1609 = vsub.f32 %v767, %v1278
        %v1610 = vsub.f32 %v770, %v1282
        %v1611 = vsub.f32 %v773, %v1286
        %v1612 = vsub.f32 %v776, %v1290
        %v1613 = vsub.f32 %v779, %v1294
        %v1614 = vsub.f32 %v782, %v1298
        %v1615 = vsub.f32 %v785, %v1302
        %v1616 = vsub.f32 %v788, %v1306
        %v1617 = vsub.f32 %v791, %v1310
        %v1618 = vsub.f32 %v794, %v1317
        %v1619 = vsub.f32 %v797, %v1321
        %v1620 = vsub.f32 %v800, %v1325
        %v1621 = vsub.f32 %v803, %v1329
        %v1622 = vsub.f32 %v806, %v1333
        %v1623 = vsub.f32 %v809, %v1337
        %v1624 = vsub.f32 %v812, %v1341
        %v1625 = vsub.f32 %v815, %v1345
        %v1626 = vsub.f32 %v818, %v1349
        %v1627 = vsub.f32 %v821, %v1353
        %v1628 = vsub.f32 %v824, %v1357
        %v1629 = vsub.f32 %v827, %v1361
        %v1630 = vsub.f32 %v830, %v1365
        %v1631 = vsub.f32 %v833, %v1369
        %v1632 = vsub.f32 %v836, %v1373
        %v1633 = vsub.f32 %v839, %v1377
        %1762 = vset.pattern.permute.xlu0 0
        %1763 = vperm.xlu0 %1762, %v1506
        %v1764 = vpop.permute.xlu0 %1763
        %1765 = vset.pattern.permute.xlu0 0
        %1766 = vperm.xlu0 %1765, %v1507
        %v1767 = vpop.permute.xlu0 %1766
        %1768 = vset.pattern.permute.xlu0 0
        %1769 = vperm.xlu0 %1768, %v1508
        %v1770 = vpop.permute.xlu0 %1769
        %1771 = vset.pattern.permute.xlu0 0
        %1772 = vperm.xlu0 %1771, %v1509
        %v1773 = vpop.permute.xlu0 %1772
        %1774 = vset.pattern.permute.xlu0 0
        %1775 = vperm.xlu0 %1774, %v1510
        %v1776 = vpop.permute.xlu0 %1775
        %1777 = vset.pattern.permute.xlu0 0
        %1778 = vperm.xlu0 %1777, %v1511
        %v1779 = vpop.permute.xlu0 %1778
        %1780 = vset.pattern.permute.xlu0 0
        %1781 = vperm.xlu0 %1780, %v1512
        %v1782 = vpop.permute.xlu0 %1781
        %1783 = vset.pattern.permute.xlu0 0
        %1784 = vperm.xlu0 %1783, %v1513
        %v1785 = vpop.permute.xlu0 %1784
        %1786 = vset.pattern.permute.xlu0 0
        %1787 = vperm.xlu0 %1786, %v1514
        %v1788 = vpop.permute.xlu0 %1787
        %1789 = vset.pattern.permute.xlu0 0
        %1790 = vperm.xlu0 %1789, %v1515
        %v1791 = vpop.permute.xlu0 %1790
        %1792 = vset.pattern.permute.xlu0 0
        %1793 = vperm.xlu0 %1792, %v1516
        %v1794 = vpop.permute.xlu0 %1793
        %1795 = vset.pattern.permute.xlu0 0
        %1796 = vperm.xlu0 %1795, %v1517
        %v1797 = vpop.permute.xlu0 %1796
        %1798 = vset.pattern.permute.xlu0 0
        %1799 = vperm.xlu0 %1798, %v1518
        %v1800 = vpop.permute.xlu0 %1799
        %1801 = vset.pattern.permute.xlu0 0
        %1802 = vperm.xlu0 %1801, %v1519
        %v1803 = vpop.permute.xlu0 %1802
        %1804 = vset.pattern.permute.xlu0 0
        %1805 = vperm.xlu0 %1804, %v1520
        %v1806 = vpop.permute.xlu0 %1805
        %1807 = vset.pattern.permute.xlu0 0
        %1808 = vperm.xlu0 %1807, %v1521
        %v1809 = vpop.permute.xlu0 %1808
        %1810 = vset.pattern.permute.xlu0 0
        %1811 = vperm.xlu0 %1810, %v1522
        %v1812 = vpop.permute.xlu0 %1811
        %1813 = vset.pattern.permute.xlu0 0
        %1814 = vperm.xlu0 %1813, %v1523
        %v1815 = vpop.permute.xlu0 %1814
        %1816 = vset.pattern.permute.xlu0 0
        %1817 = vperm.xlu0 %1816, %v1524
        %v1818 = vpop.permute.xlu0 %1817
        %1819 = vset.pattern.permute.xlu0 0
        %1820 = vperm.xlu0 %1819, %v1525
        %v1821 = vpop.permute.xlu0 %1820
        %1822 = vset.pattern.permute.xlu0 0
        %1823 = vperm.xlu0 %1822, %v1526
        %v1824 = vpop.permute.xlu0 %1823
        %1825 = vset.pattern.permute.xlu0 0
        %1826 = vperm.xlu0 %1825, %v1527
        %v1827 = vpop.permute.xlu0 %1826
        %1828 = vset.pattern.permute.xlu0 0
        %1829 = vperm.xlu0 %1828, %v1528
        %v1830 = vpop.permute.xlu0 %1829
        %1831 = vset.pattern.permute.xlu0 0
        %1832 = vperm.xlu0 %1831, %v1529
        %v1833 = vpop.permute.xlu0 %1832
        %1834 = vset.pattern.permute.xlu0 0
        %1835 = vperm.xlu0 %1834, %v1530
        %v1836 = vpop.permute.xlu0 %1835
        %1837 = vset.pattern.permute.xlu0 0
        %1838 = vperm.xlu0 %1837, %v1531
        %v1839 = vpop.permute.xlu0 %1838
        %1840 = vset.pattern.permute.xlu0 0
        %1841 = vperm.xlu0 %1840, %v1532
        %v1842 = vpop.permute.xlu0 %1841
        %1843 = vset.pattern.permute.xlu0 0
        %1844 = vperm.xlu0 %1843, %v1533
        %v1845 = vpop.permute.xlu0 %1844
        %1846 = vset.pattern.permute.xlu0 0
        %1847 = vperm.xlu0 %1846, %v1534
        %v1848 = vpop.permute.xlu0 %1847
        %1849 = vset.pattern.permute.xlu0 0
        %1850 = vperm.xlu0 %1849, %v1535
        %v1851 = vpop.permute.xlu0 %1850
        %1852 = vset.pattern.permute.xlu0 0
        %1853 = vperm.xlu0 %1852, %v1536
        %v1854 = vpop.permute.xlu0 %1853
        %1855 = vset.pattern.permute.xlu0 0
        %1856 = vperm.xlu0 %1855, %v1537
        %v1857 = vpop.permute.xlu0 %1856
        %1858 = vset.pattern.permute.xlu0 0
        %1859 = vperm.xlu0 %1858, %v1538
        %v1860 = vpop.permute.xlu0 %1859
        %1861 = vset.pattern.permute.xlu0 0
        %1862 = vperm.xlu0 %1861, %v1539
        %v1863 = vpop.permute.xlu0 %1862
        %1864 = vset.pattern.permute.xlu0 0
        %1865 = vperm.xlu0 %1864, %v1540
        %v1866 = vpop.permute.xlu0 %1865
        %1867 = vset.pattern.permute.xlu0 0
        %1868 = vperm.xlu0 %1867, %v1541
        %v1869 = vpop.permute.xlu0 %1868
        %1870 = vset.pattern.permute.xlu0 0
        %1871 = vperm.xlu0 %1870, %v1542
        %v1872 = vpop.permute.xlu0 %1871
        %1873 = vset.pattern.permute.xlu0 0
        %1874 = vperm.xlu0 %1873, %v1543
        %v1875 = vpop.permute.xlu0 %1874
        %1876 = vset.pattern.permute.xlu0 0
        %1877 = vperm.xlu0 %1876, %v1544
        %v1878 = vpop.permute.xlu0 %1877
        %1879 = vset.pattern.permute.xlu0 0
        %1880 = vperm.xlu0 %1879, %v1545
        %v1881 = vpop.permute.xlu0 %1880
        %1882 = vset.pattern.permute.xlu0 0
        %1883 = vperm.xlu0 %1882, %v1546
        %v1884 = vpop.permute.xlu0 %1883
        %1885 = vset.pattern.permute.xlu0 0
        %1886 = vperm.xlu0 %1885, %v1547
        %v1887 = vpop.permute.xlu0 %1886
        %1888 = vset.pattern.permute.xlu0 0
        %1889 = vperm.xlu0 %1888, %v1548
        %v1890 = vpop.permute.xlu0 %1889
        %1891 = vset.pattern.permute.xlu0 0
        %1892 = vperm.xlu0 %1891, %v1549
        %v1893 = vpop.permute.xlu0 %1892
        %1894 = vset.pattern.permute.xlu0 0
        %1895 = vperm.xlu0 %1894, %v1550
        %v1896 = vpop.permute.xlu0 %1895
        %1897 = vset.pattern.permute.xlu0 0
        %1898 = vperm.xlu0 %1897, %v1551
        %v1899 = vpop.permute.xlu0 %1898
        %1900 = vset.pattern.permute.xlu0 0
        %1901 = vperm.xlu0 %1900, %v1552
        %v1902 = vpop.permute.xlu0 %1901
        %1903 = vset.pattern.permute.xlu0 0
        %1904 = vperm.xlu0 %1903, %v1553
        %v1905 = vpop.permute.xlu0 %1904
        %1906 = vset.pattern.permute.xlu0 0
        %1907 = vperm.xlu0 %1906, %v1554
        %v1908 = vpop.permute.xlu0 %1907
        %1909 = vset.pattern.permute.xlu0 0
        %1910 = vperm.xlu0 %1909, %v1555
        %v1911 = vpop.permute.xlu0 %1910
        %1912 = vset.pattern.permute.xlu0 0
        %1913 = vperm.xlu0 %1912, %v1556
        %v1914 = vpop.permute.xlu0 %1913
        %1915 = vset.pattern.permute.xlu0 0
        %1916 = vperm.xlu0 %1915, %v1557
        %v1917 = vpop.permute.xlu0 %1916
        %1918 = vset.pattern.permute.xlu0 0
        %1919 = vperm.xlu0 %1918, %v1558
        %v1920 = vpop.permute.xlu0 %1919
        %1921 = vset.pattern.permute.xlu0 0
        %1922 = vperm.xlu0 %1921, %v1559
        %v1923 = vpop.permute.xlu0 %1922
        %1924 = vset.pattern.permute.xlu0 0
        %1925 = vperm.xlu0 %1924, %v1560
        %v1926 = vpop.permute.xlu0 %1925
        %1927 = vset.pattern.permute.xlu0 0
        %1928 = vperm.xlu0 %1927, %v1561
        %v1929 = vpop.permute.xlu0 %1928
        %1930 = vset.pattern.permute.xlu0 0
        %1931 = vperm.xlu0 %1930, %v1562
        %v1932 = vpop.permute.xlu0 %1931
        %1933 = vset.pattern.permute.xlu0 0
        %1934 = vperm.xlu0 %1933, %v1563
        %v1935 = vpop.permute.xlu0 %1934
        %1936 = vset.pattern.permute.xlu0 0
        %1937 = vperm.xlu0 %1936, %v1564
        %v1938 = vpop.permute.xlu0 %1937
        %1939 = vset.pattern.permute.xlu0 0
        %1940 = vperm.xlu0 %1939, %v1565
        %v1941 = vpop.permute.xlu0 %1940
        %1942 = vset.pattern.permute.xlu0 0
        %1943 = vperm.xlu0 %1942, %v1566
        %v1944 = vpop.permute.xlu0 %1943
        %1945 = vset.pattern.permute.xlu0 0
        %1946 = vperm.xlu0 %1945, %v1567
        %v1947 = vpop.permute.xlu0 %1946
        %1948 = vset.pattern.permute.xlu0 0
        %1949 = vperm.xlu0 %1948, %v1568
        %v1950 = vpop.permute.xlu0 %1949
        %1951 = vset.pattern.permute.xlu0 0
        %1952 = vperm.xlu0 %1951, %v1569
        %v1953 = vpop.permute.xlu0 %1952
        %1954 = vset.pattern.permute.xlu0 0
        %1955 = vperm.xlu0 %1954, %v1570
        %v1956 = vpop.permute.xlu0 %1955
        %1957 = vset.pattern.permute.xlu0 0
        %1958 = vperm.xlu0 %1957, %v1571
        %v1959 = vpop.permute.xlu0 %1958
        %1960 = vset.pattern.permute.xlu0 0
        %1961 = vperm.xlu0 %1960, %v1572
        %v1962 = vpop.permute.xlu0 %1961
        %1963 = vset.pattern.permute.xlu0 0
        %1964 = vperm.xlu0 %1963, %v1573
        %v1965 = vpop.permute.xlu0 %1964
        %1966 = vset.pattern.permute.xlu0 0
        %1967 = vperm.xlu0 %1966, %v1574
        %v1968 = vpop.permute.xlu0 %1967
        %1969 = vset.pattern.permute.xlu0 0
        %1970 = vperm.xlu0 %1969, %v1575
        %v1971 = vpop.permute.xlu0 %1970
        %1972 = vset.pattern.permute.xlu0 0
        %1973 = vperm.xlu0 %1972, %v1576
        %v1974 = vpop.permute.xlu0 %1973
        %1975 = vset.pattern.permute.xlu0 0
        %1976 = vperm.xlu0 %1975, %v1577
        %v1977 = vpop.permute.xlu0 %1976
        %1978 = vset.pattern.permute.xlu0 0
        %1979 = vperm.xlu0 %1978, %v1578
        %v1980 = vpop.permute.xlu0 %1979
        %1981 = vset.pattern.permute.xlu0 0
        %1982 = vperm.xlu0 %1981, %v1579
        %v1983 = vpop.permute.xlu0 %1982
        %1984 = vset.pattern.permute.xlu0 0
        %1985 = vperm.xlu0 %1984, %v1580
        %v1986 = vpop.permute.xlu0 %1985
        %1987 = vset.pattern.permute.xlu0 0
        %1988 = vperm.xlu0 %1987, %v1581
        %v1989 = vpop.permute.xlu0 %1988
        %1990 = vset.pattern.permute.xlu0 0
        %1991 = vperm.xlu0 %1990, %v1582
        %v1992 = vpop.permute.xlu0 %1991
        %1993 = vset.pattern.permute.xlu0 0
        %1994 = vperm.xlu0 %1993, %v1583
        %v1995 = vpop.permute.xlu0 %1994
        %1996 = vset.pattern.permute.xlu0 0
        %1997 = vperm.xlu0 %1996, %v1584
        %v1998 = vpop.permute.xlu0 %1997
        %1999 = vset.pattern.permute.xlu0 0
        %2000 = vperm.xlu0 %1999, %v1585
        %v2001 = vpop.permute.xlu0 %2000
        %2002 = vset.pattern.permute.xlu0 0
        %2003 = vperm.xlu0 %2002, %v1586
        %v2004 = vpop.permute.xlu0 %2003
        %2005 = vset.pattern.permute.xlu0 0
        %2006 = vperm.xlu0 %2005, %v1587
        %v2007 = vpop.permute.xlu0 %2006
        %2008 = vset.pattern.permute.xlu0 0
        %2009 = vperm.xlu0 %2008, %v1588
        %v2010 = vpop.permute.xlu0 %2009
        %2011 = vset.pattern.permute.xlu0 0
        %2012 = vperm.xlu0 %2011, %v1589
        %v2013 = vpop.permute.xlu0 %2012
        %2014 = vset.pattern.permute.xlu0 0
        %2015 = vperm.xlu0 %2014, %v1590
        %v2016 = vpop.permute.xlu0 %2015
        %2017 = vset.pattern.permute.xlu0 0
        %2018 = vperm.xlu0 %2017, %v1591
        %v2019 = vpop.permute.xlu0 %2018
        %2020 = vset.pattern.permute.xlu0 0
        %2021 = vperm.xlu0 %2020, %v1592
        %v2022 = vpop.permute.xlu0 %2021
        %2023 = vset.pattern.permute.xlu0 0
        %2024 = vperm.xlu0 %2023, %v1593
        %v2025 = vpop.permute.xlu0 %2024
        %2026 = vset.pattern.permute.xlu0 0
        %2027 = vperm.xlu0 %2026, %v1594
        %v2028 = vpop.permute.xlu0 %2027
        %2029 = vset.pattern.permute.xlu0 0
        %2030 = vperm.xlu0 %2029, %v1595
        %v2031 = vpop.permute.xlu0 %2030
        %2032 = vset.pattern.permute.xlu0 0
        %2033 = vperm.xlu0 %2032, %v1596
        %v2034 = vpop.permute.xlu0 %2033
        %2035 = vset.pattern.permute.xlu0 0
        %2036 = vperm.xlu0 %2035, %v1597
        %v2037 = vpop.permute.xlu0 %2036
        %2038 = vset.pattern.permute.xlu0 0
        %2039 = vperm.xlu0 %2038, %v1598
        %v2040 = vpop.permute.xlu0 %2039
        %2041 = vset.pattern.permute.xlu0 0
        %2042 = vperm.xlu0 %2041, %v1599
        %v2043 = vpop.permute.xlu0 %2042
        %2044 = vset.pattern.permute.xlu0 0
        %2045 = vperm.xlu0 %2044, %v1600
        %v2046 = vpop.permute.xlu0 %2045
        %2047 = vset.pattern.permute.xlu0 0
        %2048 = vperm.xlu0 %2047, %v1601
        %v2049 = vpop.permute.xlu0 %2048
        %2050 = vset.pattern.permute.xlu0 0
        %2051 = vperm.xlu0 %2050, %v1602
        %v2052 = vpop.permute.xlu0 %2051
        %2053 = vset.pattern.permute.xlu0 0
        %2054 = vperm.xlu0 %2053, %v1603
        %v2055 = vpop.permute.xlu0 %2054
        %2056 = vset.pattern.permute.xlu0 0
        %2057 = vperm.xlu0 %2056, %v1604
        %v2058 = vpop.permute.xlu0 %2057
        %2059 = vset.pattern.permute.xlu0 0
        %2060 = vperm.xlu0 %2059, %v1605
        %v2061 = vpop.permute.xlu0 %2060
        %2062 = vset.pattern.permute.xlu0 0
        %2063 = vperm.xlu0 %2062, %v1606
        %v2064 = vpop.permute.xlu0 %2063
        %2065 = vset.pattern.permute.xlu0 0
        %2066 = vperm.xlu0 %2065, %v1607
        %v2067 = vpop.permute.xlu0 %2066
        %2068 = vset.pattern.permute.xlu0 0
        %2069 = vperm.xlu0 %2068, %v1608
        %v2070 = vpop.permute.xlu0 %2069
        %2071 = vset.pattern.permute.xlu0 0
        %2072 = vperm.xlu0 %2071, %v1609
        %v2073 = vpop.permute.xlu0 %2072
        %2074 = vset.pattern.permute.xlu0 0
        %2075 = vperm.xlu0 %2074, %v1610
        %v2076 = vpop.permute.xlu0 %2075
        %2077 = vset.pattern.permute.xlu0 0
        %2078 = vperm.xlu0 %2077, %v1611
        %v2079 = vpop.permute.xlu0 %2078
        %2080 = vset.pattern.permute.xlu0 0
        %2081 = vperm.xlu0 %2080, %v1612
        %v2082 = vpop.permute.xlu0 %2081
        %2083 = vset.pattern.permute.xlu0 0
        %2084 = vperm.xlu0 %2083, %v1613
        %v2085 = vpop.permute.xlu0 %2084
        %2086 = vset.pattern.permute.xlu0 0
        %2087 = vperm.xlu0 %2086, %v1614
        %v2088 = vpop.permute.xlu0 %2087
        %2089 = vset.pattern.permute.xlu0 0
        %2090 = vperm.xlu0 %2089, %v1615
        %v2091 = vpop.permute.xlu0 %2090
        %2092 = vset.pattern.permute.xlu0 0
        %2093 = vperm.xlu0 %2092, %v1616
        %v2094 = vpop.permute.xlu0 %2093
        %2095 = vset.pattern.permute.xlu0 0
        %2096 = vperm.xlu0 %2095, %v1617
        %v2097 = vpop.permute.xlu0 %2096
        %2098 = vset.pattern.permute.xlu0 0
        %2099 = vperm.xlu0 %2098, %v1618
        %v2100 = vpop.permute.xlu0 %2099
        %2101 = vset.pattern.permute.xlu0 0
        %2102 = vperm.xlu0 %2101, %v1619
        %v2103 = vpop.permute.xlu0 %2102
        %2104 = vset.pattern.permute.xlu0 0
        %2105 = vperm.xlu0 %2104, %v1620
        %v2106 = vpop.permute.xlu0 %2105
        %2107 = vset.pattern.permute.xlu0 0
        %2108 = vperm.xlu0 %2107, %v1621
        %v2109 = vpop.permute.xlu0 %2108
        %2110 = vset.pattern.permute.xlu0 0
        %2111 = vperm.xlu0 %2110, %v1622
        %v2112 = vpop.permute.xlu0 %2111
        %2113 = vset.pattern.permute.xlu0 0
        %2114 = vperm.xlu0 %2113, %v1623
        %v2115 = vpop.permute.xlu0 %2114
        %2116 = vset.pattern.permute.xlu0 0
        %2117 = vperm.xlu0 %2116, %v1624
        %v2118 = vpop.permute.xlu0 %2117
        %2119 = vset.pattern.permute.xlu0 0
        %2120 = vperm.xlu0 %2119, %v1625
        %v2121 = vpop.permute.xlu0 %2120
        %2122 = vset.pattern.permute.xlu0 0
        %2123 = vperm.xlu0 %2122, %v1626
        %v2124 = vpop.permute.xlu0 %2123
        %2125 = vset.pattern.permute.xlu0 0
        %2126 = vperm.xlu0 %2125, %v1627
        %v2127 = vpop.permute.xlu0 %2126
        %2128 = vset.pattern.permute.xlu0 0
        %2129 = vperm.xlu0 %2128, %v1628
        %v2130 = vpop.permute.xlu0 %2129
        %2131 = vset.pattern.permute.xlu0 0
        %2132 = vperm.xlu0 %2131, %v1629
        %v2133 = vpop.permute.xlu0 %2132
        %2134 = vset.pattern.permute.xlu0 0
        %2135 = vperm.xlu0 %2134, %v1630
        %v2136 = vpop.permute.xlu0 %2135
        %2137 = vset.pattern.permute.xlu0 0
        %2138 = vperm.xlu0 %2137, %v1631
        %v2139 = vpop.permute.xlu0 %2138
        %2140 = vset.pattern.permute.xlu0 0
        %2141 = vperm.xlu0 %2140, %v1632
        %v2142 = vpop.permute.xlu0 %2141
        %2143 = vset.pattern.permute.xlu0 0
        %2144 = vperm.xlu0 %2143, %v1633
        %v2145 = vpop.permute.xlu0 %2144
        %v2146 = vlaneseq
        %v2147 = vand.u32 %v2146, 127
        %v2148 = vlaneseq
        %v2149 = vshrl.u32 %v2148, 7
        %v2150 = vsub.s32 %v2147, %v2149
        %v2151 = vrot.slane %v1764, %v2150
        %v2152 = vadd.s32 %v2147, 4294967288
        %v2153 = vlaneseq
        %v2154 = vshrl.u32 %v2153, 7
        %v2155 = vsub.s32 %v2152, %v2154
        %v2156 = vrot.slane %v1767, %v2155
        %vm2157 = vcmask 130112
        %v2158 = vsel %vm2157, %v2156, %v2151
        %v2159 = vadd.s32 %v2147, 4294967280
        %v2160 = vlaneseq
        %v2161 = vshrl.u32 %v2160, 7
        %v2162 = vsub.s32 %v2159, %v2161
        %v2163 = vrot.slane %v1770, %v2162
        %vm2164 = vcmask 195712
        %v2165 = vsel %vm2164, %v2163, %v2158
        %v2166 = vadd.s32 %v2147, 4294967272
        %v2167 = vlaneseq
        %v2168 = vshrl.u32 %v2167, 7
        %v2169 = vsub.s32 %v2166, %v2168
        %v2170 = vrot.slane %v1773, %v2169
        %vm2171 = vcmask 261312
        %v2172 = vsel %vm2171, %v2170, %v2165
        %v2173 = vadd.s32 %v2147, 4294967264
        %v2174 = vlaneseq
        %v2175 = vshrl.u32 %v2174, 7
        %v2176 = vsub.s32 %v2173, %v2175
        %v2177 = vrot.slane %v1776, %v2176
        %vm2178 = vcmask 326912
        %v2179 = vsel %vm2178, %v2177, %v2172
        %v2180 = vadd.s32 %v2147, 4294967256
        %v2181 = vlaneseq
        %v2182 = vshrl.u32 %v2181, 7
        %v2183 = vsub.s32 %v2180, %v2182
        %v2184 = vrot.slane %v1779, %v2183
        %vm2185 = vcmask 392512
        %v2186 = vsel %vm2185, %v2184, %v2179
        %v2187 = vadd.s32 %v2147, 4294967248
        %v2188 = vlaneseq
        %v2189 = vshrl.u32 %v2188, 7
        %v2190 = vsub.s32 %v2187, %v2189
        %v2191 = vrot.slane %v1782, %v2190
        %vm2192 = vcmask 458112
        %v2193 = vsel %vm2192, %v2191, %v2186
        %v2194 = vadd.s32 %v2147, 4294967240
        %v2195 = vlaneseq
        %v2196 = vshrl.u32 %v2195, 7
        %v2197 = vsub.s32 %v2194, %v2196
        %v2198 = vrot.slane %v1785, %v2197
        %vm2199 = vcmask 523712
        %v2200 = vsel %vm2199, %v2198, %v2193
        %v2201 = vadd.s32 %v2147, 4294967232
        %v2202 = vlaneseq
        %v2203 = vshrl.u32 %v2202, 7
        %v2204 = vsub.s32 %v2201, %v2203
        %v2205 = vrot.slane %v1788, %v2204
        %vm2206 = vcmask 589312
        %v2207 = vsel %vm2206, %v2205, %v2200
        %v2208 = vadd.s32 %v2147, 4294967224
        %v2209 = vlaneseq
        %v2210 = vshrl.u32 %v2209, 7
        %v2211 = vsub.s32 %v2208, %v2210
        %v2212 = vrot.slane %v1791, %v2211
        %vm2213 = vcmask 654912
        %v2214 = vsel %vm2213, %v2212, %v2207
        %v2215 = vadd.s32 %v2147, 4294967216
        %v2216 = vlaneseq
        %v2217 = vshrl.u32 %v2216, 7
        %v2218 = vsub.s32 %v2215, %v2217
        %v2219 = vrot.slane %v1794, %v2218
        %vm2220 = vcmask 720512
        %v2221 = vsel %vm2220, %v2219, %v2214
        %v2222 = vadd.s32 %v2147, 4294967208
        %v2223 = vlaneseq
        %v2224 = vshrl.u32 %v2223, 7
        %v2225 = vsub.s32 %v2222, %v2224
        %v2226 = vrot.slane %v1797, %v2225
        %vm2227 = vcmask 786112
        %v2228 = vsel %vm2227, %v2226, %v2221
        %v2229 = vadd.s32 %v2147, 4294967200
        %v2230 = vlaneseq
        %v2231 = vshrl.u32 %v2230, 7
        %v2232 = vsub.s32 %v2229, %v2231
        %v2233 = vrot.slane %v1800, %v2232
        %vm2234 = vcmask 851712
        %v2235 = vsel %vm2234, %v2233, %v2228
        %v2236 = vadd.s32 %v2147, 4294967192
        %v2237 = vlaneseq
        %v2238 = vshrl.u32 %v2237, 7
        %v2239 = vsub.s32 %v2236, %v2238
        %v2240 = vrot.slane %v1803, %v2239
        %vm2241 = vcmask 917312
        %v2242 = vsel %vm2241, %v2240, %v2235
        %v2243 = vadd.s32 %v2147, 4294967184
        %v2244 = vlaneseq
        %v2245 = vshrl.u32 %v2244, 7
        %v2246 = vsub.s32 %v2243, %v2245
        %v2247 = vrot.slane %v1806, %v2246
        %vm2248 = vcmask 982912
        %v2249 = vsel %vm2248, %v2247, %v2242
        %v2250 = vadd.s32 %v2147, 4294967176
        %v2251 = vlaneseq
        %v2252 = vshrl.u32 %v2251, 7
        %v2253 = vsub.s32 %v2250, %v2252
        %v2254 = vrot.slane %v1809, %v2253
        %vm2255 = vcmask 1048512
        %v2256 = vsel %vm2255, %v2254, %v2249
        %v2257 = vlaneseq
        %v2258 = vshrl.u32 %v2257, 7
        %v2259 = vsub.s32 %v2147, %v2258
        %v2260 = vrot.slane %v1812, %v2259
        %v2261 = vlaneseq
        %v2262 = vshrl.u32 %v2261, 7
        %v2263 = vsub.s32 %v2152, %v2262
        %v2264 = vrot.slane %v1815, %v2263
        %v2265 = vsel %vm2157, %v2264, %v2260
        %v2266 = vlaneseq
        %v2267 = vshrl.u32 %v2266, 7
        %v2268 = vsub.s32 %v2159, %v2267
        %v2269 = vrot.slane %v1818, %v2268
        %v2270 = vsel %vm2164, %v2269, %v2265
        %v2271 = vlaneseq
        %v2272 = vshrl.u32 %v2271, 7
        %v2273 = vsub.s32 %v2166, %v2272
        %v2274 = vrot.slane %v1821, %v2273
        %v2275 = vsel %vm2171, %v2274, %v2270
        %v2276 = vlaneseq
        %v2277 = vshrl.u32 %v2276, 7
        %v2278 = vsub.s32 %v2173, %v2277
        %v2279 = vrot.slane %v1824, %v2278
        %v2280 = vsel %vm2178, %v2279, %v2275
        %v2281 = vlaneseq
        %v2282 = vshrl.u32 %v2281, 7
        %v2283 = vsub.s32 %v2180, %v2282
        %v2284 = vrot.slane %v1827, %v2283
        %v2285 = vsel %vm2185, %v2284, %v2280
        %v2286 = vlaneseq
        %v2287 = vshrl.u32 %v2286, 7
        %v2288 = vsub.s32 %v2187, %v2287
        %v2289 = vrot.slane %v1830, %v2288
        %v2290 = vsel %vm2192, %v2289, %v2285
        %v2291 = vlaneseq
        %v2292 = vshrl.u32 %v2291, 7
        %v2293 = vsub.s32 %v2194, %v2292
        %v2294 = vrot.slane %v1833, %v2293
        %v2295 = vsel %vm2199, %v2294, %v2290
        %v2296 = vlaneseq
        %v2297 = vshrl.u32 %v2296, 7
        %v2298 = vsub.s32 %v2201, %v2297
        %v2299 = vrot.slane %v1836, %v2298
        %v2300 = vsel %vm2206, %v2299, %v2295
        %v2301 = vlaneseq
        %v2302 = vshrl.u32 %v2301, 7
        %v2303 = vsub.s32 %v2208, %v2302
        %v2304 = vrot.slane %v1839, %v2303
        %v2305 = vsel %vm2213, %v2304, %v2300
        %v2306 = vlaneseq
        %v2307 = vshrl.u32 %v2306, 7
        %v2308 = vsub.s32 %v2215, %v2307
        %v2309 = vrot.slane %v1842, %v2308
        %v2310 = vsel %vm2220, %v2309, %v2305
        %v2311 = vlaneseq
        %v2312 = vshrl.u32 %v2311, 7
        %v2313 = vsub.s32 %v2222, %v2312
        %v2314 = vrot.slane %v1845, %v2313
        %v2315 = vsel %vm2227, %v2314, %v2310
        %v2316 = vlaneseq
        %v2317 = vshrl.u32 %v2316, 7
        %v2318 = vsub.s32 %v2229, %v2317
        %v2319 = vrot.slane %v1848, %v2318
        %v2320 = vsel %vm2234, %v2319, %v2315
        %v2321 = vlaneseq
        %v2322 = vshrl.u32 %v2321, 7
        %v2323 = vsub.s32 %v2236, %v2322
        %v2324 = vrot.slane %v1851, %v2323
        %v2325 = vsel %vm2241, %v2324, %v2320
        %v2326 = vlaneseq
        %v2327 = vshrl.u32 %v2326, 7
        %v2328 = vsub.s32 %v2243, %v2327
        %v2329 = vrot.slane %v1854, %v2328
        %v2330 = vsel %vm2248, %v2329, %v2325
        %v2331 = vlaneseq
        %v2332 = vshrl.u32 %v2331, 7
        %v2333 = vsub.s32 %v2250, %v2332
        %v2334 = vrot.slane %v1857, %v2333
        %v2335 = vsel %vm2255, %v2334, %v2330
        %v2336 = vlaneseq
        %v2337 = vshrl.u32 %v2336, 7
        %v2338 = vsub.s32 %v2147, %v2337
        %v2339 = vrot.slane %v1860, %v2338
        %v2340 = vlaneseq
        %v2341 = vshrl.u32 %v2340, 7
        %v2342 = vsub.s32 %v2152, %v2341
        %v2343 = vrot.slane %v1863, %v2342
        %v2344 = vsel %vm2157, %v2343, %v2339
        %v2345 = vlaneseq
        %v2346 = vshrl.u32 %v2345, 7
        %v2347 = vsub.s32 %v2159, %v2346
        %v2348 = vrot.slane %v1866, %v2347
        %v2349 = vsel %vm2164, %v2348, %v2344
        %v2350 = vlaneseq
        %v2351 = vshrl.u32 %v2350, 7
        %v2352 = vsub.s32 %v2166, %v2351
        %v2353 = vrot.slane %v1869, %v2352
        %v2354 = vsel %vm2171, %v2353, %v2349
        %v2355 = vlaneseq
        %v2356 = vshrl.u32 %v2355, 7
        %v2357 = vsub.s32 %v2173, %v2356
        %v2358 = vrot.slane %v1872, %v2357
        %v2359 = vsel %vm2178, %v2358, %v2354
        %v2360 = vlaneseq
        %v2361 = vshrl.u32 %v2360, 7
        %v2362 = vsub.s32 %v2180, %v2361
        %v2363 = vrot.slane %v1875, %v2362
        %v2364 = vsel %vm2185, %v2363, %v2359
        %v2365 = vlaneseq
        %v2366 = vshrl.u32 %v2365, 7
        %v2367 = vsub.s32 %v2187, %v2366
        %v2368 = vrot.slane %v1878, %v2367
        %v2369 = vsel %vm2192, %v2368, %v2364
        %v2370 = vlaneseq
        %v2371 = vshrl.u32 %v2370, 7
        %v2372 = vsub.s32 %v2194, %v2371
        %v2373 = vrot.slane %v1881, %v2372
        %v2374 = vsel %vm2199, %v2373, %v2369
        %v2375 = vlaneseq
        %v2376 = vshrl.u32 %v2375, 7
        %v2377 = vsub.s32 %v2201, %v2376
        %v2378 = vrot.slane %v1884, %v2377
        %v2379 = vsel %vm2206, %v2378, %v2374
        %v2380 = vlaneseq
        %v2381 = vshrl.u32 %v2380, 7
        %v2382 = vsub.s32 %v2208, %v2381
        %v2383 = vrot.slane %v1887, %v2382
        %v2384 = vsel %vm2213, %v2383, %v2379
        %v2385 = vlaneseq
        %v2386 = vshrl.u32 %v2385, 7
        %v2387 = vsub.s32 %v2215, %v2386
        %v2388 = vrot.slane %v1890, %v2387
        %v2389 = vsel %vm2220, %v2388, %v2384
        %v2390 = vlaneseq
        %v2391 = vshrl.u32 %v2390, 7
        %v2392 = vsub.s32 %v2222, %v2391
        %v2393 = vrot.slane %v1893, %v2392
        %v2394 = vsel %vm2227, %v2393, %v2389
        %v2395 = vlaneseq
        %v2396 = vshrl.u32 %v2395, 7
        %v2397 = vsub.s32 %v2229, %v2396
        %v2398 = vrot.slane %v1896, %v2397
        %v2399 = vsel %vm2234, %v2398, %v2394
        %v2400 = vlaneseq
        %v2401 = vshrl.u32 %v2400, 7
        %v2402 = vsub.s32 %v2236, %v2401
        %v2403 = vrot.slane %v1899, %v2402
        %v2404 = vsel %vm2241, %v2403, %v2399
        %v2405 = vlaneseq
        %v2406 = vshrl.u32 %v2405, 7
        %v2407 = vsub.s32 %v2243, %v2406
        %v2408 = vrot.slane %v1902, %v2407
        %v2409 = vsel %vm2248, %v2408, %v2404
        %v2410 = vlaneseq
        %v2411 = vshrl.u32 %v2410, 7
        %v2412 = vsub.s32 %v2250, %v2411
        %v2413 = vrot.slane %v1905, %v2412
        %v2414 = vsel %vm2255, %v2413, %v2409
        %v2415 = vlaneseq
        %v2416 = vshrl.u32 %v2415, 7
        %v2417 = vsub.s32 %v2147, %v2416
        %v2418 = vrot.slane %v1908, %v2417
        %v2419 = vlaneseq
        %v2420 = vshrl.u32 %v2419, 7
        %v2421 = vsub.s32 %v2152, %v2420
        %v2422 = vrot.slane %v1911, %v2421
        %v2423 = vsel %vm2157, %v2422, %v2418
        %v2424 = vlaneseq
        %v2425 = vshrl.u32 %v2424, 7
        %v2426 = vsub.s32 %v2159, %v2425
        %v2427 = vrot.slane %v1914, %v2426
        %v2428 = vsel %vm2164, %v2427, %v2423
        %v2429 = vlaneseq
        %v2430 = vshrl.u32 %v2429, 7
        %v2431 = vsub.s32 %v2166, %v2430
        %v2432 = vrot.slane %v1917, %v2431
        %v2433 = vsel %vm2171, %v2432, %v2428
        %v2434 = vlaneseq
        %v2435 = vshrl.u32 %v2434, 7
        %v2436 = vsub.s32 %v2173, %v2435
        %v2437 = vrot.slane %v1920, %v2436
        %v2438 = vsel %vm2178, %v2437, %v2433
        %v2439 = vlaneseq
        %v2440 = vshrl.u32 %v2439, 7
        %v2441 = vsub.s32 %v2180, %v2440
        %v2442 = vrot.slane %v1923, %v2441
        %v2443 = vsel %vm2185, %v2442, %v2438
        %v2444 = vlaneseq
        %v2445 = vshrl.u32 %v2444, 7
        %v2446 = vsub.s32 %v2187, %v2445
        %v2447 = vrot.slane %v1926, %v2446
        %v2448 = vsel %vm2192, %v2447, %v2443
        %v2449 = vlaneseq
        %v2450 = vshrl.u32 %v2449, 7
        %v2451 = vsub.s32 %v2194, %v2450
        %v2452 = vrot.slane %v1929, %v2451
        %v2453 = vsel %vm2199, %v2452, %v2448
        %v2454 = vlaneseq
        %v2455 = vshrl.u32 %v2454, 7
        %v2456 = vsub.s32 %v2201, %v2455
        %v2457 = vrot.slane %v1932, %v2456
        %v2458 = vsel %vm2206, %v2457, %v2453
        %v2459 = vlaneseq
        %v2460 = vshrl.u32 %v2459, 7
        %v2461 = vsub.s32 %v2208, %v2460
        %v2462 = vrot.slane %v1935, %v2461
        %v2463 = vsel %vm2213, %v2462, %v2458
        %v2464 = vlaneseq
        %v2465 = vshrl.u32 %v2464, 7
        %v2466 = vsub.s32 %v2215, %v2465
        %v2467 = vrot.slane %v1938, %v2466
        %v2468 = vsel %vm2220, %v2467, %v2463
        %v2469 = vlaneseq
        %v2470 = vshrl.u32 %v2469, 7
        %v2471 = vsub.s32 %v2222, %v2470
        %v2472 = vrot.slane %v1941, %v2471
        %v2473 = vsel %vm2227, %v2472, %v2468
        %v2474 = vlaneseq
        %v2475 = vshrl.u32 %v2474, 7
        %v2476 = vsub.s32 %v2229, %v2475
        %v2477 = vrot.slane %v1944, %v2476
        %v2478 = vsel %vm2234, %v2477, %v2473
        %v2479 = vlaneseq
        %v2480 = vshrl.u32 %v2479, 7
        %v2481 = vsub.s32 %v2236, %v2480
        %v2482 = vrot.slane %v1947, %v2481
        %v2483 = vsel %vm2241, %v2482, %v2478
        %v2484 = vlaneseq
        %v2485 = vshrl.u32 %v2484, 7
        %v2486 = vsub.s32 %v2243, %v2485
        %v2487 = vrot.slane %v1950, %v2486
        %v2488 = vsel %vm2248, %v2487, %v2483
        %v2489 = vlaneseq
        %v2490 = vshrl.u32 %v2489, 7
        %v2491 = vsub.s32 %v2250, %v2490
        %v2492 = vrot.slane %v1953, %v2491
        %v2493 = vsel %vm2255, %v2492, %v2488
        %v2494 = vlaneseq
        %v2495 = vshrl.u32 %v2494, 7
        %v2496 = vsub.s32 %v2147, %v2495
        %v2497 = vrot.slane %v1956, %v2496
        %v2498 = vlaneseq
        %v2499 = vshrl.u32 %v2498, 7
        %v2500 = vsub.s32 %v2152, %v2499
        %v2501 = vrot.slane %v1959, %v2500
        %v2502 = vsel %vm2157, %v2501, %v2497
        %v2503 = vlaneseq
        %v2504 = vshrl.u32 %v2503, 7
        %v2505 = vsub.s32 %v2159, %v2504
        %v2506 = vrot.slane %v1962, %v2505
        %v2507 = vsel %vm2164, %v2506, %v2502
        %v2508 = vlaneseq
        %v2509 = vshrl.u32 %v2508, 7
        %v2510 = vsub.s32 %v2166, %v2509
        %v2511 = vrot.slane %v1965, %v2510
        %v2512 = vsel %vm2171, %v2511, %v2507
        %v2513 = vlaneseq
        %v2514 = vshrl.u32 %v2513, 7
        %v2515 = vsub.s32 %v2173, %v2514
        %v2516 = vrot.slane %v1968, %v2515
        %v2517 = vsel %vm2178, %v2516, %v2512
        %v2518 = vlaneseq
        %v2519 = vshrl.u32 %v2518, 7
        %v2520 = vsub.s32 %v2180, %v2519
        %v2521 = vrot.slane %v1971, %v2520
        %v2522 = vsel %vm2185, %v2521, %v2517
        %v2523 = vlaneseq
        %v2524 = vshrl.u32 %v2523, 7
        %v2525 = vsub.s32 %v2187, %v2524
        %v2526 = vrot.slane %v1974, %v2525
        %v2527 = vsel %vm2192, %v2526, %v2522
        %v2528 = vlaneseq
        %v2529 = vshrl.u32 %v2528, 7
        %v2530 = vsub.s32 %v2194, %v2529
        %v2531 = vrot.slane %v1977, %v2530
        %v2532 = vsel %vm2199, %v2531, %v2527
        %v2533 = vlaneseq
        %v2534 = vshrl.u32 %v2533, 7
        %v2535 = vsub.s32 %v2201, %v2534
        %v2536 = vrot.slane %v1980, %v2535
        %v2537 = vsel %vm2206, %v2536, %v2532
        %v2538 = vlaneseq
        %v2539 = vshrl.u32 %v2538, 7
        %v2540 = vsub.s32 %v2208, %v2539
        %v2541 = vrot.slane %v1983, %v2540
        %v2542 = vsel %vm2213, %v2541, %v2537
        %v2543 = vlaneseq
        %v2544 = vshrl.u32 %v2543, 7
        %v2545 = vsub.s32 %v2215, %v2544
        %v2546 = vrot.slane %v1986, %v2545
        %v2547 = vsel %vm2220, %v2546, %v2542
        %v2548 = vlaneseq
        %v2549 = vshrl.u32 %v2548, 7
        %v2550 = vsub.s32 %v2222, %v2549
        %v2551 = vrot.slane %v1989, %v2550
        %v2552 = vsel %vm2227, %v2551, %v2547
        %v2553 = vlaneseq
        %v2554 = vshrl.u32 %v2553, 7
        %v2555 = vsub.s32 %v2229, %v2554
        %v2556 = vrot.slane %v1992, %v2555
        %v2557 = vsel %vm2234, %v2556, %v2552
        %v2558 = vlaneseq
        %v2559 = vshrl.u32 %v2558, 7
        %v2560 = vsub.s32 %v2236, %v2559
        %v2561 = vrot.slane %v1995, %v2560
        %v2562 = vsel %vm2241, %v2561, %v2557
        %v2563 = vlaneseq
        %v2564 = vshrl.u32 %v2563, 7
        %v2565 = vsub.s32 %v2243, %v2564
        %v2566 = vrot.slane %v1998, %v2565
        %v2567 = vsel %vm2248, %v2566, %v2562
        %v2568 = vlaneseq
        %v2569 = vshrl.u32 %v2568, 7
        %v2570 = vsub.s32 %v2250, %v2569
        %v2571 = vrot.slane %v2001, %v2570
        %v2572 = vsel %vm2255, %v2571, %v2567
        %v2573 = vlaneseq
        %v2574 = vshrl.u32 %v2573, 7
        %v2575 = vsub.s32 %v2147, %v2574
        %v2576 = vrot.slane %v2004, %v2575
        %v2577 = vlaneseq
        %v2578 = vshrl.u32 %v2577, 7
        %v2579 = vsub.s32 %v2152, %v2578
        %v2580 = vrot.slane %v2007, %v2579
        %v2581 = vsel %vm2157, %v2580, %v2576
        %v2582 = vlaneseq
        %v2583 = vshrl.u32 %v2582, 7
        %v2584 = vsub.s32 %v2159, %v2583
        %v2585 = vrot.slane %v2010, %v2584
        %v2586 = vsel %vm2164, %v2585, %v2581
        %v2587 = vlaneseq
        %v2588 = vshrl.u32 %v2587, 7
        %v2589 = vsub.s32 %v2166, %v2588
        %v2590 = vrot.slane %v2013, %v2589
        %v2591 = vsel %vm2171, %v2590, %v2586
        %v2592 = vlaneseq
        %v2593 = vshrl.u32 %v2592, 7
        %v2594 = vsub.s32 %v2173, %v2593
        %v2595 = vrot.slane %v2016, %v2594
        %v2596 = vsel %vm2178, %v2595, %v2591
        %v2597 = vlaneseq
        %v2598 = vshrl.u32 %v2597, 7
        %v2599 = vsub.s32 %v2180, %v2598
        %v2600 = vrot.slane %v2019, %v2599
        %v2601 = vsel %vm2185, %v2600, %v2596
        %v2602 = vlaneseq
        %v2603 = vshrl.u32 %v2602, 7
        %v2604 = vsub.s32 %v2187, %v2603
        %v2605 = vrot.slane %v2022, %v2604
        %v2606 = vsel %vm2192, %v2605, %v2601
        %v2607 = vlaneseq
        %v2608 = vshrl.u32 %v2607, 7
        %v2609 = vsub.s32 %v2194, %v2608
        %v2610 = vrot.slane %v2025, %v2609
        %v2611 = vsel %vm2199, %v2610, %v2606
        %v2612 = vlaneseq
        %v2613 = vshrl.u32 %v2612, 7
        %v2614 = vsub.s32 %v2201, %v2613
        %v2615 = vrot.slane %v2028, %v2614
        %v2616 = vsel %vm2206, %v2615, %v2611
        %v2617 = vlaneseq
        %v2618 = vshrl.u32 %v2617, 7
        %v2619 = vsub.s32 %v2208, %v2618
        %v2620 = vrot.slane %v2031, %v2619
        %v2621 = vsel %vm2213, %v2620, %v2616
        %v2622 = vlaneseq
        %v2623 = vshrl.u32 %v2622, 7
        %v2624 = vsub.s32 %v2215, %v2623
        %v2625 = vrot.slane %v2034, %v2624
        %v2626 = vsel %vm2220, %v2625, %v2621
        %v2627 = vlaneseq
        %v2628 = vshrl.u32 %v2627, 7
        %v2629 = vsub.s32 %v2222, %v2628
        %v2630 = vrot.slane %v2037, %v2629
        %v2631 = vsel %vm2227, %v2630, %v2626
        %v2632 = vlaneseq
        %v2633 = vshrl.u32 %v2632, 7
        %v2634 = vsub.s32 %v2229, %v2633
        %v2635 = vrot.slane %v2040, %v2634
        %v2636 = vsel %vm2234, %v2635, %v2631
        %v2637 = vlaneseq
        %v2638 = vshrl.u32 %v2637, 7
        %v2639 = vsub.s32 %v2236, %v2638
        %v2640 = vrot.slane %v2043, %v2639
        %v2641 = vsel %vm2241, %v2640, %v2636
        %v2642 = vlaneseq
        %v2643 = vshrl.u32 %v2642, 7
        %v2644 = vsub.s32 %v2243, %v2643
        %v2645 = vrot.slane %v2046, %v2644
        %v2646 = vsel %vm2248, %v2645, %v2641
        %v2647 = vlaneseq
        %v2648 = vshrl.u32 %v2647, 7
        %v2649 = vsub.s32 %v2250, %v2648
        %v2650 = vrot.slane %v2049, %v2649
        %v2651 = vsel %vm2255, %v2650, %v2646
        %v2652 = vlaneseq
        %v2653 = vshrl.u32 %v2652, 7
        %v2654 = vsub.s32 %v2147, %v2653
        %v2655 = vrot.slane %v2052, %v2654
        %v2656 = vlaneseq
        %v2657 = vshrl.u32 %v2656, 7
        %v2658 = vsub.s32 %v2152, %v2657
        %v2659 = vrot.slane %v2055, %v2658
        %v2660 = vsel %vm2157, %v2659, %v2655
        %v2661 = vlaneseq
        %v2662 = vshrl.u32 %v2661, 7
        %v2663 = vsub.s32 %v2159, %v2662
        %v2664 = vrot.slane %v2058, %v2663
        %v2665 = vsel %vm2164, %v2664, %v2660
        %v2666 = vlaneseq
        %v2667 = vshrl.u32 %v2666, 7
        %v2668 = vsub.s32 %v2166, %v2667
        %v2669 = vrot.slane %v2061, %v2668
        %v2670 = vsel %vm2171, %v2669, %v2665
        %v2671 = vlaneseq
        %v2672 = vshrl.u32 %v2671, 7
        %v2673 = vsub.s32 %v2173, %v2672
        %v2674 = vrot.slane %v2064, %v2673
        %v2675 = vsel %vm2178, %v2674, %v2670
        %v2676 = vlaneseq
        %v2677 = vshrl.u32 %v2676, 7
        %v2678 = vsub.s32 %v2180, %v2677
        %v2679 = vrot.slane %v2067, %v2678
        %v2680 = vsel %vm2185, %v2679, %v2675
        %v2681 = vlaneseq
        %v2682 = vshrl.u32 %v2681, 7
        %v2683 = vsub.s32 %v2187, %v2682
        %v2684 = vrot.slane %v2070, %v2683
        %v2685 = vsel %vm2192, %v2684, %v2680
        %v2686 = vlaneseq
        %v2687 = vshrl.u32 %v2686, 7
        %v2688 = vsub.s32 %v2194, %v2687
        %v2689 = vrot.slane %v2073, %v2688
        %v2690 = vsel %vm2199, %v2689, %v2685
        %v2691 = vlaneseq
        %v2692 = vshrl.u32 %v2691, 7
        %v2693 = vsub.s32 %v2201, %v2692
        %v2694 = vrot.slane %v2076, %v2693
        %v2695 = vsel %vm2206, %v2694, %v2690
        %v2696 = vlaneseq
        %v2697 = vshrl.u32 %v2696, 7
        %v2698 = vsub.s32 %v2208, %v2697
        %v2699 = vrot.slane %v2079, %v2698
        %v2700 = vsel %vm2213, %v2699, %v2695
        %v2701 = vlaneseq
        %v2702 = vshrl.u32 %v2701, 7
        %v2703 = vsub.s32 %v2215, %v2702
        %v2704 = vrot.slane %v2082, %v2703
        %v2705 = vsel %vm2220, %v2704, %v2700
        %v2706 = vlaneseq
        %v2707 = vshrl.u32 %v2706, 7
        %v2708 = vsub.s32 %v2222, %v2707
        %v2709 = vrot.slane %v2085, %v2708
        %v2710 = vsel %vm2227, %v2709, %v2705
        %v2711 = vlaneseq
        %v2712 = vshrl.u32 %v2711, 7
        %v2713 = vsub.s32 %v2229, %v2712
        %v2714 = vrot.slane %v2088, %v2713
        %v2715 = vsel %vm2234, %v2714, %v2710
        %v2716 = vlaneseq
        %v2717 = vshrl.u32 %v2716, 7
        %v2718 = vsub.s32 %v2236, %v2717
        %v2719 = vrot.slane %v2091, %v2718
        %v2720 = vsel %vm2241, %v2719, %v2715
        %v2721 = vlaneseq
        %v2722 = vshrl.u32 %v2721, 7
        %v2723 = vsub.s32 %v2243, %v2722
        %v2724 = vrot.slane %v2094, %v2723
        %v2725 = vsel %vm2248, %v2724, %v2720
        %v2726 = vlaneseq
        %v2727 = vshrl.u32 %v2726, 7
        %v2728 = vsub.s32 %v2250, %v2727
        %v2729 = vrot.slane %v2097, %v2728
        %v2730 = vsel %vm2255, %v2729, %v2725
        %v2731 = vlaneseq
        %v2732 = vshrl.u32 %v2731, 7
        %v2733 = vsub.s32 %v2147, %v2732
        %v2734 = vrot.slane %v2100, %v2733
        %v2735 = vlaneseq
        %v2736 = vshrl.u32 %v2735, 7
        %v2737 = vsub.s32 %v2152, %v2736
        %v2738 = vrot.slane %v2103, %v2737
        %v2739 = vsel %vm2157, %v2738, %v2734
        %v2740 = vlaneseq
        %v2741 = vshrl.u32 %v2740, 7
        %v2742 = vsub.s32 %v2159, %v2741
        %v2743 = vrot.slane %v2106, %v2742
        %v2744 = vsel %vm2164, %v2743, %v2739
        %v2745 = vlaneseq
        %v2746 = vshrl.u32 %v2745, 7
        %v2747 = vsub.s32 %v2166, %v2746
        %v2748 = vrot.slane %v2109, %v2747
        %v2749 = vsel %vm2171, %v2748, %v2744
        %v2750 = vlaneseq
        %v2751 = vshrl.u32 %v2750, 7
        %v2752 = vsub.s32 %v2173, %v2751
        %v2753 = vrot.slane %v2112, %v2752
        %v2754 = vsel %vm2178, %v2753, %v2749
        %v2755 = vlaneseq
        %v2756 = vshrl.u32 %v2755, 7
        %v2757 = vsub.s32 %v2180, %v2756
        %v2758 = vrot.slane %v2115, %v2757
        %v2759 = vsel %vm2185, %v2758, %v2754
        %v2760 = vlaneseq
        %v2761 = vshrl.u32 %v2760, 7
        %v2762 = vsub.s32 %v2187, %v2761
        %v2763 = vrot.slane %v2118, %v2762
        %v2764 = vsel %vm2192, %v2763, %v2759
        %v2765 = vlaneseq
        %v2766 = vshrl.u32 %v2765, 7
        %v2767 = vsub.s32 %v2194, %v2766
        %v2768 = vrot.slane %v2121, %v2767
        %v2769 = vsel %vm2199, %v2768, %v2764
        %v2770 = vlaneseq
        %v2771 = vshrl.u32 %v2770, 7
        %v2772 = vsub.s32 %v2201, %v2771
        %v2773 = vrot.slane %v2124, %v2772
        %v2774 = vsel %vm2206, %v2773, %v2769
        %v2775 = vlaneseq
        %v2776 = vshrl.u32 %v2775, 7
        %v2777 = vsub.s32 %v2208, %v2776
        %v2778 = vrot.slane %v2127, %v2777
        %v2779 = vsel %vm2213, %v2778, %v2774
        %v2780 = vlaneseq
        %v2781 = vshrl.u32 %v2780, 7
        %v2782 = vsub.s32 %v2215, %v2781
        %v2783 = vrot.slane %v2130, %v2782
        %v2784 = vsel %vm2220, %v2783, %v2779
        %v2785 = vlaneseq
        %v2786 = vshrl.u32 %v2785, 7
        %v2787 = vsub.s32 %v2222, %v2786
        %v2788 = vrot.slane %v2133, %v2787
        %v2789 = vsel %vm2227, %v2788, %v2784
        %v2790 = vlaneseq
        %v2791 = vshrl.u32 %v2790, 7
        %v2792 = vsub.s32 %v2229, %v2791
        %v2793 = vrot.slane %v2136, %v2792
        %v2794 = vsel %vm2234, %v2793, %v2789
        %v2795 = vlaneseq
        %v2796 = vshrl.u32 %v2795, 7
        %v2797 = vsub.s32 %v2236, %v2796
        %v2798 = vrot.slane %v2139, %v2797
        %v2799 = vsel %vm2241, %v2798, %v2794
        %v2800 = vlaneseq
        %v2801 = vshrl.u32 %v2800, 7
        %v2802 = vsub.s32 %v2243, %v2801
        %v2803 = vrot.slane %v2142, %v2802
        %v2804 = vsel %vm2248, %v2803, %v2799
        %v2805 = vlaneseq
        %v2806 = vshrl.u32 %v2805, 7
        %v2807 = vsub.s32 %v2250, %v2806
        %v2808 = vrot.slane %v2145, %v2807
        %v2809 = vsel %vm2255, %v2808, %v2804
        %vm2810 = vcmask 1041409
        %v2811 = vsel %vm2810, %v2335, %v2256
        %vm2812 = vcmask 1042434
        %v2813 = vsel %vm2812, %v2414, %v2811
        %vm2814 = vcmask 1043459
        %v2815 = vsel %vm2814, %v2493, %v2813
        %vm2816 = vcmask 1044484
        %v2817 = vsel %vm2816, %v2572, %v2815
        %vm2818 = vcmask 1045509
        %v2819 = vsel %vm2818, %v2651, %v2817
        %vm2820 = vcmask 1046534
        %v2821 = vsel %vm2820, %v2730, %v2819
        %vm2822 = vcmask 1047559
        %v2823 = vsel %vm2822, %v2809, %v2821
        %2825 = vmax.xlane.f32.xlu0 %v2823
        %v2826 = vpop.xlane.xlu0 %2825
        %v2828 = vlaneseq
        %v2829 = vshrl.u32 %v2828, 7
        %v2830 = vsub.s32 0, %v2829
        %v2831 = vrot.slane %v2826, %v2830
        %v2832 = vlaneseq
        %v2833 = vshrl.u32 %v2832, 7
        %v2834 = vsub.s32 1, %v2833
        %v2835 = vrot.slane %v2826, %v2834
        %v2836 = vlaneseq
        %v2837 = vshrl.u32 %v2836, 7
        %v2838 = vsub.s32 2, %v2837
        %v2839 = vrot.slane %v2826, %v2838
        %v2840 = vlaneseq
        %v2841 = vshrl.u32 %v2840, 7
        %v2842 = vsub.s32 3, %v2841
        %v2843 = vrot.slane %v2826, %v2842
        %v2844 = vlaneseq
        %v2845 = vshrl.u32 %v2844, 7
        %v2846 = vsub.s32 4, %v2845
        %v2847 = vrot.slane %v2826, %v2846
        %v2848 = vlaneseq
        %v2849 = vshrl.u32 %v2848, 7
        %v2850 = vsub.s32 5, %v2849
        %v2851 = vrot.slane %v2826, %v2850
        %v2852 = vlaneseq
        %v2853 = vshrl.u32 %v2852, 7
        %v2854 = vsub.s32 6, %v2853
        %v2855 = vrot.slane %v2826, %v2854
        %v2856 = vlaneseq
        %v2857 = vshrl.u32 %v2856, 7
        %v2858 = vsub.s32 7, %v2857
        %v2859 = vrot.slane %v2826, %v2858
        %v2868 = vsub.f32 %v1506, %v2831
        %v2869 = vsub.f32 %v1507, %v2831
        %v2870 = vsub.f32 %v1508, %v2831
        %v2871 = vsub.f32 %v1509, %v2831
        %v2872 = vsub.f32 %v1510, %v2831
        %v2873 = vsub.f32 %v1511, %v2831
        %v2874 = vsub.f32 %v1512, %v2831
        %v2875 = vsub.f32 %v1513, %v2831
        %v2876 = vsub.f32 %v1514, %v2831
        %v2877 = vsub.f32 %v1515, %v2831
        %v2878 = vsub.f32 %v1516, %v2831
        %v2879 = vsub.f32 %v1517, %v2831
        %v2880 = vsub.f32 %v1518, %v2831
        %v2881 = vsub.f32 %v1519, %v2831
        %v2882 = vsub.f32 %v1520, %v2831
        %v2883 = vsub.f32 %v1521, %v2831
        %v2884 = vsub.f32 %v1522, %v2835
        %v2885 = vsub.f32 %v1523, %v2835
        %v2886 = vsub.f32 %v1524, %v2835
        %v2887 = vsub.f32 %v1525, %v2835
        %v2888 = vsub.f32 %v1526, %v2835
        %v2889 = vsub.f32 %v1527, %v2835
        %v2890 = vsub.f32 %v1528, %v2835
        %v2891 = vsub.f32 %v1529, %v2835
        %v2892 = vsub.f32 %v1530, %v2835
        %v2893 = vsub.f32 %v1531, %v2835
        %v2894 = vsub.f32 %v1532, %v2835
        %v2895 = vsub.f32 %v1533, %v2835
        %v2896 = vsub.f32 %v1534, %v2835
        %v2897 = vsub.f32 %v1535, %v2835
        %v2898 = vsub.f32 %v1536, %v2835
        %v2899 = vsub.f32 %v1537, %v2835
        %v2900 = vsub.f32 %v1538, %v2839
        %v2901 = vsub.f32 %v1539, %v2839
        %v2902 = vsub.f32 %v1540, %v2839
        %v2903 = vsub.f32 %v1541, %v2839
        %v2904 = vsub.f32 %v1542, %v2839
        %v2905 = vsub.f32 %v1543, %v2839
        %v2906 = vsub.f32 %v1544, %v2839
        %v2907 = vsub.f32 %v1545, %v2839
        %v2908 = vsub.f32 %v1546, %v2839
        %v2909 = vsub.f32 %v1547, %v2839
        %v2910 = vsub.f32 %v1548, %v2839
        %v2911 = vsub.f32 %v1549, %v2839
        %v2912 = vsub.f32 %v1550, %v2839
        %v2913 = vsub.f32 %v1551, %v2839
        %v2914 = vsub.f32 %v1552, %v2839
        %v2915 = vsub.f32 %v1553, %v2839
        %v2916 = vsub.f32 %v1554, %v2843
        %v2917 = vsub.f32 %v1555, %v2843
        %v2918 = vsub.f32 %v1556, %v2843
        %v2919 = vsub.f32 %v1557, %v2843
        %v2920 = vsub.f32 %v1558, %v2843
        %v2921 = vsub.f32 %v1559, %v2843
        %v2922 = vsub.f32 %v1560, %v2843
        %v2923 = vsub.f32 %v1561, %v2843
        %v2924 = vsub.f32 %v1562, %v2843
        %v2925 = vsub.f32 %v1563, %v2843
        %v2926 = vsub.f32 %v1564, %v2843
        %v2927 = vsub.f32 %v1565, %v2843
        %v2928 = vsub.f32 %v1566, %v2843
        %v2929 = vsub.f32 %v1567, %v2843
        %v2930 = vsub.f32 %v1568, %v2843
        %v2931 = vsub.f32 %v1569, %v2843
        %v2932 = vsub.f32 %v1570, %v2847
        %v2933 = vsub.f32 %v1571, %v2847
        %v2934 = vsub.f32 %v1572, %v2847
        %v2935 = vsub.f32 %v1573, %v2847
        %v2936 = vsub.f32 %v1574, %v2847
        %v2937 = vsub.f32 %v1575, %v2847
        %v2938 = vsub.f32 %v1576, %v2847
        %v2939 = vsub.f32 %v1577, %v2847
        %v2940 = vsub.f32 %v1578, %v2847
        %v2941 = vsub.f32 %v1579, %v2847
        %v2942 = vsub.f32 %v1580, %v2847
        %v2943 = vsub.f32 %v1581, %v2847
        %v2944 = vsub.f32 %v1582, %v2847
        %v2945 = vsub.f32 %v1583, %v2847
        %v2946 = vsub.f32 %v1584, %v2847
        %v2947 = vsub.f32 %v1585, %v2847
        %v2948 = vsub.f32 %v1586, %v2851
        %v2949 = vsub.f32 %v1587, %v2851
        %v2950 = vsub.f32 %v1588, %v2851
        %v2951 = vsub.f32 %v1589, %v2851
        %v2952 = vsub.f32 %v1590, %v2851
        %v2953 = vsub.f32 %v1591, %v2851
        %v2954 = vsub.f32 %v1592, %v2851
        %v2955 = vsub.f32 %v1593, %v2851
        %v2956 = vsub.f32 %v1594, %v2851
        %v2957 = vsub.f32 %v1595, %v2851
        %v2958 = vsub.f32 %v1596, %v2851
        %v2959 = vsub.f32 %v1597, %v2851
        %v2960 = vsub.f32 %v1598, %v2851
        %v2961 = vsub.f32 %v1599, %v2851
        %v2962 = vsub.f32 %v1600, %v2851
        %v2963 = vsub.f32 %v1601, %v2851
        %v2964 = vsub.f32 %v1602, %v2855
        %v2965 = vsub.f32 %v1603, %v2855
        %v2966 = vsub.f32 %v1604, %v2855
        %v2967 = vsub.f32 %v1605, %v2855
        %v2968 = vsub.f32 %v1606, %v2855
        %v2969 = vsub.f32 %v1607, %v2855
        %v2970 = vsub.f32 %v1608, %v2855
        %v2971 = vsub.f32 %v1609, %v2855
        %v2972 = vsub.f32 %v1610, %v2855
        %v2973 = vsub.f32 %v1611, %v2855
        %v2974 = vsub.f32 %v1612, %v2855
        %v2975 = vsub.f32 %v1613, %v2855
        %v2976 = vsub.f32 %v1614, %v2855
        %v2977 = vsub.f32 %v1615, %v2855
        %v2978 = vsub.f32 %v1616, %v2855
        %v2979 = vsub.f32 %v1617, %v2855
        %v2980 = vsub.f32 %v1618, %v2859
        %v2981 = vsub.f32 %v1619, %v2859
        %v2982 = vsub.f32 %v1620, %v2859
        %v2983 = vsub.f32 %v1621, %v2859
        %v2984 = vsub.f32 %v1622, %v2859
        %v2985 = vsub.f32 %v1623, %v2859
        %v2986 = vsub.f32 %v1624, %v2859
        %v2987 = vsub.f32 %v1625, %v2859
        %v2988 = vsub.f32 %v1626, %v2859
        %v2989 = vsub.f32 %v1627, %v2859
        %v2990 = vsub.f32 %v1628, %v2859
        %v2991 = vsub.f32 %v1629, %v2859
        %v2992 = vsub.f32 %v1630, %v2859
        %v2993 = vsub.f32 %v1631, %v2859
        %v2994 = vsub.f32 %v1632, %v2859
        %v2995 = vsub.f32 %v1633, %v2859
        %v2996 = vmul.f32 %v2868, 1.442695
        %v2997 = vpow.pop %v2996
        %v2998 = vmul.f32 %v2869, 1.442695
        %v2999 = vpow.pop %v2998
        %v3000 = vmul.f32 %v2870, 1.442695
        %v3001 = vpow.pop %v3000
        %v3002 = vmul.f32 %v2871, 1.442695
        %v3003 = vpow.pop %v3002
        %v3004 = vmul.f32 %v2872, 1.442695
        %v3005 = vpow.pop %v3004
        %v3006 = vmul.f32 %v2873, 1.442695
        %v3007 = vpow.pop %v3006
        %v3008 = vmul.f32 %v2874, 1.442695
        %v3009 = vpow.pop %v3008
        %v3010 = vmul.f32 %v2875, 1.442695
        %v3011 = vpow.pop %v3010
        %v3012 = vmul.f32 %v2876, 1.442695
        %v3013 = vpow.pop %v3012
        %v3014 = vmul.f32 %v2877, 1.442695
        %v3015 = vpow.pop %v3014
        %v3016 = vmul.f32 %v2878, 1.442695
        %v3017 = vpow.pop %v3016
        %v3018 = vmul.f32 %v2879, 1.442695
        %v3019 = vpow.pop %v3018
        %v3020 = vmul.f32 %v2880, 1.442695
        %v3021 = vpow.pop %v3020
        %v3022 = vmul.f32 %v2881, 1.442695
        %v3023 = vpow.pop %v3022
        %v3024 = vmul.f32 %v2882, 1.442695
        %v3025 = vpow.pop %v3024
        %v3026 = vmul.f32 %v2883, 1.442695
        %v3027 = vpow.pop %v3026
        %v3028 = vmul.f32 %v2884, 1.442695
        %v3029 = vpow.pop %v3028
        %v3030 = vmul.f32 %v2885, 1.442695
        %v3031 = vpow.pop %v3030
        %v3032 = vmul.f32 %v2886, 1.442695
        %v3033 = vpow.pop %v3032
        %v3034 = vmul.f32 %v2887, 1.442695
        %v3035 = vpow.pop %v3034
        %v3036 = vmul.f32 %v2888, 1.442695
        %v3037 = vpow.pop %v3036
        %v3038 = vmul.f32 %v2889, 1.442695
        %v3039 = vpow.pop %v3038
        %v3040 = vmul.f32 %v2890, 1.442695
        %v3041 = vpow.pop %v3040
        %v3042 = vmul.f32 %v2891, 1.442695
        %v3043 = vpow.pop %v3042
        %v3044 = vmul.f32 %v2892, 1.442695
        %v3045 = vpow.pop %v3044
        %v3046 = vmul.f32 %v2893, 1.442695
        %v3047 = vpow.pop %v3046
        %v3048 = vmul.f32 %v2894, 1.442695
        %v3049 = vpow.pop %v3048
        %v3050 = vmul.f32 %v2895, 1.442695
        %v3051 = vpow.pop %v3050
        %v3052 = vmul.f32 %v2896, 1.442695
        %v3053 = vpow.pop %v3052
        %v3054 = vmul.f32 %v2897, 1.442695
        %v3055 = vpow.pop %v3054
        %v3056 = vmul.f32 %v2898, 1.442695
        %v3057 = vpow.pop %v3056
        %v3058 = vmul.f32 %v2899, 1.442695
        %v3059 = vpow.pop %v3058
        %v3060 = vmul.f32 %v2900, 1.442695
        %v3061 = vpow.pop %v3060
        %v3062 = vmul.f32 %v2901, 1.442695
        %v3063 = vpow.pop %v3062
        %v3064 = vmul.f32 %v2902, 1.442695
        %v3065 = vpow.pop %v3064
        %v3066 = vmul.f32 %v2903, 1.442695
        %v3067 = vpow.pop %v3066
        %v3068 = vmul.f32 %v2904, 1.442695
        %v3069 = vpow.pop %v3068
        %v3070 = vmul.f32 %v2905, 1.442695
        %v3071 = vpow.pop %v3070
        %v3072 = vmul.f32 %v2906, 1.442695
        %v3073 = vpow.pop %v3072
        %v3074 = vmul.f32 %v2907, 1.442695
        %v3075 = vpow.pop %v3074
        %v3076 = vmul.f32 %v2908, 1.442695
        %v3077 = vpow.pop %v3076
        %v3078 = vmul.f32 %v2909, 1.442695
        %v3079 = vpow.pop %v3078
        %v3080 = vmul.f32 %v2910, 1.442695
        %v3081 = vpow.pop %v3080
        %v3082 = vmul.f32 %v2911, 1.442695
        %v3083 = vpow.pop %v3082
        %v3084 = vmul.f32 %v2912, 1.442695
        %v3085 = vpow.pop %v3084
        %v3086 = vmul.f32 %v2913, 1.442695
        %v3087 = vpow.pop %v3086
        %v3088 = vmul.f32 %v2914, 1.442695
        %v3089 = vpow.pop %v3088
        %v3090 = vmul.f32 %v2915, 1.442695
        %v3091 = vpow.pop %v3090
        %v3092 = vmul.f32 %v2916, 1.442695
        %v3093 = vpow.pop %v3092
        %v3094 = vmul.f32 %v2917, 1.442695
        %v3095 = vpow.pop %v3094
        %v3096 = vmul.f32 %v2918, 1.442695
        %v3097 = vpow.pop %v3096
        %v3098 = vmul.f32 %v2919, 1.442695
        %v3099 = vpow.pop %v3098
        %v3100 = vmul.f32 %v2920, 1.442695
        %v3101 = vpow.pop %v3100
        %v3102 = vmul.f32 %v2921, 1.442695
        %v3103 = vpow.pop %v3102
        %v3104 = vmul.f32 %v2922, 1.442695
        %v3105 = vpow.pop %v3104
        %v3106 = vmul.f32 %v2923, 1.442695
        %v3107 = vpow.pop %v3106
        %v3108 = vmul.f32 %v2924, 1.442695
        %v3109 = vpow.pop %v3108
        %v3110 = vmul.f32 %v2925, 1.442695
        %v3111 = vpow.pop %v3110
        %v3112 = vmul.f32 %v2926, 1.442695
        %v3113 = vpow.pop %v3112
        %v3114 = vmul.f32 %v2927, 1.442695
        %v3115 = vpow.pop %v3114
        %v3116 = vmul.f32 %v2928, 1.442695
        %v3117 = vpow.pop %v3116
        %v3118 = vmul.f32 %v2929, 1.442695
        %v3119 = vpow.pop %v3118
        %v3120 = vmul.f32 %v2930, 1.442695
        %v3121 = vpow.pop %v3120
        %v3122 = vmul.f32 %v2931, 1.442695
        %v3123 = vpow.pop %v3122
        %v3124 = vmul.f32 %v2932, 1.442695
        %v3125 = vpow.pop %v3124
        %v3126 = vmul.f32 %v2933, 1.442695
        %v3127 = vpow.pop %v3126
        %v3128 = vmul.f32 %v2934, 1.442695
        %v3129 = vpow.pop %v3128
        %v3130 = vmul.f32 %v2935, 1.442695
        %v3131 = vpow.pop %v3130
        %v3132 = vmul.f32 %v2936, 1.442695
        %v3133 = vpow.pop %v3132
        %v3134 = vmul.f32 %v2937, 1.442695
        %v3135 = vpow.pop %v3134
        %v3136 = vmul.f32 %v2938, 1.442695
        %v3137 = vpow.pop %v3136
        %v3138 = vmul.f32 %v2939, 1.442695
        %v3139 = vpow.pop %v3138
        %v3140 = vmul.f32 %v2940, 1.442695
        %v3141 = vpow.pop %v3140
        %v3142 = vmul.f32 %v2941, 1.442695
        %v3143 = vpow.pop %v3142
        %v3144 = vmul.f32 %v2942, 1.442695
        %v3145 = vpow.pop %v3144
        %v3146 = vmul.f32 %v2943, 1.442695
        %v3147 = vpow.pop %v3146
        %v3148 = vmul.f32 %v2944, 1.442695
        %v3149 = vpow.pop %v3148
        %v3150 = vmul.f32 %v2945, 1.442695
        %v3151 = vpow.pop %v3150
        %v3152 = vmul.f32 %v2946, 1.442695
        %v3153 = vpow.pop %v3152
        %v3154 = vmul.f32 %v2947, 1.442695
        %v3155 = vpow.pop %v3154
        %v3156 = vmul.f32 %v2948, 1.442695
        %v3157 = vpow.pop %v3156
        %v3158 = vmul.f32 %v2949, 1.442695
        %v3159 = vpow.pop %v3158
        %v3160 = vmul.f32 %v2950, 1.442695
        %v3161 = vpow.pop %v3160
        %v3162 = vmul.f32 %v2951, 1.442695
        %v3163 = vpow.pop %v3162
        %v3164 = vmul.f32 %v2952, 1.442695
        %v3165 = vpow.pop %v3164
        %v3166 = vmul.f32 %v2953, 1.442695
        %v3167 = vpow.pop %v3166
        %v3168 = vmul.f32 %v2954, 1.442695
        %v3169 = vpow.pop %v3168
        %v3170 = vmul.f32 %v2955, 1.442695
        %v3171 = vpow.pop %v3170
        %v3172 = vmul.f32 %v2956, 1.442695
        %v3173 = vpow.pop %v3172
        %v3174 = vmul.f32 %v2957, 1.442695
        %v3175 = vpow.pop %v3174
        %v3176 = vmul.f32 %v2958, 1.442695
        %v3177 = vpow.pop %v3176
        %v3178 = vmul.f32 %v2959, 1.442695
        %v3179 = vpow.pop %v3178
        %v3180 = vmul.f32 %v2960, 1.442695
        %v3181 = vpow.pop %v3180
        %v3182 = vmul.f32 %v2961, 1.442695
        %v3183 = vpow.pop %v3182
        %v3184 = vmul.f32 %v2962, 1.442695
        %v3185 = vpow.pop %v3184
        %v3186 = vmul.f32 %v2963, 1.442695
        %v3187 = vpow.pop %v3186
        %v3188 = vmul.f32 %v2964, 1.442695
        %v3189 = vpow.pop %v3188
        %v3190 = vmul.f32 %v2965, 1.442695
        %v3191 = vpow.pop %v3190
        %v3192 = vmul.f32 %v2966, 1.442695
        %v3193 = vpow.pop %v3192
        %v3194 = vmul.f32 %v2967, 1.442695
        %v3195 = vpow.pop %v3194
        %v3196 = vmul.f32 %v2968, 1.442695
        %v3197 = vpow.pop %v3196
        %v3198 = vmul.f32 %v2969, 1.442695
        %v3199 = vpow.pop %v3198
        %v3200 = vmul.f32 %v2970, 1.442695
        %v3201 = vpow.pop %v3200
        %v3202 = vmul.f32 %v2971, 1.442695
        %v3203 = vpow.pop %v3202
        %v3204 = vmul.f32 %v2972, 1.442695
        %v3205 = vpow.pop %v3204
        %v3206 = vmul.f32 %v2973, 1.442695
        %v3207 = vpow.pop %v3206
        %v3208 = vmul.f32 %v2974, 1.442695
        %v3209 = vpow.pop %v3208
        %v3210 = vmul.f32 %v2975, 1.442695
        %v3211 = vpow.pop %v3210
        %v3212 = vmul.f32 %v2976, 1.442695
        %v3213 = vpow.pop %v3212
        %v3214 = vmul.f32 %v2977, 1.442695
        %v3215 = vpow.pop %v3214
        %v3216 = vmul.f32 %v2978, 1.442695
        %v3217 = vpow.pop %v3216
        %v3218 = vmul.f32 %v2979, 1.442695
        %v3219 = vpow.pop %v3218
        %v3220 = vmul.f32 %v2980, 1.442695
        %v3221 = vpow.pop %v3220
        %v3222 = vmul.f32 %v2981, 1.442695
        %v3223 = vpow.pop %v3222
        %v3224 = vmul.f32 %v2982, 1.442695
        %v3225 = vpow.pop %v3224
        %v3226 = vmul.f32 %v2983, 1.442695
        %v3227 = vpow.pop %v3226
        %v3228 = vmul.f32 %v2984, 1.442695
        %v3229 = vpow.pop %v3228
        %v3230 = vmul.f32 %v2985, 1.442695
        %v3231 = vpow.pop %v3230
        %v3232 = vmul.f32 %v2986, 1.442695
        %v3233 = vpow.pop %v3232
        %v3234 = vmul.f32 %v2987, 1.442695
        %v3235 = vpow.pop %v3234
        %v3236 = vmul.f32 %v2988, 1.442695
        %v3237 = vpow.pop %v3236
        %v3238 = vmul.f32 %v2989, 1.442695
        %v3239 = vpow.pop %v3238
        %v3240 = vmul.f32 %v2990, 1.442695
        %v3241 = vpow.pop %v3240
        %v3242 = vmul.f32 %v2991, 1.442695
        %v3243 = vpow.pop %v3242
        %v3244 = vmul.f32 %v2992, 1.442695
        %v3245 = vpow.pop %v3244
        %v3246 = vmul.f32 %v2993, 1.442695
        %v3247 = vpow.pop %v3246
        %v3248 = vmul.f32 %v2994, 1.442695
        %v3249 = vpow.pop %v3248
        %v3250 = vmul.f32 %v2995, 1.442695
        %v3251 = vpow.pop %v3250
        %3380 = vset.pattern.permute.xlu0 0
        %3381 = vperm.xlu0 %3380, %v2997
        %v3382 = vpop.permute.xlu0 %3381
        %3383 = vset.pattern.permute.xlu0 0
        %3384 = vperm.xlu0 %3383, %v2999
        %v3385 = vpop.permute.xlu0 %3384
        %3386 = vset.pattern.permute.xlu0 0
        %3387 = vperm.xlu0 %3386, %v3001
        %v3388 = vpop.permute.xlu0 %3387
        %3389 = vset.pattern.permute.xlu0 0
        %3390 = vperm.xlu0 %3389, %v3003
        %v3391 = vpop.permute.xlu0 %3390
        %3392 = vset.pattern.permute.xlu0 0
        %3393 = vperm.xlu0 %3392, %v3005
        %v3394 = vpop.permute.xlu0 %3393
        %3395 = vset.pattern.permute.xlu0 0
        %3396 = vperm.xlu0 %3395, %v3007
        %v3397 = vpop.permute.xlu0 %3396
        %3398 = vset.pattern.permute.xlu0 0
        %3399 = vperm.xlu0 %3398, %v3009
        %v3400 = vpop.permute.xlu0 %3399
        %3401 = vset.pattern.permute.xlu0 0
        %3402 = vperm.xlu0 %3401, %v3011
        %v3403 = vpop.permute.xlu0 %3402
        %3404 = vset.pattern.permute.xlu0 0
        %3405 = vperm.xlu0 %3404, %v3013
        %v3406 = vpop.permute.xlu0 %3405
        %3407 = vset.pattern.permute.xlu0 0
        %3408 = vperm.xlu0 %3407, %v3015
        %v3409 = vpop.permute.xlu0 %3408
        %3410 = vset.pattern.permute.xlu0 0
        %3411 = vperm.xlu0 %3410, %v3017
        %v3412 = vpop.permute.xlu0 %3411
        %3413 = vset.pattern.permute.xlu0 0
        %3414 = vperm.xlu0 %3413, %v3019
        %v3415 = vpop.permute.xlu0 %3414
        %3416 = vset.pattern.permute.xlu0 0
        %3417 = vperm.xlu0 %3416, %v3021
        %v3418 = vpop.permute.xlu0 %3417
        %3419 = vset.pattern.permute.xlu0 0
        %3420 = vperm.xlu0 %3419, %v3023
        %v3421 = vpop.permute.xlu0 %3420
        %3422 = vset.pattern.permute.xlu0 0
        %3423 = vperm.xlu0 %3422, %v3025
        %v3424 = vpop.permute.xlu0 %3423
        %3425 = vset.pattern.permute.xlu0 0
        %3426 = vperm.xlu0 %3425, %v3027
        %v3427 = vpop.permute.xlu0 %3426
        %3428 = vset.pattern.permute.xlu0 0
        %3429 = vperm.xlu0 %3428, %v3029
        %v3430 = vpop.permute.xlu0 %3429
        %3431 = vset.pattern.permute.xlu0 0
        %3432 = vperm.xlu0 %3431, %v3031
        %v3433 = vpop.permute.xlu0 %3432
        %3434 = vset.pattern.permute.xlu0 0
        %3435 = vperm.xlu0 %3434, %v3033
        %v3436 = vpop.permute.xlu0 %3435
        %3437 = vset.pattern.permute.xlu0 0
        %3438 = vperm.xlu0 %3437, %v3035
        %v3439 = vpop.permute.xlu0 %3438
        %3440 = vset.pattern.permute.xlu0 0
        %3441 = vperm.xlu0 %3440, %v3037
        %v3442 = vpop.permute.xlu0 %3441
        %3443 = vset.pattern.permute.xlu0 0
        %3444 = vperm.xlu0 %3443, %v3039
        %v3445 = vpop.permute.xlu0 %3444
        %3446 = vset.pattern.permute.xlu0 0
        %3447 = vperm.xlu0 %3446, %v3041
        %v3448 = vpop.permute.xlu0 %3447
        %3449 = vset.pattern.permute.xlu0 0
        %3450 = vperm.xlu0 %3449, %v3043
        %v3451 = vpop.permute.xlu0 %3450
        %3452 = vset.pattern.permute.xlu0 0
        %3453 = vperm.xlu0 %3452, %v3045
        %v3454 = vpop.permute.xlu0 %3453
        %3455 = vset.pattern.permute.xlu0 0
        %3456 = vperm.xlu0 %3455, %v3047
        %v3457 = vpop.permute.xlu0 %3456
        %3458 = vset.pattern.permute.xlu0 0
        %3459 = vperm.xlu0 %3458, %v3049
        %v3460 = vpop.permute.xlu0 %3459
        %3461 = vset.pattern.permute.xlu0 0
        %3462 = vperm.xlu0 %3461, %v3051
        %v3463 = vpop.permute.xlu0 %3462
        %3464 = vset.pattern.permute.xlu0 0
        %3465 = vperm.xlu0 %3464, %v3053
        %v3466 = vpop.permute.xlu0 %3465
        %3467 = vset.pattern.permute.xlu0 0
        %3468 = vperm.xlu0 %3467, %v3055
        %v3469 = vpop.permute.xlu0 %3468
        %3470 = vset.pattern.permute.xlu0 0
        %3471 = vperm.xlu0 %3470, %v3057
        %v3472 = vpop.permute.xlu0 %3471
        %3473 = vset.pattern.permute.xlu0 0
        %3474 = vperm.xlu0 %3473, %v3059
        %v3475 = vpop.permute.xlu0 %3474
        %3476 = vset.pattern.permute.xlu0 0
        %3477 = vperm.xlu0 %3476, %v3061
        %v3478 = vpop.permute.xlu0 %3477
        %3479 = vset.pattern.permute.xlu0 0
        %3480 = vperm.xlu0 %3479, %v3063
        %v3481 = vpop.permute.xlu0 %3480
        %3482 = vset.pattern.permute.xlu0 0
        %3483 = vperm.xlu0 %3482, %v3065
        %v3484 = vpop.permute.xlu0 %3483
        %3485 = vset.pattern.permute.xlu0 0
        %3486 = vperm.xlu0 %3485, %v3067
        %v3487 = vpop.permute.xlu0 %3486
        %3488 = vset.pattern.permute.xlu0 0
        %3489 = vperm.xlu0 %3488, %v3069
        %v3490 = vpop.permute.xlu0 %3489
        %3491 = vset.pattern.permute.xlu0 0
        %3492 = vperm.xlu0 %3491, %v3071
        %v3493 = vpop.permute.xlu0 %3492
        %3494 = vset.pattern.permute.xlu0 0
        %3495 = vperm.xlu0 %3494, %v3073
        %v3496 = vpop.permute.xlu0 %3495
        %3497 = vset.pattern.permute.xlu0 0
        %3498 = vperm.xlu0 %3497, %v3075
        %v3499 = vpop.permute.xlu0 %3498
        %3500 = vset.pattern.permute.xlu0 0
        %3501 = vperm.xlu0 %3500, %v3077
        %v3502 = vpop.permute.xlu0 %3501
        %3503 = vset.pattern.permute.xlu0 0
        %3504 = vperm.xlu0 %3503, %v3079
        %v3505 = vpop.permute.xlu0 %3504
        %3506 = vset.pattern.permute.xlu0 0
        %3507 = vperm.xlu0 %3506, %v3081
        %v3508 = vpop.permute.xlu0 %3507
        %3509 = vset.pattern.permute.xlu0 0
        %3510 = vperm.xlu0 %3509, %v3083
        %v3511 = vpop.permute.xlu0 %3510
        %3512 = vset.pattern.permute.xlu0 0
        %3513 = vperm.xlu0 %3512, %v3085
        %v3514 = vpop.permute.xlu0 %3513
        %3515 = vset.pattern.permute.xlu0 0
        %3516 = vperm.xlu0 %3515, %v3087
        %v3517 = vpop.permute.xlu0 %3516
        %3518 = vset.pattern.permute.xlu0 0
        %3519 = vperm.xlu0 %3518, %v3089
        %v3520 = vpop.permute.xlu0 %3519
        %3521 = vset.pattern.permute.xlu0 0
        %3522 = vperm.xlu0 %3521, %v3091
        %v3523 = vpop.permute.xlu0 %3522
        %3524 = vset.pattern.permute.xlu0 0
        %3525 = vperm.xlu0 %3524, %v3093
        %v3526 = vpop.permute.xlu0 %3525
        %3527 = vset.pattern.permute.xlu0 0
        %3528 = vperm.xlu0 %3527, %v3095
        %v3529 = vpop.permute.xlu0 %3528
        %3530 = vset.pattern.permute.xlu0 0
        %3531 = vperm.xlu0 %3530, %v3097
        %v3532 = vpop.permute.xlu0 %3531
        %3533 = vset.pattern.permute.xlu0 0
        %3534 = vperm.xlu0 %3533, %v3099
        %v3535 = vpop.permute.xlu0 %3534
        %3536 = vset.pattern.permute.xlu0 0
        %3537 = vperm.xlu0 %3536, %v3101
        %v3538 = vpop.permute.xlu0 %3537
        %3539 = vset.pattern.permute.xlu0 0
        %3540 = vperm.xlu0 %3539, %v3103
        %v3541 = vpop.permute.xlu0 %3540
        %3542 = vset.pattern.permute.xlu0 0
        %3543 = vperm.xlu0 %3542, %v3105
        %v3544 = vpop.permute.xlu0 %3543
        %3545 = vset.pattern.permute.xlu0 0
        %3546 = vperm.xlu0 %3545, %v3107
        %v3547 = vpop.permute.xlu0 %3546
        %3548 = vset.pattern.permute.xlu0 0
        %3549 = vperm.xlu0 %3548, %v3109
        %v3550 = vpop.permute.xlu0 %3549
        %3551 = vset.pattern.permute.xlu0 0
        %3552 = vperm.xlu0 %3551, %v3111
        %v3553 = vpop.permute.xlu0 %3552
        %3554 = vset.pattern.permute.xlu0 0
        %3555 = vperm.xlu0 %3554, %v3113
        %v3556 = vpop.permute.xlu0 %3555
        %3557 = vset.pattern.permute.xlu0 0
        %3558 = vperm.xlu0 %3557, %v3115
        %v3559 = vpop.permute.xlu0 %3558
        %3560 = vset.pattern.permute.xlu0 0
        %3561 = vperm.xlu0 %3560, %v3117
        %v3562 = vpop.permute.xlu0 %3561
        %3563 = vset.pattern.permute.xlu0 0
        %3564 = vperm.xlu0 %3563, %v3119
        %v3565 = vpop.permute.xlu0 %3564
        %3566 = vset.pattern.permute.xlu0 0
        %3567 = vperm.xlu0 %3566, %v3121
        %v3568 = vpop.permute.xlu0 %3567
        %3569 = vset.pattern.permute.xlu0 0
        %3570 = vperm.xlu0 %3569, %v3123
        %v3571 = vpop.permute.xlu0 %3570
        %3572 = vset.pattern.permute.xlu0 0
        %3573 = vperm.xlu0 %3572, %v3125
        %v3574 = vpop.permute.xlu0 %3573
        %3575 = vset.pattern.permute.xlu0 0
        %3576 = vperm.xlu0 %3575, %v3127
        %v3577 = vpop.permute.xlu0 %3576
        %3578 = vset.pattern.permute.xlu0 0
        %3579 = vperm.xlu0 %3578, %v3129
        %v3580 = vpop.permute.xlu0 %3579
        %3581 = vset.pattern.permute.xlu0 0
        %3582 = vperm.xlu0 %3581, %v3131
        %v3583 = vpop.permute.xlu0 %3582
        %3584 = vset.pattern.permute.xlu0 0
        %3585 = vperm.xlu0 %3584, %v3133
        %v3586 = vpop.permute.xlu0 %3585
        %3587 = vset.pattern.permute.xlu0 0
        %3588 = vperm.xlu0 %3587, %v3135
        %v3589 = vpop.permute.xlu0 %3588
        %3590 = vset.pattern.permute.xlu0 0
        %3591 = vperm.xlu0 %3590, %v3137
        %v3592 = vpop.permute.xlu0 %3591
        %3593 = vset.pattern.permute.xlu0 0
        %3594 = vperm.xlu0 %3593, %v3139
        %v3595 = vpop.permute.xlu0 %3594
        %3596 = vset.pattern.permute.xlu0 0
        %3597 = vperm.xlu0 %3596, %v3141
        %v3598 = vpop.permute.xlu0 %3597
        %3599 = vset.pattern.permute.xlu0 0
        %3600 = vperm.xlu0 %3599, %v3143
        %v3601 = vpop.permute.xlu0 %3600
        %3602 = vset.pattern.permute.xlu0 0
        %3603 = vperm.xlu0 %3602, %v3145
        %v3604 = vpop.permute.xlu0 %3603
        %3605 = vset.pattern.permute.xlu0 0
        %3606 = vperm.xlu0 %3605, %v3147
        %v3607 = vpop.permute.xlu0 %3606
        %3608 = vset.pattern.permute.xlu0 0
        %3609 = vperm.xlu0 %3608, %v3149
        %v3610 = vpop.permute.xlu0 %3609
        %3611 = vset.pattern.permute.xlu0 0
        %3612 = vperm.xlu0 %3611, %v3151
        %v3613 = vpop.permute.xlu0 %3612
        %3614 = vset.pattern.permute.xlu0 0
        %3615 = vperm.xlu0 %3614, %v3153
        %v3616 = vpop.permute.xlu0 %3615
        %3617 = vset.pattern.permute.xlu0 0
        %3618 = vperm.xlu0 %3617, %v3155
        %v3619 = vpop.permute.xlu0 %3618
        %3620 = vset.pattern.permute.xlu0 0
        %3621 = vperm.xlu0 %3620, %v3157
        %v3622 = vpop.permute.xlu0 %3621
        %3623 = vset.pattern.permute.xlu0 0
        %3624 = vperm.xlu0 %3623, %v3159
        %v3625 = vpop.permute.xlu0 %3624
        %3626 = vset.pattern.permute.xlu0 0
        %3627 = vperm.xlu0 %3626, %v3161
        %v3628 = vpop.permute.xlu0 %3627
        %3629 = vset.pattern.permute.xlu0 0
        %3630 = vperm.xlu0 %3629, %v3163
        %v3631 = vpop.permute.xlu0 %3630
        %3632 = vset.pattern.permute.xlu0 0
        %3633 = vperm.xlu0 %3632, %v3165
        %v3634 = vpop.permute.xlu0 %3633
        %3635 = vset.pattern.permute.xlu0 0
        %3636 = vperm.xlu0 %3635, %v3167
        %v3637 = vpop.permute.xlu0 %3636
        %3638 = vset.pattern.permute.xlu0 0
        %3639 = vperm.xlu0 %3638, %v3169
        %v3640 = vpop.permute.xlu0 %3639
        %3641 = vset.pattern.permute.xlu0 0
        %3642 = vperm.xlu0 %3641, %v3171
        %v3643 = vpop.permute.xlu0 %3642
        %3644 = vset.pattern.permute.xlu0 0
        %3645 = vperm.xlu0 %3644, %v3173
        %v3646 = vpop.permute.xlu0 %3645
        %3647 = vset.pattern.permute.xlu0 0
        %3648 = vperm.xlu0 %3647, %v3175
        %v3649 = vpop.permute.xlu0 %3648
        %3650 = vset.pattern.permute.xlu0 0
        %3651 = vperm.xlu0 %3650, %v3177
        %v3652 = vpop.permute.xlu0 %3651
        %3653 = vset.pattern.permute.xlu0 0
        %3654 = vperm.xlu0 %3653, %v3179
        %v3655 = vpop.permute.xlu0 %3654
        %3656 = vset.pattern.permute.xlu0 0
        %3657 = vperm.xlu0 %3656, %v3181
        %v3658 = vpop.permute.xlu0 %3657
        %3659 = vset.pattern.permute.xlu0 0
        %3660 = vperm.xlu0 %3659, %v3183
        %v3661 = vpop.permute.xlu0 %3660
        %3662 = vset.pattern.permute.xlu0 0
        %3663 = vperm.xlu0 %3662, %v3185
        %v3664 = vpop.permute.xlu0 %3663
        %3665 = vset.pattern.permute.xlu0 0
        %3666 = vperm.xlu0 %3665, %v3187
        %v3667 = vpop.permute.xlu0 %3666
        %3668 = vset.pattern.permute.xlu0 0
        %3669 = vperm.xlu0 %3668, %v3189
        %v3670 = vpop.permute.xlu0 %3669
        %3671 = vset.pattern.permute.xlu0 0
        %3672 = vperm.xlu0 %3671, %v3191
        %v3673 = vpop.permute.xlu0 %3672
        %3674 = vset.pattern.permute.xlu0 0
        %3675 = vperm.xlu0 %3674, %v3193
        %v3676 = vpop.permute.xlu0 %3675
        %3677 = vset.pattern.permute.xlu0 0
        %3678 = vperm.xlu0 %3677, %v3195
        %v3679 = vpop.permute.xlu0 %3678
        %3680 = vset.pattern.permute.xlu0 0
        %3681 = vperm.xlu0 %3680, %v3197
        %v3682 = vpop.permute.xlu0 %3681
        %3683 = vset.pattern.permute.xlu0 0
        %3684 = vperm.xlu0 %3683, %v3199
        %v3685 = vpop.permute.xlu0 %3684
        %3686 = vset.pattern.permute.xlu0 0
        %3687 = vperm.xlu0 %3686, %v3201
        %v3688 = vpop.permute.xlu0 %3687
        %3689 = vset.pattern.permute.xlu0 0
        %3690 = vperm.xlu0 %3689, %v3203
        %v3691 = vpop.permute.xlu0 %3690
        %3692 = vset.pattern.permute.xlu0 0
        %3693 = vperm.xlu0 %3692, %v3205
        %v3694 = vpop.permute.xlu0 %3693
        %3695 = vset.pattern.permute.xlu0 0
        %3696 = vperm.xlu0 %3695, %v3207
        %v3697 = vpop.permute.xlu0 %3696
        %3698 = vset.pattern.permute.xlu0 0
        %3699 = vperm.xlu0 %3698, %v3209
        %v3700 = vpop.permute.xlu0 %3699
        %3701 = vset.pattern.permute.xlu0 0
        %3702 = vperm.xlu0 %3701, %v3211
        %v3703 = vpop.permute.xlu0 %3702
        %3704 = vset.pattern.permute.xlu0 0
        %3705 = vperm.xlu0 %3704, %v3213
        %v3706 = vpop.permute.xlu0 %3705
        %3707 = vset.pattern.permute.xlu0 0
        %3708 = vperm.xlu0 %3707, %v3215
        %v3709 = vpop.permute.xlu0 %3708
        %3710 = vset.pattern.permute.xlu0 0
        %3711 = vperm.xlu0 %3710, %v3217
        %v3712 = vpop.permute.xlu0 %3711
        %3713 = vset.pattern.permute.xlu0 0
        %3714 = vperm.xlu0 %3713, %v3219
        %v3715 = vpop.permute.xlu0 %3714
        %3716 = vset.pattern.permute.xlu0 0
        %3717 = vperm.xlu0 %3716, %v3221
        %v3718 = vpop.permute.xlu0 %3717
        %3719 = vset.pattern.permute.xlu0 0
        %3720 = vperm.xlu0 %3719, %v3223
        %v3721 = vpop.permute.xlu0 %3720
        %3722 = vset.pattern.permute.xlu0 0
        %3723 = vperm.xlu0 %3722, %v3225
        %v3724 = vpop.permute.xlu0 %3723
        %3725 = vset.pattern.permute.xlu0 0
        %3726 = vperm.xlu0 %3725, %v3227
        %v3727 = vpop.permute.xlu0 %3726
        %3728 = vset.pattern.permute.xlu0 0
        %3729 = vperm.xlu0 %3728, %v3229
        %v3730 = vpop.permute.xlu0 %3729
        %3731 = vset.pattern.permute.xlu0 0
        %3732 = vperm.xlu0 %3731, %v3231
        %v3733 = vpop.permute.xlu0 %3732
        %3734 = vset.pattern.permute.xlu0 0
        %3735 = vperm.xlu0 %3734, %v3233
        %v3736 = vpop.permute.xlu0 %3735
        %3737 = vset.pattern.permute.xlu0 0
        %3738 = vperm.xlu0 %3737, %v3235
        %v3739 = vpop.permute.xlu0 %3738
        %3740 = vset.pattern.permute.xlu0 0
        %3741 = vperm.xlu0 %3740, %v3237
        %v3742 = vpop.permute.xlu0 %3741
        %3743 = vset.pattern.permute.xlu0 0
        %3744 = vperm.xlu0 %3743, %v3239
        %v3745 = vpop.permute.xlu0 %3744
        %3746 = vset.pattern.permute.xlu0 0
        %3747 = vperm.xlu0 %3746, %v3241
        %v3748 = vpop.permute.xlu0 %3747
        %3749 = vset.pattern.permute.xlu0 0
        %3750 = vperm.xlu0 %3749, %v3243
        %v3751 = vpop.permute.xlu0 %3750
        %3752 = vset.pattern.permute.xlu0 0
        %3753 = vperm.xlu0 %3752, %v3245
        %v3754 = vpop.permute.xlu0 %3753
        %3755 = vset.pattern.permute.xlu0 0
        %3756 = vperm.xlu0 %3755, %v3247
        %v3757 = vpop.permute.xlu0 %3756
        %3758 = vset.pattern.permute.xlu0 0
        %3759 = vperm.xlu0 %3758, %v3249
        %v3760 = vpop.permute.xlu0 %3759
        %3761 = vset.pattern.permute.xlu0 0
        %3762 = vperm.xlu0 %3761, %v3251
        %v3763 = vpop.permute.xlu0 %3762
        %v3764 = vlaneseq
        %v3765 = vshrl.u32 %v3764, 7
        %v3766 = vsub.s32 %v2147, %v3765
        %v3767 = vrot.slane %v3382, %v3766
        %v3768 = vlaneseq
        %v3769 = vshrl.u32 %v3768, 7
        %v3770 = vsub.s32 %v2152, %v3769
        %v3771 = vrot.slane %v3385, %v3770
        %v3772 = vsel %vm2157, %v3771, %v3767
        %v3773 = vlaneseq
        %v3774 = vshrl.u32 %v3773, 7
        %v3775 = vsub.s32 %v2159, %v3774
        %v3776 = vrot.slane %v3388, %v3775
        %v3777 = vsel %vm2164, %v3776, %v3772
        %v3778 = vlaneseq
        %v3779 = vshrl.u32 %v3778, 7
        %v3780 = vsub.s32 %v2166, %v3779
        %v3781 = vrot.slane %v3391, %v3780
        %v3782 = vsel %vm2171, %v3781, %v3777
        %v3783 = vlaneseq
        %v3784 = vshrl.u32 %v3783, 7
        %v3785 = vsub.s32 %v2173, %v3784
        %v3786 = vrot.slane %v3394, %v3785
        %v3787 = vsel %vm2178, %v3786, %v3782
        %v3788 = vlaneseq
        %v3789 = vshrl.u32 %v3788, 7
        %v3790 = vsub.s32 %v2180, %v3789
        %v3791 = vrot.slane %v3397, %v3790
        %v3792 = vsel %vm2185, %v3791, %v3787
        %v3793 = vlaneseq
        %v3794 = vshrl.u32 %v3793, 7
        %v3795 = vsub.s32 %v2187, %v3794
        %v3796 = vrot.slane %v3400, %v3795
        %v3797 = vsel %vm2192, %v3796, %v3792
        %v3798 = vlaneseq
        %v3799 = vshrl.u32 %v3798, 7
        %v3800 = vsub.s32 %v2194, %v3799
        %v3801 = vrot.slane %v3403, %v3800
        %v3802 = vsel %vm2199, %v3801, %v3797
        %v3803 = vlaneseq
        %v3804 = vshrl.u32 %v3803, 7
        %v3805 = vsub.s32 %v2201, %v3804
        %v3806 = vrot.slane %v3406, %v3805
        %v3807 = vsel %vm2206, %v3806, %v3802
        %v3808 = vlaneseq
        %v3809 = vshrl.u32 %v3808, 7
        %v3810 = vsub.s32 %v2208, %v3809
        %v3811 = vrot.slane %v3409, %v3810
        %v3812 = vsel %vm2213, %v3811, %v3807
        %v3813 = vlaneseq
        %v3814 = vshrl.u32 %v3813, 7
        %v3815 = vsub.s32 %v2215, %v3814
        %v3816 = vrot.slane %v3412, %v3815
        %v3817 = vsel %vm2220, %v3816, %v3812
        %v3818 = vlaneseq
        %v3819 = vshrl.u32 %v3818, 7
        %v3820 = vsub.s32 %v2222, %v3819
        %v3821 = vrot.slane %v3415, %v3820
        %v3822 = vsel %vm2227, %v3821, %v3817
        %v3823 = vlaneseq
        %v3824 = vshrl.u32 %v3823, 7
        %v3825 = vsub.s32 %v2229, %v3824
        %v3826 = vrot.slane %v3418, %v3825
        %v3827 = vsel %vm2234, %v3826, %v3822
        %v3828 = vlaneseq
        %v3829 = vshrl.u32 %v3828, 7
        %v3830 = vsub.s32 %v2236, %v3829
        %v3831 = vrot.slane %v3421, %v3830
        %v3832 = vsel %vm2241, %v3831, %v3827
        %v3833 = vlaneseq
        %v3834 = vshrl.u32 %v3833, 7
        %v3835 = vsub.s32 %v2243, %v3834
        %v3836 = vrot.slane %v3424, %v3835
        %v3837 = vsel %vm2248, %v3836, %v3832
        %v3838 = vlaneseq
        %v3839 = vshrl.u32 %v3838, 7
        %v3840 = vsub.s32 %v2250, %v3839
        %v3841 = vrot.slane %v3427, %v3840
        %v3842 = vsel %vm2255, %v3841, %v3837
        %v3843 = vlaneseq
        %v3844 = vshrl.u32 %v3843, 7
        %v3845 = vsub.s32 %v2147, %v3844
        %v3846 = vrot.slane %v3430, %v3845
        %v3847 = vlaneseq
        %v3848 = vshrl.u32 %v3847, 7
        %v3849 = vsub.s32 %v2152, %v3848
        %v3850 = vrot.slane %v3433, %v3849
        %v3851 = vsel %vm2157, %v3850, %v3846
        %v3852 = vlaneseq
        %v3853 = vshrl.u32 %v3852, 7
        %v3854 = vsub.s32 %v2159, %v3853
        %v3855 = vrot.slane %v3436, %v3854
        %v3856 = vsel %vm2164, %v3855, %v3851
        %v3857 = vlaneseq
        %v3858 = vshrl.u32 %v3857, 7
        %v3859 = vsub.s32 %v2166, %v3858
        %v3860 = vrot.slane %v3439, %v3859
        %v3861 = vsel %vm2171, %v3860, %v3856
        %v3862 = vlaneseq
        %v3863 = vshrl.u32 %v3862, 7
        %v3864 = vsub.s32 %v2173, %v3863
        %v3865 = vrot.slane %v3442, %v3864
        %v3866 = vsel %vm2178, %v3865, %v3861
        %v3867 = vlaneseq
        %v3868 = vshrl.u32 %v3867, 7
        %v3869 = vsub.s32 %v2180, %v3868
        %v3870 = vrot.slane %v3445, %v3869
        %v3871 = vsel %vm2185, %v3870, %v3866
        %v3872 = vlaneseq
        %v3873 = vshrl.u32 %v3872, 7
        %v3874 = vsub.s32 %v2187, %v3873
        %v3875 = vrot.slane %v3448, %v3874
        %v3876 = vsel %vm2192, %v3875, %v3871
        %v3877 = vlaneseq
        %v3878 = vshrl.u32 %v3877, 7
        %v3879 = vsub.s32 %v2194, %v3878
        %v3880 = vrot.slane %v3451, %v3879
        %v3881 = vsel %vm2199, %v3880, %v3876
        %v3882 = vlaneseq
        %v3883 = vshrl.u32 %v3882, 7
        %v3884 = vsub.s32 %v2201, %v3883
        %v3885 = vrot.slane %v3454, %v3884
        %v3886 = vsel %vm2206, %v3885, %v3881
        %v3887 = vlaneseq
        %v3888 = vshrl.u32 %v3887, 7
        %v3889 = vsub.s32 %v2208, %v3888
        %v3890 = vrot.slane %v3457, %v3889
        %v3891 = vsel %vm2213, %v3890, %v3886
        %v3892 = vlaneseq
        %v3893 = vshrl.u32 %v3892, 7
        %v3894 = vsub.s32 %v2215, %v3893
        %v3895 = vrot.slane %v3460, %v3894
        %v3896 = vsel %vm2220, %v3895, %v3891
        %v3897 = vlaneseq
        %v3898 = vshrl.u32 %v3897, 7
        %v3899 = vsub.s32 %v2222, %v3898
        %v3900 = vrot.slane %v3463, %v3899
        %v3901 = vsel %vm2227, %v3900, %v3896
        %v3902 = vlaneseq
        %v3903 = vshrl.u32 %v3902, 7
        %v3904 = vsub.s32 %v2229, %v3903
        %v3905 = vrot.slane %v3466, %v3904
        %v3906 = vsel %vm2234, %v3905, %v3901
        %v3907 = vlaneseq
        %v3908 = vshrl.u32 %v3907, 7
        %v3909 = vsub.s32 %v2236, %v3908
        %v3910 = vrot.slane %v3469, %v3909
        %v3911 = vsel %vm2241, %v3910, %v3906
        %v3912 = vlaneseq
        %v3913 = vshrl.u32 %v3912, 7
        %v3914 = vsub.s32 %v2243, %v3913
        %v3915 = vrot.slane %v3472, %v3914
        %v3916 = vsel %vm2248, %v3915, %v3911
        %v3917 = vlaneseq
        %v3918 = vshrl.u32 %v3917, 7
        %v3919 = vsub.s32 %v2250, %v3918
        %v3920 = vrot.slane %v3475, %v3919
        %v3921 = vsel %vm2255, %v3920, %v3916
        %v3922 = vlaneseq
        %v3923 = vshrl.u32 %v3922, 7
        %v3924 = vsub.s32 %v2147, %v3923
        %v3925 = vrot.slane %v3478, %v3924
        %v3926 = vlaneseq
        %v3927 = vshrl.u32 %v3926, 7
        %v3928 = vsub.s32 %v2152, %v3927
        %v3929 = vrot.slane %v3481, %v3928
        %v3930 = vsel %vm2157, %v3929, %v3925
        %v3931 = vlaneseq
        %v3932 = vshrl.u32 %v3931, 7
        %v3933 = vsub.s32 %v2159, %v3932
        %v3934 = vrot.slane %v3484, %v3933
        %v3935 = vsel %vm2164, %v3934, %v3930
        %v3936 = vlaneseq
        %v3937 = vshrl.u32 %v3936, 7
        %v3938 = vsub.s32 %v2166, %v3937
        %v3939 = vrot.slane %v3487, %v3938
        %v3940 = vsel %vm2171, %v3939, %v3935
        %v3941 = vlaneseq
        %v3942 = vshrl.u32 %v3941, 7
        %v3943 = vsub.s32 %v2173, %v3942
        %v3944 = vrot.slane %v3490, %v3943
        %v3945 = vsel %vm2178, %v3944, %v3940
        %v3946 = vlaneseq
        %v3947 = vshrl.u32 %v3946, 7
        %v3948 = vsub.s32 %v2180, %v3947
        %v3949 = vrot.slane %v3493, %v3948
        %v3950 = vsel %vm2185, %v3949, %v3945
        %v3951 = vlaneseq
        %v3952 = vshrl.u32 %v3951, 7
        %v3953 = vsub.s32 %v2187, %v3952
        %v3954 = vrot.slane %v3496, %v3953
        %v3955 = vsel %vm2192, %v3954, %v3950
        %v3956 = vlaneseq
        %v3957 = vshrl.u32 %v3956, 7
        %v3958 = vsub.s32 %v2194, %v3957
        %v3959 = vrot.slane %v3499, %v3958
        %v3960 = vsel %vm2199, %v3959, %v3955
        %v3961 = vlaneseq
        %v3962 = vshrl.u32 %v3961, 7
        %v3963 = vsub.s32 %v2201, %v3962
        %v3964 = vrot.slane %v3502, %v3963
        %v3965 = vsel %vm2206, %v3964, %v3960
        %v3966 = vlaneseq
        %v3967 = vshrl.u32 %v3966, 7
        %v3968 = vsub.s32 %v2208, %v3967
        %v3969 = vrot.slane %v3505, %v3968
        %v3970 = vsel %vm2213, %v3969, %v3965
        %v3971 = vlaneseq
        %v3972 = vshrl.u32 %v3971, 7
        %v3973 = vsub.s32 %v2215, %v3972
        %v3974 = vrot.slane %v3508, %v3973
        %v3975 = vsel %vm2220, %v3974, %v3970
        %v3976 = vlaneseq
        %v3977 = vshrl.u32 %v3976, 7
        %v3978 = vsub.s32 %v2222, %v3977
        %v3979 = vrot.slane %v3511, %v3978
        %v3980 = vsel %vm2227, %v3979, %v3975
        %v3981 = vlaneseq
        %v3982 = vshrl.u32 %v3981, 7
        %v3983 = vsub.s32 %v2229, %v3982
        %v3984 = vrot.slane %v3514, %v3983
        %v3985 = vsel %vm2234, %v3984, %v3980
        %v3986 = vlaneseq
        %v3987 = vshrl.u32 %v3986, 7
        %v3988 = vsub.s32 %v2236, %v3987
        %v3989 = vrot.slane %v3517, %v3988
        %v3990 = vsel %vm2241, %v3989, %v3985
        %v3991 = vlaneseq
        %v3992 = vshrl.u32 %v3991, 7
        %v3993 = vsub.s32 %v2243, %v3992
        %v3994 = vrot.slane %v3520, %v3993
        %v3995 = vsel %vm2248, %v3994, %v3990
        %v3996 = vlaneseq
        %v3997 = vshrl.u32 %v3996, 7
        %v3998 = vsub.s32 %v2250, %v3997
        %v3999 = vrot.slane %v3523, %v3998
        %v4000 = vsel %vm2255, %v3999, %v3995
        %v4001 = vlaneseq
        %v4002 = vshrl.u32 %v4001, 7
        %v4003 = vsub.s32 %v2147, %v4002
        %v4004 = vrot.slane %v3526, %v4003
        %v4005 = vlaneseq
        %v4006 = vshrl.u32 %v4005, 7
        %v4007 = vsub.s32 %v2152, %v4006
        %v4008 = vrot.slane %v3529, %v4007
        %v4009 = vsel %vm2157, %v4008, %v4004
        %v4010 = vlaneseq
        %v4011 = vshrl.u32 %v4010, 7
        %v4012 = vsub.s32 %v2159, %v4011
        %v4013 = vrot.slane %v3532, %v4012
        %v4014 = vsel %vm2164, %v4013, %v4009
        %v4015 = vlaneseq
        %v4016 = vshrl.u32 %v4015, 7
        %v4017 = vsub.s32 %v2166, %v4016
        %v4018 = vrot.slane %v3535, %v4017
        %v4019 = vsel %vm2171, %v4018, %v4014
        %v4020 = vlaneseq
        %v4021 = vshrl.u32 %v4020, 7
        %v4022 = vsub.s32 %v2173, %v4021
        %v4023 = vrot.slane %v3538, %v4022
        %v4024 = vsel %vm2178, %v4023, %v4019
        %v4025 = vlaneseq
        %v4026 = vshrl.u32 %v4025, 7
        %v4027 = vsub.s32 %v2180, %v4026
        %v4028 = vrot.slane %v3541, %v4027
        %v4029 = vsel %vm2185, %v4028, %v4024
        %v4030 = vlaneseq
        %v4031 = vshrl.u32 %v4030, 7
        %v4032 = vsub.s32 %v2187, %v4031
        %v4033 = vrot.slane %v3544, %v4032
        %v4034 = vsel %vm2192, %v4033, %v4029
        %v4035 = vlaneseq
        %v4036 = vshrl.u32 %v4035, 7
        %v4037 = vsub.s32 %v2194, %v4036
        %v4038 = vrot.slane %v3547, %v4037
        %v4039 = vsel %vm2199, %v4038, %v4034
        %v4040 = vlaneseq
        %v4041 = vshrl.u32 %v4040, 7
        %v4042 = vsub.s32 %v2201, %v4041
        %v4043 = vrot.slane %v3550, %v4042
        %v4044 = vsel %vm2206, %v4043, %v4039
        %v4045 = vlaneseq
        %v4046 = vshrl.u32 %v4045, 7
        %v4047 = vsub.s32 %v2208, %v4046
        %v4048 = vrot.slane %v3553, %v4047
        %v4049 = vsel %vm2213, %v4048, %v4044
        %v4050 = vlaneseq
        %v4051 = vshrl.u32 %v4050, 7
        %v4052 = vsub.s32 %v2215, %v4051
        %v4053 = vrot.slane %v3556, %v4052
        %v4054 = vsel %vm2220, %v4053, %v4049
        %v4055 = vlaneseq
        %v4056 = vshrl.u32 %v4055, 7
        %v4057 = vsub.s32 %v2222, %v4056
        %v4058 = vrot.slane %v3559, %v4057
        %v4059 = vsel %vm2227, %v4058, %v4054
        %v4060 = vlaneseq
        %v4061 = vshrl.u32 %v4060, 7
        %v4062 = vsub.s32 %v2229, %v4061
        %v4063 = vrot.slane %v3562, %v4062
        %v4064 = vsel %vm2234, %v4063, %v4059
        %v4065 = vlaneseq
        %v4066 = vshrl.u32 %v4065, 7
        %v4067 = vsub.s32 %v2236, %v4066
        %v4068 = vrot.slane %v3565, %v4067
        %v4069 = vsel %vm2241, %v4068, %v4064
        %v4070 = vlaneseq
        %v4071 = vshrl.u32 %v4070, 7
        %v4072 = vsub.s32 %v2243, %v4071
        %v4073 = vrot.slane %v3568, %v4072
        %v4074 = vsel %vm2248, %v4073, %v4069
        %v4075 = vlaneseq
        %v4076 = vshrl.u32 %v4075, 7
        %v4077 = vsub.s32 %v2250, %v4076
        %v4078 = vrot.slane %v3571, %v4077
        %v4079 = vsel %vm2255, %v4078, %v4074
        %v4080 = vlaneseq
        %v4081 = vshrl.u32 %v4080, 7
        %v4082 = vsub.s32 %v2147, %v4081
        %v4083 = vrot.slane %v3574, %v4082
        %v4084 = vlaneseq
        %v4085 = vshrl.u32 %v4084, 7
        %v4086 = vsub.s32 %v2152, %v4085
        %v4087 = vrot.slane %v3577, %v4086
        %v4088 = vsel %vm2157, %v4087, %v4083
        %v4089 = vlaneseq
        %v4090 = vshrl.u32 %v4089, 7
        %v4091 = vsub.s32 %v2159, %v4090
        %v4092 = vrot.slane %v3580, %v4091
        %v4093 = vsel %vm2164, %v4092, %v4088
        %v4094 = vlaneseq
        %v4095 = vshrl.u32 %v4094, 7
        %v4096 = vsub.s32 %v2166, %v4095
        %v4097 = vrot.slane %v3583, %v4096
        %v4098 = vsel %vm2171, %v4097, %v4093
        %v4099 = vlaneseq
        %v4100 = vshrl.u32 %v4099, 7
        %v4101 = vsub.s32 %v2173, %v4100
        %v4102 = vrot.slane %v3586, %v4101
        %v4103 = vsel %vm2178, %v4102, %v4098
        %v4104 = vlaneseq
        %v4105 = vshrl.u32 %v4104, 7
        %v4106 = vsub.s32 %v2180, %v4105
        %v4107 = vrot.slane %v3589, %v4106
        %v4108 = vsel %vm2185, %v4107, %v4103
        %v4109 = vlaneseq
        %v4110 = vshrl.u32 %v4109, 7
        %v4111 = vsub.s32 %v2187, %v4110
        %v4112 = vrot.slane %v3592, %v4111
        %v4113 = vsel %vm2192, %v4112, %v4108
        %v4114 = vlaneseq
        %v4115 = vshrl.u32 %v4114, 7
        %v4116 = vsub.s32 %v2194, %v4115
        %v4117 = vrot.slane %v3595, %v4116
        %v4118 = vsel %vm2199, %v4117, %v4113
        %v4119 = vlaneseq
        %v4120 = vshrl.u32 %v4119, 7
        %v4121 = vsub.s32 %v2201, %v4120
        %v4122 = vrot.slane %v3598, %v4121
        %v4123 = vsel %vm2206, %v4122, %v4118
        %v4124 = vlaneseq
        %v4125 = vshrl.u32 %v4124, 7
        %v4126 = vsub.s32 %v2208, %v4125
        %v4127 = vrot.slane %v3601, %v4126
        %v4128 = vsel %vm2213, %v4127, %v4123
        %v4129 = vlaneseq
        %v4130 = vshrl.u32 %v4129, 7
        %v4131 = vsub.s32 %v2215, %v4130
        %v4132 = vrot.slane %v3604, %v4131
        %v4133 = vsel %vm2220, %v4132, %v4128
        %v4134 = vlaneseq
        %v4135 = vshrl.u32 %v4134, 7
        %v4136 = vsub.s32 %v2222, %v4135
        %v4137 = vrot.slane %v3607, %v4136
        %v4138 = vsel %vm2227, %v4137, %v4133
        %v4139 = vlaneseq
        %v4140 = vshrl.u32 %v4139, 7
        %v4141 = vsub.s32 %v2229, %v4140
        %v4142 = vrot.slane %v3610, %v4141
        %v4143 = vsel %vm2234, %v4142, %v4138
        %v4144 = vlaneseq
        %v4145 = vshrl.u32 %v4144, 7
        %v4146 = vsub.s32 %v2236, %v4145
        %v4147 = vrot.slane %v3613, %v4146
        %v4148 = vsel %vm2241, %v4147, %v4143
        %v4149 = vlaneseq
        %v4150 = vshrl.u32 %v4149, 7
        %v4151 = vsub.s32 %v2243, %v4150
        %v4152 = vrot.slane %v3616, %v4151
        %v4153 = vsel %vm2248, %v4152, %v4148
        %v4154 = vlaneseq
        %v4155 = vshrl.u32 %v4154, 7
        %v4156 = vsub.s32 %v2250, %v4155
        %v4157 = vrot.slane %v3619, %v4156
        %v4158 = vsel %vm2255, %v4157, %v4153
        %v4159 = vlaneseq
        %v4160 = vshrl.u32 %v4159, 7
        %v4161 = vsub.s32 %v2147, %v4160
        %v4162 = vrot.slane %v3622, %v4161
        %v4163 = vlaneseq
        %v4164 = vshrl.u32 %v4163, 7
        %v4165 = vsub.s32 %v2152, %v4164
        %v4166 = vrot.slane %v3625, %v4165
        %v4167 = vsel %vm2157, %v4166, %v4162
        %v4168 = vlaneseq
        %v4169 = vshrl.u32 %v4168, 7
        %v4170 = vsub.s32 %v2159, %v4169
        %v4171 = vrot.slane %v3628, %v4170
        %v4172 = vsel %vm2164, %v4171, %v4167
        %v4173 = vlaneseq
        %v4174 = vshrl.u32 %v4173, 7
        %v4175 = vsub.s32 %v2166, %v4174
        %v4176 = vrot.slane %v3631, %v4175
        %v4177 = vsel %vm2171, %v4176, %v4172
        %v4178 = vlaneseq
        %v4179 = vshrl.u32 %v4178, 7
        %v4180 = vsub.s32 %v2173, %v4179
        %v4181 = vrot.slane %v3634, %v4180
        %v4182 = vsel %vm2178, %v4181, %v4177
        %v4183 = vlaneseq
        %v4184 = vshrl.u32 %v4183, 7
        %v4185 = vsub.s32 %v2180, %v4184
        %v4186 = vrot.slane %v3637, %v4185
        %v4187 = vsel %vm2185, %v4186, %v4182
        %v4188 = vlaneseq
        %v4189 = vshrl.u32 %v4188, 7
        %v4190 = vsub.s32 %v2187, %v4189
        %v4191 = vrot.slane %v3640, %v4190
        %v4192 = vsel %vm2192, %v4191, %v4187
        %v4193 = vlaneseq
        %v4194 = vshrl.u32 %v4193, 7
        %v4195 = vsub.s32 %v2194, %v4194
        %v4196 = vrot.slane %v3643, %v4195
        %v4197 = vsel %vm2199, %v4196, %v4192
        %v4198 = vlaneseq
        %v4199 = vshrl.u32 %v4198, 7
        %v4200 = vsub.s32 %v2201, %v4199
        %v4201 = vrot.slane %v3646, %v4200
        %v4202 = vsel %vm2206, %v4201, %v4197
        %v4203 = vlaneseq
        %v4204 = vshrl.u32 %v4203, 7
        %v4205 = vsub.s32 %v2208, %v4204
        %v4206 = vrot.slane %v3649, %v4205
        %v4207 = vsel %vm2213, %v4206, %v4202
        %v4208 = vlaneseq
        %v4209 = vshrl.u32 %v4208, 7
        %v4210 = vsub.s32 %v2215, %v4209
        %v4211 = vrot.slane %v3652, %v4210
        %v4212 = vsel %vm2220, %v4211, %v4207
        %v4213 = vlaneseq
        %v4214 = vshrl.u32 %v4213, 7
        %v4215 = vsub.s32 %v2222, %v4214
        %v4216 = vrot.slane %v3655, %v4215
        %v4217 = vsel %vm2227, %v4216, %v4212
        %v4218 = vlaneseq
        %v4219 = vshrl.u32 %v4218, 7
        %v4220 = vsub.s32 %v2229, %v4219
        %v4221 = vrot.slane %v3658, %v4220
        %v4222 = vsel %vm2234, %v4221, %v4217
        %v4223 = vlaneseq
        %v4224 = vshrl.u32 %v4223, 7
        %v4225 = vsub.s32 %v2236, %v4224
        %v4226 = vrot.slane %v3661, %v4225
        %v4227 = vsel %vm2241, %v4226, %v4222
        %v4228 = vlaneseq
        %v4229 = vshrl.u32 %v4228, 7
        %v4230 = vsub.s32 %v2243, %v4229
        %v4231 = vrot.slane %v3664, %v4230
        %v4232 = vsel %vm2248, %v4231, %v4227
        %v4233 = vlaneseq
        %v4234 = vshrl.u32 %v4233, 7
        %v4235 = vsub.s32 %v2250, %v4234
        %v4236 = vrot.slane %v3667, %v4235
        %v4237 = vsel %vm2255, %v4236, %v4232
        %v4238 = vlaneseq
        %v4239 = vshrl.u32 %v4238, 7
        %v4240 = vsub.s32 %v2147, %v4239
        %v4241 = vrot.slane %v3670, %v4240
        %v4242 = vlaneseq
        %v4243 = vshrl.u32 %v4242, 7
        %v4244 = vsub.s32 %v2152, %v4243
        %v4245 = vrot.slane %v3673, %v4244
        %v4246 = vsel %vm2157, %v4245, %v4241
        %v4247 = vlaneseq
        %v4248 = vshrl.u32 %v4247, 7
        %v4249 = vsub.s32 %v2159, %v4248
        %v4250 = vrot.slane %v3676, %v4249
        %v4251 = vsel %vm2164, %v4250, %v4246
        %v4252 = vlaneseq
        %v4253 = vshrl.u32 %v4252, 7
        %v4254 = vsub.s32 %v2166, %v4253
        %v4255 = vrot.slane %v3679, %v4254
        %v4256 = vsel %vm2171, %v4255, %v4251
        %v4257 = vlaneseq
        %v4258 = vshrl.u32 %v4257, 7
        %v4259 = vsub.s32 %v2173, %v4258
        %v4260 = vrot.slane %v3682, %v4259
        %v4261 = vsel %vm2178, %v4260, %v4256
        %v4262 = vlaneseq
        %v4263 = vshrl.u32 %v4262, 7
        %v4264 = vsub.s32 %v2180, %v4263
        %v4265 = vrot.slane %v3685, %v4264
        %v4266 = vsel %vm2185, %v4265, %v4261
        %v4267 = vlaneseq
        %v4268 = vshrl.u32 %v4267, 7
        %v4269 = vsub.s32 %v2187, %v4268
        %v4270 = vrot.slane %v3688, %v4269
        %v4271 = vsel %vm2192, %v4270, %v4266
        %v4272 = vlaneseq
        %v4273 = vshrl.u32 %v4272, 7
        %v4274 = vsub.s32 %v2194, %v4273
        %v4275 = vrot.slane %v3691, %v4274
        %v4276 = vsel %vm2199, %v4275, %v4271
        %v4277 = vlaneseq
        %v4278 = vshrl.u32 %v4277, 7
        %v4279 = vsub.s32 %v2201, %v4278
        %v4280 = vrot.slane %v3694, %v4279
        %v4281 = vsel %vm2206, %v4280, %v4276
        %v4282 = vlaneseq
        %v4283 = vshrl.u32 %v4282, 7
        %v4284 = vsub.s32 %v2208, %v4283
        %v4285 = vrot.slane %v3697, %v4284
        %v4286 = vsel %vm2213, %v4285, %v4281
        %v4287 = vlaneseq
        %v4288 = vshrl.u32 %v4287, 7
        %v4289 = vsub.s32 %v2215, %v4288
        %v4290 = vrot.slane %v3700, %v4289
        %v4291 = vsel %vm2220, %v4290, %v4286
        %v4292 = vlaneseq
        %v4293 = vshrl.u32 %v4292, 7
        %v4294 = vsub.s32 %v2222, %v4293
        %v4295 = vrot.slane %v3703, %v4294
        %v4296 = vsel %vm2227, %v4295, %v4291
        %v4297 = vlaneseq
        %v4298 = vshrl.u32 %v4297, 7
        %v4299 = vsub.s32 %v2229, %v4298
        %v4300 = vrot.slane %v3706, %v4299
        %v4301 = vsel %vm2234, %v4300, %v4296
        %v4302 = vlaneseq
        %v4303 = vshrl.u32 %v4302, 7
        %v4304 = vsub.s32 %v2236, %v4303
        %v4305 = vrot.slane %v3709, %v4304
        %v4306 = vsel %vm2241, %v4305, %v4301
        %v4307 = vlaneseq
        %v4308 = vshrl.u32 %v4307, 7
        %v4309 = vsub.s32 %v2243, %v4308
        %v4310 = vrot.slane %v3712, %v4309
        %v4311 = vsel %vm2248, %v4310, %v4306
        %v4312 = vlaneseq
        %v4313 = vshrl.u32 %v4312, 7
        %v4314 = vsub.s32 %v2250, %v4313
        %v4315 = vrot.slane %v3715, %v4314
        %v4316 = vsel %vm2255, %v4315, %v4311
        %v4317 = vlaneseq
        %v4318 = vshrl.u32 %v4317, 7
        %v4319 = vsub.s32 %v2147, %v4318
        %v4320 = vrot.slane %v3718, %v4319
        %v4321 = vlaneseq
        %v4322 = vshrl.u32 %v4321, 7
        %v4323 = vsub.s32 %v2152, %v4322
        %v4324 = vrot.slane %v3721, %v4323
        %v4325 = vsel %vm2157, %v4324, %v4320
        %v4326 = vlaneseq
        %v4327 = vshrl.u32 %v4326, 7
        %v4328 = vsub.s32 %v2159, %v4327
        %v4329 = vrot.slane %v3724, %v4328
        %v4330 = vsel %vm2164, %v4329, %v4325
        %v4331 = vlaneseq
        %v4332 = vshrl.u32 %v4331, 7
        %v4333 = vsub.s32 %v2166, %v4332
        %v4334 = vrot.slane %v3727, %v4333
        %v4335 = vsel %vm2171, %v4334, %v4330
        %v4336 = vlaneseq
        %v4337 = vshrl.u32 %v4336, 7
        %v4338 = vsub.s32 %v2173, %v4337
        %v4339 = vrot.slane %v3730, %v4338
        %v4340 = vsel %vm2178, %v4339, %v4335
        %v4341 = vlaneseq
        %v4342 = vshrl.u32 %v4341, 7
        %v4343 = vsub.s32 %v2180, %v4342
        %v4344 = vrot.slane %v3733, %v4343
        %v4345 = vsel %vm2185, %v4344, %v4340
        %v4346 = vlaneseq
        %v4347 = vshrl.u32 %v4346, 7
        %v4348 = vsub.s32 %v2187, %v4347
        %v4349 = vrot.slane %v3736, %v4348
        %v4350 = vsel %vm2192, %v4349, %v4345
        %v4351 = vlaneseq
        %v4352 = vshrl.u32 %v4351, 7
        %v4353 = vsub.s32 %v2194, %v4352
        %v4354 = vrot.slane %v3739, %v4353
        %v4355 = vsel %vm2199, %v4354, %v4350
        %v4356 = vlaneseq
        %v4357 = vshrl.u32 %v4356, 7
        %v4358 = vsub.s32 %v2201, %v4357
        %v4359 = vrot.slane %v3742, %v4358
        %v4360 = vsel %vm2206, %v4359, %v4355
        %v4361 = vlaneseq
        %v4362 = vshrl.u32 %v4361, 7
        %v4363 = vsub.s32 %v2208, %v4362
        %v4364 = vrot.slane %v3745, %v4363
        %v4365 = vsel %vm2213, %v4364, %v4360
        %v4366 = vlaneseq
        %v4367 = vshrl.u32 %v4366, 7
        %v4368 = vsub.s32 %v2215, %v4367
        %v4369 = vrot.slane %v3748, %v4368
        %v4370 = vsel %vm2220, %v4369, %v4365
        %v4371 = vlaneseq
        %v4372 = vshrl.u32 %v4371, 7
        %v4373 = vsub.s32 %v2222, %v4372
        %v4374 = vrot.slane %v3751, %v4373
        %v4375 = vsel %vm2227, %v4374, %v4370
        %v4376 = vlaneseq
        %v4377 = vshrl.u32 %v4376, 7
        %v4378 = vsub.s32 %v2229, %v4377
        %v4379 = vrot.slane %v3754, %v4378
        %v4380 = vsel %vm2234, %v4379, %v4375
        %v4381 = vlaneseq
        %v4382 = vshrl.u32 %v4381, 7
        %v4383 = vsub.s32 %v2236, %v4382
        %v4384 = vrot.slane %v3757, %v4383
        %v4385 = vsel %vm2241, %v4384, %v4380
        %v4386 = vlaneseq
        %v4387 = vshrl.u32 %v4386, 7
        %v4388 = vsub.s32 %v2243, %v4387
        %v4389 = vrot.slane %v3760, %v4388
        %v4390 = vsel %vm2248, %v4389, %v4385
        %v4391 = vlaneseq
        %v4392 = vshrl.u32 %v4391, 7
        %v4393 = vsub.s32 %v2250, %v4392
        %v4394 = vrot.slane %v3763, %v4393
        %v4395 = vsel %vm2255, %v4394, %v4390
        %v4396 = vsel %vm2810, %v3921, %v3842
        %v4397 = vsel %vm2812, %v4000, %v4396
        %v4398 = vsel %vm2814, %v4079, %v4397
        %v4399 = vsel %vm2816, %v4158, %v4398
        %v4400 = vsel %vm2818, %v4237, %v4399
        %v4401 = vsel %vm2820, %v4316, %v4400
        %v4402 = vsel %vm2822, %v4395, %v4401
        %4404 = vadd.xlane.f32.xlu0 %v4402
        %v4405 = vpop.xlane.xlu0 %4404
        %v4407 = vlaneseq
        %v4408 = vshrl.u32 %v4407, 7
        %v4409 = vsub.s32 0, %v4408
        %v4410 = vrot.slane %v4405, %v4409
        %v4411 = vlaneseq
        %v4412 = vshrl.u32 %v4411, 7
        %v4413 = vsub.s32 1, %v4412
        %v4414 = vrot.slane %v4405, %v4413
        %v4415 = vlaneseq
        %v4416 = vshrl.u32 %v4415, 7
        %v4417 = vsub.s32 2, %v4416
        %v4418 = vrot.slane %v4405, %v4417
        %v4419 = vlaneseq
        %v4420 = vshrl.u32 %v4419, 7
        %v4421 = vsub.s32 3, %v4420
        %v4422 = vrot.slane %v4405, %v4421
        %v4423 = vlaneseq
        %v4424 = vshrl.u32 %v4423, 7
        %v4425 = vsub.s32 4, %v4424
        %v4426 = vrot.slane %v4405, %v4425
        %v4427 = vlaneseq
        %v4428 = vshrl.u32 %v4427, 7
        %v4429 = vsub.s32 5, %v4428
        %v4430 = vrot.slane %v4405, %v4429
        %v4431 = vlaneseq
        %v4432 = vshrl.u32 %v4431, 7
        %v4433 = vsub.s32 6, %v4432
        %v4434 = vrot.slane %v4405, %v4433
        %v4435 = vlaneseq
        %v4436 = vshrl.u32 %v4435, 7
        %v4437 = vsub.s32 7, %v4436
        %v4438 = vrot.slane %v4405, %v4437
        %v4447 = vrcp.pop %v4410
        %v4448 = vmul.f32 %v2997, %v4447
        %v4449 = vmul.f32 %v2999, %v4447
        %v4450 = vmul.f32 %v3001, %v4447
        %v4451 = vmul.f32 %v3003, %v4447
        %v4452 = vmul.f32 %v3005, %v4447
        %v4453 = vmul.f32 %v3007, %v4447
        %v4454 = vmul.f32 %v3009, %v4447
        %v4455 = vmul.f32 %v3011, %v4447
        %v4456 = vmul.f32 %v3013, %v4447
        %v4457 = vmul.f32 %v3015, %v4447
        %v4458 = vmul.f32 %v3017, %v4447
        %v4459 = vmul.f32 %v3019, %v4447
        %v4460 = vmul.f32 %v3021, %v4447
        %v4461 = vmul.f32 %v3023, %v4447
        %v4462 = vmul.f32 %v3025, %v4447
        %v4463 = vmul.f32 %v3027, %v4447
        %v4464 = vrcp.pop %v4414
        %v4465 = vmul.f32 %v3029, %v4464
        %v4466 = vmul.f32 %v3031, %v4464
        %v4467 = vmul.f32 %v3033, %v4464
        %v4468 = vmul.f32 %v3035, %v4464
        %v4469 = vmul.f32 %v3037, %v4464
        %v4470 = vmul.f32 %v3039, %v4464
        %v4471 = vmul.f32 %v3041, %v4464
        %v4472 = vmul.f32 %v3043, %v4464
        %v4473 = vmul.f32 %v3045, %v4464
        %v4474 = vmul.f32 %v3047, %v4464
        %v4475 = vmul.f32 %v3049, %v4464
        %v4476 = vmul.f32 %v3051, %v4464
        %v4477 = vmul.f32 %v3053, %v4464
        %v4478 = vmul.f32 %v3055, %v4464
        %v4479 = vmul.f32 %v3057, %v4464
        %v4480 = vmul.f32 %v3059, %v4464
        %v4481 = vrcp.pop %v4418
        %v4482 = vmul.f32 %v3061, %v4481
        %v4483 = vmul.f32 %v3063, %v4481
        %v4484 = vmul.f32 %v3065, %v4481
        %v4485 = vmul.f32 %v3067, %v4481
        %v4486 = vmul.f32 %v3069, %v4481
        %v4487 = vmul.f32 %v3071, %v4481
        %v4488 = vmul.f32 %v3073, %v4481
        %v4489 = vmul.f32 %v3075, %v4481
        %v4490 = vmul.f32 %v3077, %v4481
        %v4491 = vmul.f32 %v3079, %v4481
        %v4492 = vmul.f32 %v3081, %v4481
        %v4493 = vmul.f32 %v3083, %v4481
        %v4494 = vmul.f32 %v3085, %v4481
        %v4495 = vmul.f32 %v3087, %v4481
        %v4496 = vmul.f32 %v3089, %v4481
        %v4497 = vmul.f32 %v3091, %v4481
        %v4498 = vrcp.pop %v4422
        %v4499 = vmul.f32 %v3093, %v4498
        %v4500 = vmul.f32 %v3095, %v4498
        %v4501 = vmul.f32 %v3097, %v4498
        %v4502 = vmul.f32 %v3099, %v4498
        %v4503 = vmul.f32 %v3101, %v4498
        %v4504 = vmul.f32 %v3103, %v4498
        %v4505 = vmul.f32 %v3105, %v4498
        %v4506 = vmul.f32 %v3107, %v4498
        %v4507 = vmul.f32 %v3109, %v4498
        %v4508 = vmul.f32 %v3111, %v4498
        %v4509 = vmul.f32 %v3113, %v4498
        %v4510 = vmul.f32 %v3115, %v4498
        %v4511 = vmul.f32 %v3117, %v4498
        %v4512 = vmul.f32 %v3119, %v4498
        %v4513 = vmul.f32 %v3121, %v4498
        %v4514 = vmul.f32 %v3123, %v4498
        %v4515 = vrcp.pop %v4426
        %v4516 = vmul.f32 %v3125, %v4515
        %v4517 = vmul.f32 %v3127, %v4515
        %v4518 = vmul.f32 %v3129, %v4515
        %v4519 = vmul.f32 %v3131, %v4515
        %v4520 = vmul.f32 %v3133, %v4515
        %v4521 = vmul.f32 %v3135, %v4515
        %v4522 = vmul.f32 %v3137, %v4515
        %v4523 = vmul.f32 %v3139, %v4515
        %v4524 = vmul.f32 %v3141, %v4515
        %v4525 = vmul.f32 %v3143, %v4515
        %v4526 = vmul.f32 %v3145, %v4515
        %v4527 = vmul.f32 %v3147, %v4515
        %v4528 = vmul.f32 %v3149, %v4515
        %v4529 = vmul.f32 %v3151, %v4515
        %v4530 = vmul.f32 %v3153, %v4515
        %v4531 = vmul.f32 %v3155, %v4515
        %v4532 = vrcp.pop %v4430
        %v4533 = vmul.f32 %v3157, %v4532
        %v4534 = vmul.f32 %v3159, %v4532
        %v4535 = vmul.f32 %v3161, %v4532
        %v4536 = vmul.f32 %v3163, %v4532
        %v4537 = vmul.f32 %v3165, %v4532
        %v4538 = vmul.f32 %v3167, %v4532
        %v4539 = vmul.f32 %v3169, %v4532
        %v4540 = vmul.f32 %v3171, %v4532
        %v4541 = vmul.f32 %v3173, %v4532
        %v4542 = vmul.f32 %v3175, %v4532
        %v4543 = vmul.f32 %v3177, %v4532
        %v4544 = vmul.f32 %v3179, %v4532
        %v4545 = vmul.f32 %v3181, %v4532
        %v4546 = vmul.f32 %v3183, %v4532
        %v4547 = vmul.f32 %v3185, %v4532
        %v4548 = vmul.f32 %v3187, %v4532
        %v4549 = vrcp.pop %v4434
        %v4550 = vmul.f32 %v3189, %v4549
        %v4551 = vmul.f32 %v3191, %v4549
        %v4552 = vmul.f32 %v3193, %v4549
        %v4553 = vmul.f32 %v3195, %v4549
        %v4554 = vmul.f32 %v3197, %v4549
        %v4555 = vmul.f32 %v3199, %v4549
        %v4556 = vmul.f32 %v3201, %v4549
        %v4557 = vmul.f32 %v3203, %v4549
        %v4558 = vmul.f32 %v3205, %v4549
        %v4559 = vmul.f32 %v3207, %v4549
        %v4560 = vmul.f32 %v3209, %v4549
        %v4561 = vmul.f32 %v3211, %v4549
        %v4562 = vmul.f32 %v3213, %v4549
        %v4563 = vmul.f32 %v3215, %v4549
        %v4564 = vmul.f32 %v3217, %v4549
        %v4565 = vmul.f32 %v3219, %v4549
        %v4566 = vrcp.pop %v4438
        %v4567 = vmul.f32 %v3221, %v4566
        %v4568 = vmul.f32 %v3223, %v4566
        %v4569 = vmul.f32 %v3225, %v4566
        %v4570 = vmul.f32 %v3227, %v4566
        %v4571 = vmul.f32 %v3229, %v4566
        %v4572 = vmul.f32 %v3231, %v4566
        %v4573 = vmul.f32 %v3233, %v4566
        %v4574 = vmul.f32 %v3235, %v4566
        %v4575 = vmul.f32 %v3237, %v4566
        %v4576 = vmul.f32 %v3239, %v4566
        %v4577 = vmul.f32 %v3241, %v4566
        %v4578 = vmul.f32 %v3243, %v4566
        %v4579 = vmul.f32 %v3245, %v4566
        %v4580 = vmul.f32 %v3247, %v4566
        %v4581 = vmul.f32 %v3249, %v4566
        %v4582 = vmul.f32 %v3251, %v4566
        %4711 = vset.pattern.permute.xlu0 0
        %4712 = vperm.xlu0 %4711, %v4448
        %v4713 = vpop.permute.xlu0 %4712
        %4714 = vset.pattern.permute.xlu0 0
        %4715 = vperm.xlu0 %4714, %v4449
        %v4716 = vpop.permute.xlu0 %4715
        %4717 = vset.pattern.permute.xlu0 0
        %4718 = vperm.xlu0 %4717, %v4450
        %v4719 = vpop.permute.xlu0 %4718
        %4720 = vset.pattern.permute.xlu0 0
        %4721 = vperm.xlu0 %4720, %v4451
        %v4722 = vpop.permute.xlu0 %4721
        %4723 = vset.pattern.permute.xlu0 0
        %4724 = vperm.xlu0 %4723, %v4452
        %v4725 = vpop.permute.xlu0 %4724
        %4726 = vset.pattern.permute.xlu0 0
        %4727 = vperm.xlu0 %4726, %v4453
        %v4728 = vpop.permute.xlu0 %4727
        %4729 = vset.pattern.permute.xlu0 0
        %4730 = vperm.xlu0 %4729, %v4454
        %v4731 = vpop.permute.xlu0 %4730
        %4732 = vset.pattern.permute.xlu0 0
        %4733 = vperm.xlu0 %4732, %v4455
        %v4734 = vpop.permute.xlu0 %4733
        %4735 = vset.pattern.permute.xlu0 0
        %4736 = vperm.xlu0 %4735, %v4456
        %v4737 = vpop.permute.xlu0 %4736
        %4738 = vset.pattern.permute.xlu0 0
        %4739 = vperm.xlu0 %4738, %v4457
        %v4740 = vpop.permute.xlu0 %4739
        %4741 = vset.pattern.permute.xlu0 0
        %4742 = vperm.xlu0 %4741, %v4458
        %v4743 = vpop.permute.xlu0 %4742
        %4744 = vset.pattern.permute.xlu0 0
        %4745 = vperm.xlu0 %4744, %v4459
        %v4746 = vpop.permute.xlu0 %4745
        %4747 = vset.pattern.permute.xlu0 0
        %4748 = vperm.xlu0 %4747, %v4460
        %v4749 = vpop.permute.xlu0 %4748
        %4750 = vset.pattern.permute.xlu0 0
        %4751 = vperm.xlu0 %4750, %v4461
        %v4752 = vpop.permute.xlu0 %4751
        %4753 = vset.pattern.permute.xlu0 0
        %4754 = vperm.xlu0 %4753, %v4462
        %v4755 = vpop.permute.xlu0 %4754
        %4756 = vset.pattern.permute.xlu0 0
        %4757 = vperm.xlu0 %4756, %v4463
        %v4758 = vpop.permute.xlu0 %4757
        %4759 = vset.pattern.permute.xlu0 0
        %4760 = vperm.xlu0 %4759, %v4465
        %v4761 = vpop.permute.xlu0 %4760
        %4762 = vset.pattern.permute.xlu0 0
        %4763 = vperm.xlu0 %4762, %v4466
        %v4764 = vpop.permute.xlu0 %4763
        %4765 = vset.pattern.permute.xlu0 0
        %4766 = vperm.xlu0 %4765, %v4467
        %v4767 = vpop.permute.xlu0 %4766
        %4768 = vset.pattern.permute.xlu0 0
        %4769 = vperm.xlu0 %4768, %v4468
        %v4770 = vpop.permute.xlu0 %4769
        %4771 = vset.pattern.permute.xlu0 0
        %4772 = vperm.xlu0 %4771, %v4469
        %v4773 = vpop.permute.xlu0 %4772
        %4774 = vset.pattern.permute.xlu0 0
        %4775 = vperm.xlu0 %4774, %v4470
        %v4776 = vpop.permute.xlu0 %4775
        %4777 = vset.pattern.permute.xlu0 0
        %4778 = vperm.xlu0 %4777, %v4471
        %v4779 = vpop.permute.xlu0 %4778
        %4780 = vset.pattern.permute.xlu0 0
        %4781 = vperm.xlu0 %4780, %v4472
        %v4782 = vpop.permute.xlu0 %4781
        %4783 = vset.pattern.permute.xlu0 0
        %4784 = vperm.xlu0 %4783, %v4473
        %v4785 = vpop.permute.xlu0 %4784
        %4786 = vset.pattern.permute.xlu0 0
        %4787 = vperm.xlu0 %4786, %v4474
        %v4788 = vpop.permute.xlu0 %4787
        %4789 = vset.pattern.permute.xlu0 0
        %4790 = vperm.xlu0 %4789, %v4475
        %v4791 = vpop.permute.xlu0 %4790
        %4792 = vset.pattern.permute.xlu0 0
        %4793 = vperm.xlu0 %4792, %v4476
        %v4794 = vpop.permute.xlu0 %4793
        %4795 = vset.pattern.permute.xlu0 0
        %4796 = vperm.xlu0 %4795, %v4477
        %v4797 = vpop.permute.xlu0 %4796
        %4798 = vset.pattern.permute.xlu0 0
        %4799 = vperm.xlu0 %4798, %v4478
        %v4800 = vpop.permute.xlu0 %4799
        %4801 = vset.pattern.permute.xlu0 0
        %4802 = vperm.xlu0 %4801, %v4479
        %v4803 = vpop.permute.xlu0 %4802
        %4804 = vset.pattern.permute.xlu0 0
        %4805 = vperm.xlu0 %4804, %v4480
        %v4806 = vpop.permute.xlu0 %4805
        %4807 = vset.pattern.permute.xlu0 0
        %4808 = vperm.xlu0 %4807, %v4482
        %v4809 = vpop.permute.xlu0 %4808
        %4810 = vset.pattern.permute.xlu0 0
        %4811 = vperm.xlu0 %4810, %v4483
        %v4812 = vpop.permute.xlu0 %4811
        %4813 = vset.pattern.permute.xlu0 0
        %4814 = vperm.xlu0 %4813, %v4484
        %v4815 = vpop.permute.xlu0 %4814
        %4816 = vset.pattern.permute.xlu0 0
        %4817 = vperm.xlu0 %4816, %v4485
        %v4818 = vpop.permute.xlu0 %4817
        %4819 = vset.pattern.permute.xlu0 0
        %4820 = vperm.xlu0 %4819, %v4486
        %v4821 = vpop.permute.xlu0 %4820
        %4822 = vset.pattern.permute.xlu0 0
        %4823 = vperm.xlu0 %4822, %v4487
        %v4824 = vpop.permute.xlu0 %4823
        %4825 = vset.pattern.permute.xlu0 0
        %4826 = vperm.xlu0 %4825, %v4488
        %v4827 = vpop.permute.xlu0 %4826
        %4828 = vset.pattern.permute.xlu0 0
        %4829 = vperm.xlu0 %4828, %v4489
        %v4830 = vpop.permute.xlu0 %4829
        %4831 = vset.pattern.permute.xlu0 0
        %4832 = vperm.xlu0 %4831, %v4490
        %v4833 = vpop.permute.xlu0 %4832
        %4834 = vset.pattern.permute.xlu0 0
        %4835 = vperm.xlu0 %4834, %v4491
        %v4836 = vpop.permute.xlu0 %4835
        %4837 = vset.pattern.permute.xlu0 0
        %4838 = vperm.xlu0 %4837, %v4492
        %v4839 = vpop.permute.xlu0 %4838
        %4840 = vset.pattern.permute.xlu0 0
        %4841 = vperm.xlu0 %4840, %v4493
        %v4842 = vpop.permute.xlu0 %4841
        %4843 = vset.pattern.permute.xlu0 0
        %4844 = vperm.xlu0 %4843, %v4494
        %v4845 = vpop.permute.xlu0 %4844
        %4846 = vset.pattern.permute.xlu0 0
        %4847 = vperm.xlu0 %4846, %v4495
        %v4848 = vpop.permute.xlu0 %4847
        %4849 = vset.pattern.permute.xlu0 0
        %4850 = vperm.xlu0 %4849, %v4496
        %v4851 = vpop.permute.xlu0 %4850
        %4852 = vset.pattern.permute.xlu0 0
        %4853 = vperm.xlu0 %4852, %v4497
        %v4854 = vpop.permute.xlu0 %4853
        %4855 = vset.pattern.permute.xlu0 0
        %4856 = vperm.xlu0 %4855, %v4499
        %v4857 = vpop.permute.xlu0 %4856
        %4858 = vset.pattern.permute.xlu0 0
        %4859 = vperm.xlu0 %4858, %v4500
        %v4860 = vpop.permute.xlu0 %4859
        %4861 = vset.pattern.permute.xlu0 0
        %4862 = vperm.xlu0 %4861, %v4501
        %v4863 = vpop.permute.xlu0 %4862
        %4864 = vset.pattern.permute.xlu0 0
        %4865 = vperm.xlu0 %4864, %v4502
        %v4866 = vpop.permute.xlu0 %4865
        %4867 = vset.pattern.permute.xlu0 0
        %4868 = vperm.xlu0 %4867, %v4503
        %v4869 = vpop.permute.xlu0 %4868
        %4870 = vset.pattern.permute.xlu0 0
        %4871 = vperm.xlu0 %4870, %v4504
        %v4872 = vpop.permute.xlu0 %4871
        %4873 = vset.pattern.permute.xlu0 0
        %4874 = vperm.xlu0 %4873, %v4505
        %v4875 = vpop.permute.xlu0 %4874
        %4876 = vset.pattern.permute.xlu0 0
        %4877 = vperm.xlu0 %4876, %v4506
        %v4878 = vpop.permute.xlu0 %4877
        %4879 = vset.pattern.permute.xlu0 0
        %4880 = vperm.xlu0 %4879, %v4507
        %v4881 = vpop.permute.xlu0 %4880
        %4882 = vset.pattern.permute.xlu0 0
        %4883 = vperm.xlu0 %4882, %v4508
        %v4884 = vpop.permute.xlu0 %4883
        %4885 = vset.pattern.permute.xlu0 0
        %4886 = vperm.xlu0 %4885, %v4509
        %v4887 = vpop.permute.xlu0 %4886
        %4888 = vset.pattern.permute.xlu0 0
        %4889 = vperm.xlu0 %4888, %v4510
        %v4890 = vpop.permute.xlu0 %4889
        %4891 = vset.pattern.permute.xlu0 0
        %4892 = vperm.xlu0 %4891, %v4511
        %v4893 = vpop.permute.xlu0 %4892
        %4894 = vset.pattern.permute.xlu0 0
        %4895 = vperm.xlu0 %4894, %v4512
        %v4896 = vpop.permute.xlu0 %4895
        %4897 = vset.pattern.permute.xlu0 0
        %4898 = vperm.xlu0 %4897, %v4513
        %v4899 = vpop.permute.xlu0 %4898
        %4900 = vset.pattern.permute.xlu0 0
        %4901 = vperm.xlu0 %4900, %v4514
        %v4902 = vpop.permute.xlu0 %4901
        %4903 = vset.pattern.permute.xlu0 0
        %4904 = vperm.xlu0 %4903, %v4516
        %v4905 = vpop.permute.xlu0 %4904
        %4906 = vset.pattern.permute.xlu0 0
        %4907 = vperm.xlu0 %4906, %v4517
        %v4908 = vpop.permute.xlu0 %4907
        %4909 = vset.pattern.permute.xlu0 0
        %4910 = vperm.xlu0 %4909, %v4518
        %v4911 = vpop.permute.xlu0 %4910
        %4912 = vset.pattern.permute.xlu0 0
        %4913 = vperm.xlu0 %4912, %v4519
        %v4914 = vpop.permute.xlu0 %4913
        %4915 = vset.pattern.permute.xlu0 0
        %4916 = vperm.xlu0 %4915, %v4520
        %v4917 = vpop.permute.xlu0 %4916
        %4918 = vset.pattern.permute.xlu0 0
        %4919 = vperm.xlu0 %4918, %v4521
        %v4920 = vpop.permute.xlu0 %4919
        %4921 = vset.pattern.permute.xlu0 0
        %4922 = vperm.xlu0 %4921, %v4522
        %v4923 = vpop.permute.xlu0 %4922
        %4924 = vset.pattern.permute.xlu0 0
        %4925 = vperm.xlu0 %4924, %v4523
        %v4926 = vpop.permute.xlu0 %4925
        %4927 = vset.pattern.permute.xlu0 0
        %4928 = vperm.xlu0 %4927, %v4524
        %v4929 = vpop.permute.xlu0 %4928
        %4930 = vset.pattern.permute.xlu0 0
        %4931 = vperm.xlu0 %4930, %v4525
        %v4932 = vpop.permute.xlu0 %4931
        %4933 = vset.pattern.permute.xlu0 0
        %4934 = vperm.xlu0 %4933, %v4526
        %v4935 = vpop.permute.xlu0 %4934
        %4936 = vset.pattern.permute.xlu0 0
        %4937 = vperm.xlu0 %4936, %v4527
        %v4938 = vpop.permute.xlu0 %4937
        %4939 = vset.pattern.permute.xlu0 0
        %4940 = vperm.xlu0 %4939, %v4528
        %v4941 = vpop.permute.xlu0 %4940
        %4942 = vset.pattern.permute.xlu0 0
        %4943 = vperm.xlu0 %4942, %v4529
        %v4944 = vpop.permute.xlu0 %4943
        %4945 = vset.pattern.permute.xlu0 0
        %4946 = vperm.xlu0 %4945, %v4530
        %v4947 = vpop.permute.xlu0 %4946
        %4948 = vset.pattern.permute.xlu0 0
        %4949 = vperm.xlu0 %4948, %v4531
        %v4950 = vpop.permute.xlu0 %4949
        %4951 = vset.pattern.permute.xlu0 0
        %4952 = vperm.xlu0 %4951, %v4533
        %v4953 = vpop.permute.xlu0 %4952
        %4954 = vset.pattern.permute.xlu0 0
        %4955 = vperm.xlu0 %4954, %v4534
        %v4956 = vpop.permute.xlu0 %4955
        %4957 = vset.pattern.permute.xlu0 0
        %4958 = vperm.xlu0 %4957, %v4535
        %v4959 = vpop.permute.xlu0 %4958
        %4960 = vset.pattern.permute.xlu0 0
        %4961 = vperm.xlu0 %4960, %v4536
        %v4962 = vpop.permute.xlu0 %4961
        %4963 = vset.pattern.permute.xlu0 0
        %4964 = vperm.xlu0 %4963, %v4537
        %v4965 = vpop.permute.xlu0 %4964
        %4966 = vset.pattern.permute.xlu0 0
        %4967 = vperm.xlu0 %4966, %v4538
        %v4968 = vpop.permute.xlu0 %4967
        %4969 = vset.pattern.permute.xlu0 0
        %4970 = vperm.xlu0 %4969, %v4539
        %v4971 = vpop.permute.xlu0 %4970
        %4972 = vset.pattern.permute.xlu0 0
        %4973 = vperm.xlu0 %4972, %v4540
        %v4974 = vpop.permute.xlu0 %4973
        %4975 = vset.pattern.permute.xlu0 0
        %4976 = vperm.xlu0 %4975, %v4541
        %v4977 = vpop.permute.xlu0 %4976
        %4978 = vset.pattern.permute.xlu0 0
        %4979 = vperm.xlu0 %4978, %v4542
        %v4980 = vpop.permute.xlu0 %4979
        %4981 = vset.pattern.permute.xlu0 0
        %4982 = vperm.xlu0 %4981, %v4543
        %v4983 = vpop.permute.xlu0 %4982
        %4984 = vset.pattern.permute.xlu0 0
        %4985 = vperm.xlu0 %4984, %v4544
        %v4986 = vpop.permute.xlu0 %4985
        %4987 = vset.pattern.permute.xlu0 0
        %4988 = vperm.xlu0 %4987, %v4545
        %v4989 = vpop.permute.xlu0 %4988
        %4990 = vset.pattern.permute.xlu0 0
        %4991 = vperm.xlu0 %4990, %v4546
        %v4992 = vpop.permute.xlu0 %4991
        %4993 = vset.pattern.permute.xlu0 0
        %4994 = vperm.xlu0 %4993, %v4547
        %v4995 = vpop.permute.xlu0 %4994
        %4996 = vset.pattern.permute.xlu0 0
        %4997 = vperm.xlu0 %4996, %v4548
        %v4998 = vpop.permute.xlu0 %4997
        %4999 = vset.pattern.permute.xlu0 0
        %5000 = vperm.xlu0 %4999, %v4550
        %v5001 = vpop.permute.xlu0 %5000
        %5002 = vset.pattern.permute.xlu0 0
        %5003 = vperm.xlu0 %5002, %v4551
        %v5004 = vpop.permute.xlu0 %5003
        %5005 = vset.pattern.permute.xlu0 0
        %5006 = vperm.xlu0 %5005, %v4552
        %v5007 = vpop.permute.xlu0 %5006
        %5008 = vset.pattern.permute.xlu0 0
        %5009 = vperm.xlu0 %5008, %v4553
        %v5010 = vpop.permute.xlu0 %5009
        %5011 = vset.pattern.permute.xlu0 0
        %5012 = vperm.xlu0 %5011, %v4554
        %v5013 = vpop.permute.xlu0 %5012
        %5014 = vset.pattern.permute.xlu0 0
        %5015 = vperm.xlu0 %5014, %v4555
        %v5016 = vpop.permute.xlu0 %5015
        %5017 = vset.pattern.permute.xlu0 0
        %5018 = vperm.xlu0 %5017, %v4556
        %v5019 = vpop.permute.xlu0 %5018
        %5020 = vset.pattern.permute.xlu0 0
        %5021 = vperm.xlu0 %5020, %v4557
        %v5022 = vpop.permute.xlu0 %5021
        %5023 = vset.pattern.permute.xlu0 0
        %5024 = vperm.xlu0 %5023, %v4558
        %v5025 = vpop.permute.xlu0 %5024
        %5026 = vset.pattern.permute.xlu0 0
        %5027 = vperm.xlu0 %5026, %v4559
        %v5028 = vpop.permute.xlu0 %5027
        %5029 = vset.pattern.permute.xlu0 0
        %5030 = vperm.xlu0 %5029, %v4560
        %v5031 = vpop.permute.xlu0 %5030
        %5032 = vset.pattern.permute.xlu0 0
        %5033 = vperm.xlu0 %5032, %v4561
        %v5034 = vpop.permute.xlu0 %5033
        %5035 = vset.pattern.permute.xlu0 0
        %5036 = vperm.xlu0 %5035, %v4562
        %v5037 = vpop.permute.xlu0 %5036
        %5038 = vset.pattern.permute.xlu0 0
        %5039 = vperm.xlu0 %5038, %v4563
        %v5040 = vpop.permute.xlu0 %5039
        %5041 = vset.pattern.permute.xlu0 0
        %5042 = vperm.xlu0 %5041, %v4564
        %v5043 = vpop.permute.xlu0 %5042
        %5044 = vset.pattern.permute.xlu0 0
        %5045 = vperm.xlu0 %5044, %v4565
        %v5046 = vpop.permute.xlu0 %5045
        %5047 = vset.pattern.permute.xlu0 0
        %5048 = vperm.xlu0 %5047, %v4567
        %v5049 = vpop.permute.xlu0 %5048
        %5050 = vset.pattern.permute.xlu0 0
        %5051 = vperm.xlu0 %5050, %v4568
        %v5052 = vpop.permute.xlu0 %5051
        %5053 = vset.pattern.permute.xlu0 0
        %5054 = vperm.xlu0 %5053, %v4569
        %v5055 = vpop.permute.xlu0 %5054
        %5056 = vset.pattern.permute.xlu0 0
        %5057 = vperm.xlu0 %5056, %v4570
        %v5058 = vpop.permute.xlu0 %5057
        %5059 = vset.pattern.permute.xlu0 0
        %5060 = vperm.xlu0 %5059, %v4571
        %v5061 = vpop.permute.xlu0 %5060
        %5062 = vset.pattern.permute.xlu0 0
        %5063 = vperm.xlu0 %5062, %v4572
        %v5064 = vpop.permute.xlu0 %5063
        %5065 = vset.pattern.permute.xlu0 0
        %5066 = vperm.xlu0 %5065, %v4573
        %v5067 = vpop.permute.xlu0 %5066
        %5068 = vset.pattern.permute.xlu0 0
        %5069 = vperm.xlu0 %5068, %v4574
        %v5070 = vpop.permute.xlu0 %5069
        %5071 = vset.pattern.permute.xlu0 0
        %5072 = vperm.xlu0 %5071, %v4575
        %v5073 = vpop.permute.xlu0 %5072
        %5074 = vset.pattern.permute.xlu0 0
        %5075 = vperm.xlu0 %5074, %v4576
        %v5076 = vpop.permute.xlu0 %5075
        %5077 = vset.pattern.permute.xlu0 0
        %5078 = vperm.xlu0 %5077, %v4577
        %v5079 = vpop.permute.xlu0 %5078
        %5080 = vset.pattern.permute.xlu0 0
        %5081 = vperm.xlu0 %5080, %v4578
        %v5082 = vpop.permute.xlu0 %5081
        %5083 = vset.pattern.permute.xlu0 0
        %5084 = vperm.xlu0 %5083, %v4579
        %v5085 = vpop.permute.xlu0 %5084
        %5086 = vset.pattern.permute.xlu0 0
        %5087 = vperm.xlu0 %5086, %v4580
        %v5088 = vpop.permute.xlu0 %5087
        %5089 = vset.pattern.permute.xlu0 0
        %5090 = vperm.xlu0 %5089, %v4581
        %v5091 = vpop.permute.xlu0 %5090
        %5092 = vset.pattern.permute.xlu0 0
        %5093 = vperm.xlu0 %5092, %v4582
        %v5094 = vpop.permute.xlu0 %5093
        %v5095 = vlaneseq
        %v5096 = vshrl.u32 %v5095, 7
        %v5097 = vsub.s32 %v2147, %v5096
        %v5098 = vrot.slane %v4713, %v5097
        %v5099 = vlaneseq
        %v5100 = vshrl.u32 %v5099, 7
        %v5101 = vsub.s32 %v2152, %v5100
        %v5102 = vrot.slane %v4716, %v5101
        %v5103 = vsel %vm2157, %v5102, %v5098
        %v5104 = vlaneseq
        %v5105 = vshrl.u32 %v5104, 7
        %v5106 = vsub.s32 %v2159, %v5105
        %v5107 = vrot.slane %v4719, %v5106
        %v5108 = vsel %vm2164, %v5107, %v5103
        %v5109 = vlaneseq
        %v5110 = vshrl.u32 %v5109, 7
        %v5111 = vsub.s32 %v2166, %v5110
        %v5112 = vrot.slane %v4722, %v5111
        %v5113 = vsel %vm2171, %v5112, %v5108
        %v5114 = vlaneseq
        %v5115 = vshrl.u32 %v5114, 7
        %v5116 = vsub.s32 %v2173, %v5115
        %v5117 = vrot.slane %v4725, %v5116
        %v5118 = vsel %vm2178, %v5117, %v5113
        %v5119 = vlaneseq
        %v5120 = vshrl.u32 %v5119, 7
        %v5121 = vsub.s32 %v2180, %v5120
        %v5122 = vrot.slane %v4728, %v5121
        %v5123 = vsel %vm2185, %v5122, %v5118
        %v5124 = vlaneseq
        %v5125 = vshrl.u32 %v5124, 7
        %v5126 = vsub.s32 %v2187, %v5125
        %v5127 = vrot.slane %v4731, %v5126
        %v5128 = vsel %vm2192, %v5127, %v5123
        %v5129 = vlaneseq
        %v5130 = vshrl.u32 %v5129, 7
        %v5131 = vsub.s32 %v2194, %v5130
        %v5132 = vrot.slane %v4734, %v5131
        %v5133 = vsel %vm2199, %v5132, %v5128
        %v5134 = vlaneseq
        %v5135 = vshrl.u32 %v5134, 7
        %v5136 = vsub.s32 %v2201, %v5135
        %v5137 = vrot.slane %v4737, %v5136
        %v5138 = vsel %vm2206, %v5137, %v5133
        %v5139 = vlaneseq
        %v5140 = vshrl.u32 %v5139, 7
        %v5141 = vsub.s32 %v2208, %v5140
        %v5142 = vrot.slane %v4740, %v5141
        %v5143 = vsel %vm2213, %v5142, %v5138
        %v5144 = vlaneseq
        %v5145 = vshrl.u32 %v5144, 7
        %v5146 = vsub.s32 %v2215, %v5145
        %v5147 = vrot.slane %v4743, %v5146
        %v5148 = vsel %vm2220, %v5147, %v5143
        %v5149 = vlaneseq
        %v5150 = vshrl.u32 %v5149, 7
        %v5151 = vsub.s32 %v2222, %v5150
        %v5152 = vrot.slane %v4746, %v5151
        %v5153 = vsel %vm2227, %v5152, %v5148
        %v5154 = vlaneseq
        %v5155 = vshrl.u32 %v5154, 7
        %v5156 = vsub.s32 %v2229, %v5155
        %v5157 = vrot.slane %v4749, %v5156
        %v5158 = vsel %vm2234, %v5157, %v5153
        %v5159 = vlaneseq
        %v5160 = vshrl.u32 %v5159, 7
        %v5161 = vsub.s32 %v2236, %v5160
        %v5162 = vrot.slane %v4752, %v5161
        %v5163 = vsel %vm2241, %v5162, %v5158
        %v5164 = vlaneseq
        %v5165 = vshrl.u32 %v5164, 7
        %v5166 = vsub.s32 %v2243, %v5165
        %v5167 = vrot.slane %v4755, %v5166
        %v5168 = vsel %vm2248, %v5167, %v5163
        %v5169 = vlaneseq
        %v5170 = vshrl.u32 %v5169, 7
        %v5171 = vsub.s32 %v2250, %v5170
        %v5172 = vrot.slane %v4758, %v5171
        %v5173 = vsel %vm2255, %v5172, %v5168
        %v5174 = vlaneseq
        %v5175 = vshrl.u32 %v5174, 7
        %v5176 = vsub.s32 %v2147, %v5175
        %v5177 = vrot.slane %v4761, %v5176
        %v5178 = vlaneseq
        %v5179 = vshrl.u32 %v5178, 7
        %v5180 = vsub.s32 %v2152, %v5179
        %v5181 = vrot.slane %v4764, %v5180
        %v5182 = vsel %vm2157, %v5181, %v5177
        %v5183 = vlaneseq
        %v5184 = vshrl.u32 %v5183, 7
        %v5185 = vsub.s32 %v2159, %v5184
        %v5186 = vrot.slane %v4767, %v5185
        %v5187 = vsel %vm2164, %v5186, %v5182
        %v5188 = vlaneseq
        %v5189 = vshrl.u32 %v5188, 7
        %v5190 = vsub.s32 %v2166, %v5189
        %v5191 = vrot.slane %v4770, %v5190
        %v5192 = vsel %vm2171, %v5191, %v5187
        %v5193 = vlaneseq
        %v5194 = vshrl.u32 %v5193, 7
        %v5195 = vsub.s32 %v2173, %v5194
        %v5196 = vrot.slane %v4773, %v5195
        %v5197 = vsel %vm2178, %v5196, %v5192
        %v5198 = vlaneseq
        %v5199 = vshrl.u32 %v5198, 7
        %v5200 = vsub.s32 %v2180, %v5199
        %v5201 = vrot.slane %v4776, %v5200
        %v5202 = vsel %vm2185, %v5201, %v5197
        %v5203 = vlaneseq
        %v5204 = vshrl.u32 %v5203, 7
        %v5205 = vsub.s32 %v2187, %v5204
        %v5206 = vrot.slane %v4779, %v5205
        %v5207 = vsel %vm2192, %v5206, %v5202
        %v5208 = vlaneseq
        %v5209 = vshrl.u32 %v5208, 7
        %v5210 = vsub.s32 %v2194, %v5209
        %v5211 = vrot.slane %v4782, %v5210
        %v5212 = vsel %vm2199, %v5211, %v5207
        %v5213 = vlaneseq
        %v5214 = vshrl.u32 %v5213, 7
        %v5215 = vsub.s32 %v2201, %v5214
        %v5216 = vrot.slane %v4785, %v5215
        %v5217 = vsel %vm2206, %v5216, %v5212
        %v5218 = vlaneseq
        %v5219 = vshrl.u32 %v5218, 7
        %v5220 = vsub.s32 %v2208, %v5219
        %v5221 = vrot.slane %v4788, %v5220
        %v5222 = vsel %vm2213, %v5221, %v5217
        %v5223 = vlaneseq
        %v5224 = vshrl.u32 %v5223, 7
        %v5225 = vsub.s32 %v2215, %v5224
        %v5226 = vrot.slane %v4791, %v5225
        %v5227 = vsel %vm2220, %v5226, %v5222
        %v5228 = vlaneseq
        %v5229 = vshrl.u32 %v5228, 7
        %v5230 = vsub.s32 %v2222, %v5229
        %v5231 = vrot.slane %v4794, %v5230
        %v5232 = vsel %vm2227, %v5231, %v5227
        %v5233 = vlaneseq
        %v5234 = vshrl.u32 %v5233, 7
        %v5235 = vsub.s32 %v2229, %v5234
        %v5236 = vrot.slane %v4797, %v5235
        %v5237 = vsel %vm2234, %v5236, %v5232
        %v5238 = vlaneseq
        %v5239 = vshrl.u32 %v5238, 7
        %v5240 = vsub.s32 %v2236, %v5239
        %v5241 = vrot.slane %v4800, %v5240
        %v5242 = vsel %vm2241, %v5241, %v5237
        %v5243 = vlaneseq
        %v5244 = vshrl.u32 %v5243, 7
        %v5245 = vsub.s32 %v2243, %v5244
        %v5246 = vrot.slane %v4803, %v5245
        %v5247 = vsel %vm2248, %v5246, %v5242
        %v5248 = vlaneseq
        %v5249 = vshrl.u32 %v5248, 7
        %v5250 = vsub.s32 %v2250, %v5249
        %v5251 = vrot.slane %v4806, %v5250
        %v5252 = vsel %vm2255, %v5251, %v5247
        %v5253 = vlaneseq
        %v5254 = vshrl.u32 %v5253, 7
        %v5255 = vsub.s32 %v2147, %v5254
        %v5256 = vrot.slane %v4809, %v5255
        %v5257 = vlaneseq
        %v5258 = vshrl.u32 %v5257, 7
        %v5259 = vsub.s32 %v2152, %v5258
        %v5260 = vrot.slane %v4812, %v5259
        %v5261 = vsel %vm2157, %v5260, %v5256
        %v5262 = vlaneseq
        %v5263 = vshrl.u32 %v5262, 7
        %v5264 = vsub.s32 %v2159, %v5263
        %v5265 = vrot.slane %v4815, %v5264
        %v5266 = vsel %vm2164, %v5265, %v5261
        %v5267 = vlaneseq
        %v5268 = vshrl.u32 %v5267, 7
        %v5269 = vsub.s32 %v2166, %v5268
        %v5270 = vrot.slane %v4818, %v5269
        %v5271 = vsel %vm2171, %v5270, %v5266
        %v5272 = vlaneseq
        %v5273 = vshrl.u32 %v5272, 7
        %v5274 = vsub.s32 %v2173, %v5273
        %v5275 = vrot.slane %v4821, %v5274
        %v5276 = vsel %vm2178, %v5275, %v5271
        %v5277 = vlaneseq
        %v5278 = vshrl.u32 %v5277, 7
        %v5279 = vsub.s32 %v2180, %v5278
        %v5280 = vrot.slane %v4824, %v5279
        %v5281 = vsel %vm2185, %v5280, %v5276
        %v5282 = vlaneseq
        %v5283 = vshrl.u32 %v5282, 7
        %v5284 = vsub.s32 %v2187, %v5283
        %v5285 = vrot.slane %v4827, %v5284
        %v5286 = vsel %vm2192, %v5285, %v5281
        %v5287 = vlaneseq
        %v5288 = vshrl.u32 %v5287, 7
        %v5289 = vsub.s32 %v2194, %v5288
        %v5290 = vrot.slane %v4830, %v5289
        %v5291 = vsel %vm2199, %v5290, %v5286
        %v5292 = vlaneseq
        %v5293 = vshrl.u32 %v5292, 7
        %v5294 = vsub.s32 %v2201, %v5293
        %v5295 = vrot.slane %v4833, %v5294
        %v5296 = vsel %vm2206, %v5295, %v5291
        %v5297 = vlaneseq
        %v5298 = vshrl.u32 %v5297, 7
        %v5299 = vsub.s32 %v2208, %v5298
        %v5300 = vrot.slane %v4836, %v5299
        %v5301 = vsel %vm2213, %v5300, %v5296
        %v5302 = vlaneseq
        %v5303 = vshrl.u32 %v5302, 7
        %v5304 = vsub.s32 %v2215, %v5303
        %v5305 = vrot.slane %v4839, %v5304
        %v5306 = vsel %vm2220, %v5305, %v5301
        %v5307 = vlaneseq
        %v5308 = vshrl.u32 %v5307, 7
        %v5309 = vsub.s32 %v2222, %v5308
        %v5310 = vrot.slane %v4842, %v5309
        %v5311 = vsel %vm2227, %v5310, %v5306
        %v5312 = vlaneseq
        %v5313 = vshrl.u32 %v5312, 7
        %v5314 = vsub.s32 %v2229, %v5313
        %v5315 = vrot.slane %v4845, %v5314
        %v5316 = vsel %vm2234, %v5315, %v5311
        %v5317 = vlaneseq
        %v5318 = vshrl.u32 %v5317, 7
        %v5319 = vsub.s32 %v2236, %v5318
        %v5320 = vrot.slane %v4848, %v5319
        %v5321 = vsel %vm2241, %v5320, %v5316
        %v5322 = vlaneseq
        %v5323 = vshrl.u32 %v5322, 7
        %v5324 = vsub.s32 %v2243, %v5323
        %v5325 = vrot.slane %v4851, %v5324
        %v5326 = vsel %vm2248, %v5325, %v5321
        %v5327 = vlaneseq
        %v5328 = vshrl.u32 %v5327, 7
        %v5329 = vsub.s32 %v2250, %v5328
        %v5330 = vrot.slane %v4854, %v5329
        %v5331 = vsel %vm2255, %v5330, %v5326
        %v5332 = vlaneseq
        %v5333 = vshrl.u32 %v5332, 7
        %v5334 = vsub.s32 %v2147, %v5333
        %v5335 = vrot.slane %v4857, %v5334
        %v5336 = vlaneseq
        %v5337 = vshrl.u32 %v5336, 7
        %v5338 = vsub.s32 %v2152, %v5337
        %v5339 = vrot.slane %v4860, %v5338
        %v5340 = vsel %vm2157, %v5339, %v5335
        %v5341 = vlaneseq
        %v5342 = vshrl.u32 %v5341, 7
        %v5343 = vsub.s32 %v2159, %v5342
        %v5344 = vrot.slane %v4863, %v5343
        %v5345 = vsel %vm2164, %v5344, %v5340
        %v5346 = vlaneseq
        %v5347 = vshrl.u32 %v5346, 7
        %v5348 = vsub.s32 %v2166, %v5347
        %v5349 = vrot.slane %v4866, %v5348
        %v5350 = vsel %vm2171, %v5349, %v5345
        %v5351 = vlaneseq
        %v5352 = vshrl.u32 %v5351, 7
        %v5353 = vsub.s32 %v2173, %v5352
        %v5354 = vrot.slane %v4869, %v5353
        %v5355 = vsel %vm2178, %v5354, %v5350
        %v5356 = vlaneseq
        %v5357 = vshrl.u32 %v5356, 7
        %v5358 = vsub.s32 %v2180, %v5357
        %v5359 = vrot.slane %v4872, %v5358
        %v5360 = vsel %vm2185, %v5359, %v5355
        %v5361 = vlaneseq
        %v5362 = vshrl.u32 %v5361, 7
        %v5363 = vsub.s32 %v2187, %v5362
        %v5364 = vrot.slane %v4875, %v5363
        %v5365 = vsel %vm2192, %v5364, %v5360
        %v5366 = vlaneseq
        %v5367 = vshrl.u32 %v5366, 7
        %v5368 = vsub.s32 %v2194, %v5367
        %v5369 = vrot.slane %v4878, %v5368
        %v5370 = vsel %vm2199, %v5369, %v5365
        %v5371 = vlaneseq
        %v5372 = vshrl.u32 %v5371, 7
        %v5373 = vsub.s32 %v2201, %v5372
        %v5374 = vrot.slane %v4881, %v5373
        %v5375 = vsel %vm2206, %v5374, %v5370
        %v5376 = vlaneseq
        %v5377 = vshrl.u32 %v5376, 7
        %v5378 = vsub.s32 %v2208, %v5377
        %v5379 = vrot.slane %v4884, %v5378
        %v5380 = vsel %vm2213, %v5379, %v5375
        %v5381 = vlaneseq
        %v5382 = vshrl.u32 %v5381, 7
        %v5383 = vsub.s32 %v2215, %v5382
        %v5384 = vrot.slane %v4887, %v5383
        %v5385 = vsel %vm2220, %v5384, %v5380
        %v5386 = vlaneseq
        %v5387 = vshrl.u32 %v5386, 7
        %v5388 = vsub.s32 %v2222, %v5387
        %v5389 = vrot.slane %v4890, %v5388
        %v5390 = vsel %vm2227, %v5389, %v5385
        %v5391 = vlaneseq
        %v5392 = vshrl.u32 %v5391, 7
        %v5393 = vsub.s32 %v2229, %v5392
        %v5394 = vrot.slane %v4893, %v5393
        %v5395 = vsel %vm2234, %v5394, %v5390
        %v5396 = vlaneseq
        %v5397 = vshrl.u32 %v5396, 7
        %v5398 = vsub.s32 %v2236, %v5397
        %v5399 = vrot.slane %v4896, %v5398
        %v5400 = vsel %vm2241, %v5399, %v5395
        %v5401 = vlaneseq
        %v5402 = vshrl.u32 %v5401, 7
        %v5403 = vsub.s32 %v2243, %v5402
        %v5404 = vrot.slane %v4899, %v5403
        %v5405 = vsel %vm2248, %v5404, %v5400
        %v5406 = vlaneseq
        %v5407 = vshrl.u32 %v5406, 7
        %v5408 = vsub.s32 %v2250, %v5407
        %v5409 = vrot.slane %v4902, %v5408
        %v5410 = vsel %vm2255, %v5409, %v5405
        %v5411 = vlaneseq
        %v5412 = vshrl.u32 %v5411, 7
        %v5413 = vsub.s32 %v2147, %v5412
        %v5414 = vrot.slane %v4905, %v5413
        %v5415 = vlaneseq
        %v5416 = vshrl.u32 %v5415, 7
        %v5417 = vsub.s32 %v2152, %v5416
        %v5418 = vrot.slane %v4908, %v5417
        %v5419 = vsel %vm2157, %v5418, %v5414
        %v5420 = vlaneseq
        %v5421 = vshrl.u32 %v5420, 7
        %v5422 = vsub.s32 %v2159, %v5421
        %v5423 = vrot.slane %v4911, %v5422
        %v5424 = vsel %vm2164, %v5423, %v5419
        %v5425 = vlaneseq
        %v5426 = vshrl.u32 %v5425, 7
        %v5427 = vsub.s32 %v2166, %v5426
        %v5428 = vrot.slane %v4914, %v5427
        %v5429 = vsel %vm2171, %v5428, %v5424
        %v5430 = vlaneseq
        %v5431 = vshrl.u32 %v5430, 7
        %v5432 = vsub.s32 %v2173, %v5431
        %v5433 = vrot.slane %v4917, %v5432
        %v5434 = vsel %vm2178, %v5433, %v5429
        %v5435 = vlaneseq
        %v5436 = vshrl.u32 %v5435, 7
        %v5437 = vsub.s32 %v2180, %v5436
        %v5438 = vrot.slane %v4920, %v5437
        %v5439 = vsel %vm2185, %v5438, %v5434
        %v5440 = vlaneseq
        %v5441 = vshrl.u32 %v5440, 7
        %v5442 = vsub.s32 %v2187, %v5441
        %v5443 = vrot.slane %v4923, %v5442
        %v5444 = vsel %vm2192, %v5443, %v5439
        %v5445 = vlaneseq
        %v5446 = vshrl.u32 %v5445, 7
        %v5447 = vsub.s32 %v2194, %v5446
        %v5448 = vrot.slane %v4926, %v5447
        %v5449 = vsel %vm2199, %v5448, %v5444
        %v5450 = vlaneseq
        %v5451 = vshrl.u32 %v5450, 7
        %v5452 = vsub.s32 %v2201, %v5451
        %v5453 = vrot.slane %v4929, %v5452
        %v5454 = vsel %vm2206, %v5453, %v5449
        %v5455 = vlaneseq
        %v5456 = vshrl.u32 %v5455, 7
        %v5457 = vsub.s32 %v2208, %v5456
        %v5458 = vrot.slane %v4932, %v5457
        %v5459 = vsel %vm2213, %v5458, %v5454
        %v5460 = vlaneseq
        %v5461 = vshrl.u32 %v5460, 7
        %v5462 = vsub.s32 %v2215, %v5461
        %v5463 = vrot.slane %v4935, %v5462
        %v5464 = vsel %vm2220, %v5463, %v5459
        %v5465 = vlaneseq
        %v5466 = vshrl.u32 %v5465, 7
        %v5467 = vsub.s32 %v2222, %v5466
        %v5468 = vrot.slane %v4938, %v5467
        %v5469 = vsel %vm2227, %v5468, %v5464
        %v5470 = vlaneseq
        %v5471 = vshrl.u32 %v5470, 7
        %v5472 = vsub.s32 %v2229, %v5471
        %v5473 = vrot.slane %v4941, %v5472
        %v5474 = vsel %vm2234, %v5473, %v5469
        %v5475 = vlaneseq
        %v5476 = vshrl.u32 %v5475, 7
        %v5477 = vsub.s32 %v2236, %v5476
        %v5478 = vrot.slane %v4944, %v5477
        %v5479 = vsel %vm2241, %v5478, %v5474
        %v5480 = vlaneseq
        %v5481 = vshrl.u32 %v5480, 7
        %v5482 = vsub.s32 %v2243, %v5481
        %v5483 = vrot.slane %v4947, %v5482
        %v5484 = vsel %vm2248, %v5483, %v5479
        %v5485 = vlaneseq
        %v5486 = vshrl.u32 %v5485, 7
        %v5487 = vsub.s32 %v2250, %v5486
        %v5488 = vrot.slane %v4950, %v5487
        %v5489 = vsel %vm2255, %v5488, %v5484
        %v5490 = vlaneseq
        %v5491 = vshrl.u32 %v5490, 7
        %v5492 = vsub.s32 %v2147, %v5491
        %v5493 = vrot.slane %v4953, %v5492
        %v5494 = vlaneseq
        %v5495 = vshrl.u32 %v5494, 7
        %v5496 = vsub.s32 %v2152, %v5495
        %v5497 = vrot.slane %v4956, %v5496
        %v5498 = vsel %vm2157, %v5497, %v5493
        %v5499 = vlaneseq
        %v5500 = vshrl.u32 %v5499, 7
        %v5501 = vsub.s32 %v2159, %v5500
        %v5502 = vrot.slane %v4959, %v5501
        %v5503 = vsel %vm2164, %v5502, %v5498
        %v5504 = vlaneseq
        %v5505 = vshrl.u32 %v5504, 7
        %v5506 = vsub.s32 %v2166, %v5505
        %v5507 = vrot.slane %v4962, %v5506
        %v5508 = vsel %vm2171, %v5507, %v5503
        %v5509 = vlaneseq
        %v5510 = vshrl.u32 %v5509, 7
        %v5511 = vsub.s32 %v2173, %v5510
        %v5512 = vrot.slane %v4965, %v5511
        %v5513 = vsel %vm2178, %v5512, %v5508
        %v5514 = vlaneseq
        %v5515 = vshrl.u32 %v5514, 7
        %v5516 = vsub.s32 %v2180, %v5515
        %v5517 = vrot.slane %v4968, %v5516
        %v5518 = vsel %vm2185, %v5517, %v5513
        %v5519 = vlaneseq
        %v5520 = vshrl.u32 %v5519, 7
        %v5521 = vsub.s32 %v2187, %v5520
        %v5522 = vrot.slane %v4971, %v5521
        %v5523 = vsel %vm2192, %v5522, %v5518
        %v5524 = vlaneseq
        %v5525 = vshrl.u32 %v5524, 7
        %v5526 = vsub.s32 %v2194, %v5525
        %v5527 = vrot.slane %v4974, %v5526
        %v5528 = vsel %vm2199, %v5527, %v5523
        %v5529 = vlaneseq
        %v5530 = vshrl.u32 %v5529, 7
        %v5531 = vsub.s32 %v2201, %v5530
        %v5532 = vrot.slane %v4977, %v5531
        %v5533 = vsel %vm2206, %v5532, %v5528
        %v5534 = vlaneseq
        %v5535 = vshrl.u32 %v5534, 7
        %v5536 = vsub.s32 %v2208, %v5535
        %v5537 = vrot.slane %v4980, %v5536
        %v5538 = vsel %vm2213, %v5537, %v5533
        %v5539 = vlaneseq
        %v5540 = vshrl.u32 %v5539, 7
        %v5541 = vsub.s32 %v2215, %v5540
        %v5542 = vrot.slane %v4983, %v5541
        %v5543 = vsel %vm2220, %v5542, %v5538
        %v5544 = vlaneseq
        %v5545 = vshrl.u32 %v5544, 7
        %v5546 = vsub.s32 %v2222, %v5545
        %v5547 = vrot.slane %v4986, %v5546
        %v5548 = vsel %vm2227, %v5547, %v5543
        %v5549 = vlaneseq
        %v5550 = vshrl.u32 %v5549, 7
        %v5551 = vsub.s32 %v2229, %v5550
        %v5552 = vrot.slane %v4989, %v5551
        %v5553 = vsel %vm2234, %v5552, %v5548
        %v5554 = vlaneseq
        %v5555 = vshrl.u32 %v5554, 7
        %v5556 = vsub.s32 %v2236, %v5555
        %v5557 = vrot.slane %v4992, %v5556
        %v5558 = vsel %vm2241, %v5557, %v5553
        %v5559 = vlaneseq
        %v5560 = vshrl.u32 %v5559, 7
        %v5561 = vsub.s32 %v2243, %v5560
        %v5562 = vrot.slane %v4995, %v5561
        %v5563 = vsel %vm2248, %v5562, %v5558
        %v5564 = vlaneseq
        %v5565 = vshrl.u32 %v5564, 7
        %v5566 = vsub.s32 %v2250, %v5565
        %v5567 = vrot.slane %v4998, %v5566
        %v5568 = vsel %vm2255, %v5567, %v5563
        %v5569 = vlaneseq
        %v5570 = vshrl.u32 %v5569, 7
        %v5571 = vsub.s32 %v2147, %v5570
        %v5572 = vrot.slane %v5001, %v5571
        %v5573 = vlaneseq
        %v5574 = vshrl.u32 %v5573, 7
        %v5575 = vsub.s32 %v2152, %v5574
        %v5576 = vrot.slane %v5004, %v5575
        %v5577 = vsel %vm2157, %v5576, %v5572
        %v5578 = vlaneseq
        %v5579 = vshrl.u32 %v5578, 7
        %v5580 = vsub.s32 %v2159, %v5579
        %v5581 = vrot.slane %v5007, %v5580
        %v5582 = vsel %vm2164, %v5581, %v5577
        %v5583 = vlaneseq
        %v5584 = vshrl.u32 %v5583, 7
        %v5585 = vsub.s32 %v2166, %v5584
        %v5586 = vrot.slane %v5010, %v5585
        %v5587 = vsel %vm2171, %v5586, %v5582
        %v5588 = vlaneseq
        %v5589 = vshrl.u32 %v5588, 7
        %v5590 = vsub.s32 %v2173, %v5589
        %v5591 = vrot.slane %v5013, %v5590
        %v5592 = vsel %vm2178, %v5591, %v5587
        %v5593 = vlaneseq
        %v5594 = vshrl.u32 %v5593, 7
        %v5595 = vsub.s32 %v2180, %v5594
        %v5596 = vrot.slane %v5016, %v5595
        %v5597 = vsel %vm2185, %v5596, %v5592
        %v5598 = vlaneseq
        %v5599 = vshrl.u32 %v5598, 7
        %v5600 = vsub.s32 %v2187, %v5599
        %v5601 = vrot.slane %v5019, %v5600
        %v5602 = vsel %vm2192, %v5601, %v5597
        %v5603 = vlaneseq
        %v5604 = vshrl.u32 %v5603, 7
        %v5605 = vsub.s32 %v2194, %v5604
        %v5606 = vrot.slane %v5022, %v5605
        %v5607 = vsel %vm2199, %v5606, %v5602
        %v5608 = vlaneseq
        %v5609 = vshrl.u32 %v5608, 7
        %v5610 = vsub.s32 %v2201, %v5609
        %v5611 = vrot.slane %v5025, %v5610
        %v5612 = vsel %vm2206, %v5611, %v5607
        %v5613 = vlaneseq
        %v5614 = vshrl.u32 %v5613, 7
        %v5615 = vsub.s32 %v2208, %v5614
        %v5616 = vrot.slane %v5028, %v5615
        %v5617 = vsel %vm2213, %v5616, %v5612
        %v5618 = vlaneseq
        %v5619 = vshrl.u32 %v5618, 7
        %v5620 = vsub.s32 %v2215, %v5619
        %v5621 = vrot.slane %v5031, %v5620
        %v5622 = vsel %vm2220, %v5621, %v5617
        %v5623 = vlaneseq
        %v5624 = vshrl.u32 %v5623, 7
        %v5625 = vsub.s32 %v2222, %v5624
        %v5626 = vrot.slane %v5034, %v5625
        %v5627 = vsel %vm2227, %v5626, %v5622
        %v5628 = vlaneseq
        %v5629 = vshrl.u32 %v5628, 7
        %v5630 = vsub.s32 %v2229, %v5629
        %v5631 = vrot.slane %v5037, %v5630
        %v5632 = vsel %vm2234, %v5631, %v5627
        %v5633 = vlaneseq
        %v5634 = vshrl.u32 %v5633, 7
        %v5635 = vsub.s32 %v2236, %v5634
        %v5636 = vrot.slane %v5040, %v5635
        %v5637 = vsel %vm2241, %v5636, %v5632
        %v5638 = vlaneseq
        %v5639 = vshrl.u32 %v5638, 7
        %v5640 = vsub.s32 %v2243, %v5639
        %v5641 = vrot.slane %v5043, %v5640
        %v5642 = vsel %vm2248, %v5641, %v5637
        %v5643 = vlaneseq
        %v5644 = vshrl.u32 %v5643, 7
        %v5645 = vsub.s32 %v2250, %v5644
        %v5646 = vrot.slane %v5046, %v5645
        %v5647 = vsel %vm2255, %v5646, %v5642
        %v5648 = vlaneseq
        %v5649 = vshrl.u32 %v5648, 7
        %v5650 = vsub.s32 %v2147, %v5649
        %v5651 = vrot.slane %v5049, %v5650
        %v5652 = vlaneseq
        %v5653 = vshrl.u32 %v5652, 7
        %v5654 = vsub.s32 %v2152, %v5653
        %v5655 = vrot.slane %v5052, %v5654
        %v5656 = vsel %vm2157, %v5655, %v5651
        %v5657 = vlaneseq
        %v5658 = vshrl.u32 %v5657, 7
        %v5659 = vsub.s32 %v2159, %v5658
        %v5660 = vrot.slane %v5055, %v5659
        %v5661 = vsel %vm2164, %v5660, %v5656
        %v5662 = vlaneseq
        %v5663 = vshrl.u32 %v5662, 7
        %v5664 = vsub.s32 %v2166, %v5663
        %v5665 = vrot.slane %v5058, %v5664
        %v5666 = vsel %vm2171, %v5665, %v5661
        %v5667 = vlaneseq
        %v5668 = vshrl.u32 %v5667, 7
        %v5669 = vsub.s32 %v2173, %v5668
        %v5670 = vrot.slane %v5061, %v5669
        %v5671 = vsel %vm2178, %v5670, %v5666
        %v5672 = vlaneseq
        %v5673 = vshrl.u32 %v5672, 7
        %v5674 = vsub.s32 %v2180, %v5673
        %v5675 = vrot.slane %v5064, %v5674
        %v5676 = vsel %vm2185, %v5675, %v5671
        %v5677 = vlaneseq
        %v5678 = vshrl.u32 %v5677, 7
        %v5679 = vsub.s32 %v2187, %v5678
        %v5680 = vrot.slane %v5067, %v5679
        %v5681 = vsel %vm2192, %v5680, %v5676
        %v5682 = vlaneseq
        %v5683 = vshrl.u32 %v5682, 7
        %v5684 = vsub.s32 %v2194, %v5683
        %v5685 = vrot.slane %v5070, %v5684
        %v5686 = vsel %vm2199, %v5685, %v5681
        %v5687 = vlaneseq
        %v5688 = vshrl.u32 %v5687, 7
        %v5689 = vsub.s32 %v2201, %v5688
        %v5690 = vrot.slane %v5073, %v5689
        %v5691 = vsel %vm2206, %v5690, %v5686
        %v5692 = vlaneseq
        %v5693 = vshrl.u32 %v5692, 7
        %v5694 = vsub.s32 %v2208, %v5693
        %v5695 = vrot.slane %v5076, %v5694
        %v5696 = vsel %vm2213, %v5695, %v5691
        %v5697 = vlaneseq
        %v5698 = vshrl.u32 %v5697, 7
        %v5699 = vsub.s32 %v2215, %v5698
        %v5700 = vrot.slane %v5079, %v5699
        %v5701 = vsel %vm2220, %v5700, %v5696
        %v5702 = vlaneseq
        %v5703 = vshrl.u32 %v5702, 7
        %v5704 = vsub.s32 %v2222, %v5703
        %v5705 = vrot.slane %v5082, %v5704
        %v5706 = vsel %vm2227, %v5705, %v5701
        %v5707 = vlaneseq
        %v5708 = vshrl.u32 %v5707, 7
        %v5709 = vsub.s32 %v2229, %v5708
        %v5710 = vrot.slane %v5085, %v5709
        %v5711 = vsel %vm2234, %v5710, %v5706
        %v5712 = vlaneseq
        %v5713 = vshrl.u32 %v5712, 7
        %v5714 = vsub.s32 %v2236, %v5713
        %v5715 = vrot.slane %v5088, %v5714
        %v5716 = vsel %vm2241, %v5715, %v5711
        %v5717 = vlaneseq
        %v5718 = vshrl.u32 %v5717, 7
        %v5719 = vsub.s32 %v2243, %v5718
        %v5720 = vrot.slane %v5091, %v5719
        %v5721 = vsel %vm2248, %v5720, %v5716
        %v5722 = vlaneseq
        %v5723 = vshrl.u32 %v5722, 7
        %v5724 = vsub.s32 %v2250, %v5723
        %v5725 = vrot.slane %v5094, %v5724
        %v5726 = vsel %vm2255, %v5725, %v5721
        %v5727 = vsel %vm2810, %v5252, %v5173
        %v5728 = vsel %vm2812, %v5331, %v5727
        %v5729 = vsel %vm2814, %v5410, %v5728
        %v5730 = vsel %vm2816, %v5489, %v5729
        %v5731 = vsel %vm2818, %v5568, %v5730
        %v5732 = vsel %vm2820, %v5647, %v5731
        %v5733 = vsel %vm2822, %v5726, %v5732
        %5735 = vst [vmem:[%s179] sm:$0xff] %v5733
        %s5736 = sand.u32 %s98, 1
        %s5737 = scalar_lea.sflag [#allocation3], %s5736
        %s5738 = sand.u32 %s98, 1
        %s5739 = smul.addr %s5738, 8
        %s5740 = scalar_lea.vmem [#allocation2], %s5739
        // Predicated region
        $region33: #{tpu_custom_call.1} parent=31 // pred_check
          %p5741 = pneg %p108
        $region34: #{tpu_custom_call.1} parent=31 // pred_check_branch
          %5743 = sbr.rel (%p5741) target = $region36
        $region35: #{tpu_custom_call.1} parent=31 // pred_region
          %s5745 = ssub.s32 128, 128
          %5746 = vsyncadd %s5737, %s5745
          %s5747 = smul.addr %s17, 128
          %s5748 = scalar_lea.hbm %s3, %s5747
          %s5750 = sshll.u32 %s5740, 4
          %s5751 = int_to_ptr.vmem [resolvable:$true] %s5750
          %5753 = dma.vmem_to_hbm [thread:$0]  %s5751, 128, %s5748, %s5737
        $region36: #{tpu_custom_call.1} parent=31 // pred_fallthru
          _
      $region32: #{tpu_custom_call.1} parent=5 // pred_fallthru
        _
      %p5754 = scmp.le.s32.totalorder 2, %s12
      // Predicated region
      $region37: #{tpu_custom_call.1} parent=5 // pred_check
        %p5755 = pneg %p5754
      $region38: #{tpu_custom_call.1} parent=5 // pred_check_branch
        %5757 = sbr.rel (%p5755) target = $region40
      $region39: #{tpu_custom_call.1} parent=5 // pred_region
        %s5758 = ssub.s32 %s12, 2
        // Predicated region
        $region41: #{tpu_custom_call.1} parent=39 // pred_check
          %p5759 = pneg %p114
        $region42: #{tpu_custom_call.1} parent=39 // pred_check_branch
          %5761 = sbr.rel (%p5759) target = $region44
        $region43: #{tpu_custom_call.1} parent=39 // pred_region
          %s5762 = sand.u32 %s99, 1
          %s5763 = scalar_lea.sflag [#allocation3], %s5762
          %s5764 = sand.u32 %s99, 1
          %s5765 = smul.addr %s5764, 8
          %s5766 = scalar_lea.vmem [#allocation2], %s5765
          %5767 = dma.done %s5763, 128
        $region44: #{tpu_custom_call.1} parent=39 // pred_fallthru
          _
      $region40: #{tpu_custom_call.1} parent=5 // pred_fallthru
        _
    $region6: #{tpu_custom_call.1} parent=1 // loop_footer
      %s16 = sadd.s32 1, %s12
    $region7: #{tpu_custom_call.1} parent=1 // loop_footer_branch
      %11 = sbr.rel target = $region3
    $region8: #{tpu_custom_call.1} parent=1 // loop_exit
      _
    %5768 = vsyncpa [#allocation3], 1
    %s5769 = scalar_lea.sflag [#allocation3], 1
    %5770 = vsyncpa %s5769, 1

</llo_original>
